<compile_context>
chip_gen: v6e
topology: v6e:2x2x1
jax: 0.10.0
libtpu: 0.0.40
codegen_flags: <defaults>
</compile_context>

<pallas_src>
from functools import partial

import jax
import jax.numpy as jnp
import numpy as np
from jax.experimental import pallas as pl
from jax.experimental.pallas import tpu as pltpu


def _layernorm(x, g, b, eps=1e-5):
    mu = jnp.mean(x, axis=-1, keepdims=True)
    var = jnp.mean((x - mu) ** 2, axis=-1, keepdims=True)
    return (x - mu) * jax.lax.rsqrt(var + eps) * g + b


# ---------------------------------------------------------------------------
# Single fused kernel (one batch tile per grid step)
# ---------------------------------------------------------------------------
def _fused_forward_kernel(
        featm_ref, sm_ref, tp_ref,
        w_emb_ref, b_emb_ref,
        wvo_ref, bvo_ref,
        g1_ref, be1_ref,
        w1_ref, b1_ref, w2_ref, b2_ref,
        g2_ref, be2_ref,
        w_h1_ref, b_h1_ref, w_h2_ref, b_h2_ref,
        hazard_ref, enc_ref):
    f32 = jnp.float32
    bf16 = jnp.bfloat16

    # ---- masked-mean pooling + input embedding ----
    # features arrive pre-masked; identity:
    #   sum_s((x_s @ W + b) * m_s) = (sum_s x_s*m_s) @ W + b * sum_s(m_s)
    sx = jnp.sum(featm_ref[...], axis=1)                         # (TB, F)
    sm = sm_ref[...]                                             # (TB, 1)
    num = jnp.dot(sx.astype(bf16), w_emb_ref[...],
                  preferred_element_type=f32) + b_emb_ref[...] * sm
    pooled = num / (sm + 1e-8)                                   # (TB, d)

    # ---- constant time-encoding(t=0) + positional-encoding row 0 ----
    x = pooled + tp_ref[...]                                     # (TB, d)

    # ---- transformer encoder layers (post-LN, ReLU FFN), seq_len == 1 ----
    # softmax over one key == 1  =>  attn == out_proj(V); Q/K cancel exactly.
    # wvo / bvo are the offline-folded V*out_proj weights.
    L = wvo_ref.shape[0]
    for l in range(L):                                           # static (L small)
        attn = jnp.dot(x.astype(bf16), wvo_ref[l],
                       preferred_element_type=f32) + bvo_ref[l]
        x1 = _layernorm(x + attn, g1_ref[l], be1_ref[l])

        h = jnp.maximum(
            jnp.dot(x1.astype(bf16), w1_ref[l],
                    preferred_element_type=f32) + b1_ref[l], 0.0)      # (TB, ff)
        ff = jnp.dot(h.astype(bf16), w2_ref[l],
                     preferred_element_type=f32) + b2_ref[l]           # (TB, d)
        x = _layernorm(x1 + ff, g2_ref[l], be2_ref[l])

    enc_ref[...] = x                                             # (TB, d)

    # ---- hazard heads, batched over risks ----
    # (TB,d)@(d,R*d2) then a block-diagonal (R*d2,R) second layer == per-risk
    # Linear(d2,1); single (TB, R) store.
    hh = jnp.maximum(
        jnp.dot(x.astype(bf16), w_h1_ref[...],
                preferred_element_type=f32) + b_h1_ref[...], 0.0)      # (TB, R*d2)
    o = jnp.dot(hh, w_h2_ref[...], preferred_element_type=f32) + b_h2_ref[...]
    hazard_ref[...] = jax.nn.sigmoid(o)                          # (TB, R)
    # TODO(synk): pack enc+hazard into one lane-dense (TB,128) output once
    # d_model is a multiple of 128 in production configs.


# ---------------------------------------------------------------------------
# Parameter construction (deterministic, synthetic)
# ---------------------------------------------------------------------------
def init_params(key, input_dim, d_model, num_risks, num_layers, dim_ff=2048):
    d2 = d_model // 2
    keys = jax.random.split(key, 3 + num_layers + num_risks)

    def lin(k, fan_in, fan_out):
        kw, kb = jax.random.split(k)
        w = jax.random.normal(kw, (fan_in, fan_out), jnp.float32) / np.sqrt(fan_in)
        b = jax.random.normal(kb, (1, fan_out), jnp.float32) * 0.01
        return w, b

    p = {}
    w_emb, b_emb = lin(keys[0], input_dim, d_model)
    p['w_emb'] = w_emb.astype(jnp.bfloat16)              # bf16 MXU operand
    p['b_emb'] = b_emb
    p['w_t1'], p['b_t1'] = lin(keys[1], 1, d2)           # Linear(1, d/2)
    p['w_t2'], p['b_t2'] = lin(keys[2], d2, d_model)     # Linear(d/2, d)

    wvo, bvo = [], []
    w1, b1, w2, b2 = [], [], [], []
    g1, be1, g2, be2 = [], [], [], []
    for l in range(num_layers):
        kl = jax.random.split(keys[3 + l], 4)
        wv, bv = lin(kl[0], d_model, d_model)            # V slice of in_proj
        wo, bo = lin(kl[1], d_model, d_model)            # out_proj
        # Offline fold (seq_len==1): attn = (x @ wv + bv) @ wo + bo
        #                                 = x @ (wv@wo) + (bv@wo + bo)
        wvo.append((wv @ wo))
        bvo.append(bv @ wo + bo)
        a, ab = lin(kl[2], d_model, dim_ff);  w1.append(a); b1.append(ab)   # FFN linear1
        a, ab = lin(kl[3], dim_ff, d_model);  w2.append(a); b2.append(ab)   # FFN linear2
        g1.append(jnp.ones((1, d_model), jnp.float32))
        be1.append(jnp.zeros((1, d_model), jnp.float32))
        g2.append(jnp.ones((1, d_model), jnp.float32))
        be2.append(jnp.zeros((1, d_model), jnp.float32))

    # Stacked per-layer weights; big matmul weights in bf16 (MXU-native,
    # halves weight DMA bytes), biases / LayerNorm params f32.
    p['wvo'] = jnp.stack(wvo).astype(jnp.bfloat16)        # (L, d, d)
    p['bvo'] = jnp.stack(bvo)                             # (L, 1, d)
    p['g1'] = jnp.stack(g1); p['be1'] = jnp.stack(be1)    # (L, 1, d)
    p['w1'] = jnp.stack(w1).astype(jnp.bfloat16)          # (L, d, ff)
    p['b1'] = jnp.stack(b1)                               # (L, 1, ff)
    p['w2'] = jnp.stack(w2).astype(jnp.bfloat16)          # (L, ff, d)
    p['b2'] = jnp.stack(b2)                               # (L, 1, d)
    p['g2'] = jnp.stack(g2); p['be2'] = jnp.stack(be2)    # (L, 1, d)

    # Hazard heads batched over risks: (d, R*d2) first layer, block-diagonal
    # (R*d2, R) second layer.
    w1s, b1s, b2s = [], [], []
    w_h2 = jnp.zeros((num_risks * d2, num_risks), jnp.float32)
    for r in range(num_risks):
        kr = jax.random.split(keys[3 + num_layers + r], 2)
        a, ab = lin(kr[0], d_model, d2)
        w1s.append(a); b1s.append(ab)
        a2, ab2 = lin(kr[1], d2, 1)
        w_h2 = w_h2.at[r * d2:(r + 1) * d2, r].set(a2[:, 0])
        b2s.append(ab2)
    p['w_h1'] = jnp.concatenate(w1s, axis=1).astype(jnp.bfloat16)   # (d, R*d2)
    p['b_h1'] = jnp.concatenate(b1s, axis=1)                        # (1, R*d2)
    p['w_h2'] = w_h2                                                # (R*d2, R)
    p['b_h2'] = jnp.concatenate(b2s, axis=1)                        # (1, R)
    return p


# ---------------------------------------------------------------------------
# Forward pass (one fused pallas_call, batch-tiled grid)
# ---------------------------------------------------------------------------
@partial(jax.jit, static_argnames=("max_time", "batch_tile"))
def hazard_transformer_forward(features, mask, params, max_time=365 * 15,
                               batch_tile=128):
    B, S, F = features.shape
    d = params['w_emb'].shape[1]
    R = params['w_h2'].shape[1]
    ff = params['w1'].shape[2]

    num_eval = 1   # torch.linspace(0, max_time, 1) -> single eval point t=0
    # Attention shortcut + constant time/pos term are only valid for T == 1.
    assert num_eval == 1

    eval_times = jnp.broadcast_to(
        jnp.linspace(0.0, float(max_time), num_eval, dtype=jnp.float32)[None, :],
        (B, num_eval))                                   # (B, 1) == [[0.0], ...]

    # Pre-mask features outside the kernel (fused into the HBM read by XLA);
    # pass only the (B,1) mask-count.  No lane-padded (B,S,1) mask DMA.
    maskf = mask.astype(jnp.float32)
    feat_masked = features.astype(jnp.float32) * maskf[:, :, None]   # (B, S, F)
    sm = jnp.sum(maskf, axis=1, keepdims=True)                       # (B, 1)

    # Constant time-encoding at t=0 plus positional-encoding row 0
    # (sin(0)=0 even lanes, cos(0)=1 odd lanes).
    pe0 = jnp.zeros((1, d), jnp.float32).at[:, 1::2].set(1.0)
    h_t = jnp.maximum(params['b_t1'], 0.0)               # relu(0 * W_t1 + b_t1)
    t_enc = h_t @ params['w_t2'] + params['b_t2']        # (1, d)
    tp = (t_enc + pe0).astype(jnp.float32)               # (1, d)

    # ---- batch tiling ----
    TB = B if B <= batch_tile else batch_tile
    n_b = pl.cdiv(B, TB)
    B_pad = n_b * TB
    if B_pad != B:
        pad = B_pad - B
        feat_masked = jnp.pad(feat_masked, ((0, pad), (0, 0), (0, 0)))
        sm = jnp.pad(sm, ((0, pad), (0, 0)))

    def tileB(shape):
        nd = len(shape)
        return pl.BlockSpec((TB,) + tuple(shape[1:]),
                            lambda i, _nd=nd: (i,) + (0,) * (_nd - 1))

    def resident(shape):
        nd = len(shape)
        return pl.BlockSpec(tuple(shape), lambda i, _nd=nd: (0,) * _nd)

    weight_args = (tp,
                   params['w_emb'], params['b_emb'],
                   params['wvo'], params['bvo'],
                   params['g1'], params['be1'],
                   params['w1'], params['b1'], params['w2'], params['b2'],
                   params['g2'], params['be2'],
                   params['w_h1'], params['b_h1'], params['w_h2'], params['b_h2'])
    args = (feat_masked, sm) + weight_args

    in_specs = [tileB(feat_masked.shape), tileB(sm.shape)] + \
               [resident(a.shape) for a in weight_args]

    # VMEM budget: resident weights + double-buffered batch tiles + activation
    # headroom; capped well below v7x's 64 MiB physical VMEM per TensorCore.
    def nbytes(a):
        return int(np.prod(a.shape)) * a.dtype.itemsize
    tile_bytes = 2 * (nbytes(feat_masked) // n_b + TB * 4
                      + TB * R * 4 + TB * d * 4)         # double-buffered I/O tiles
    act_bytes = 4 * TB * (ff + 4 * d + R * (d // 2))     # in-kernel intermediates
    est = sum(nbytes(a) for a in weight_args) + tile_bytes + act_bytes
    vmem_limit = int(min(max(2 * est, 16 << 20), 48 << 20))

    hazard2d, encoded2d = pl.pallas_call(
        _fused_forward_kernel,
        grid=(n_b,),
        in_specs=in_specs,
        out_specs=(tileB((B_pad, R)), tileB((B_pad, d))),
        out_shape=(jax.ShapeDtypeStruct((B_pad, R), jnp.float32),
                   jax.ShapeDtypeStruct((B_pad, d), jnp.float32)),
        compiler_params=pltpu.CompilerParams(
            dimension_semantics=("parallel",),
            vmem_limit_bytes=vmem_limit),
    )(*args)

    hazard_preds = hazard2d[:B, :, None]                 # (B, R, T=1)
    encoded = encoded2d[:B, None, :]                     # (B, T=1, d)
    return hazard_preds, encoded, eval_times


if __name__ == "__main__":
    key = jax.random.PRNGKey(0)
    B, S, input_dim = 2, 8, 16
    d_model, num_risks, num_layers, nhead, dropout = 32, 3, 2, 4, 0.1  # dropout: eval no-op
    kf, km, kp = jax.random.split(key, 3)
    features = jax.random.normal(kf, (B, S, input_dim), jnp.float32)
    mask = (jax.random.uniform(km, (B, S)) > 0.3).astype(jnp.float32)

    params = init_params(kp, input_dim, d_model, num_risks, num_layers)

    hazard_preds, encoded, eval_times = hazard_transformer_forward(features, mask, params)
    jax.block_until_ready((hazard_preds, encoded, eval_times))

    assert hazard_preds.shape == (B, num_risks, 1)
    assert encoded.shape == (B, 1, d_model)
    assert eval_times.shape == (B, 1)
    assert bool(jnp.all(jnp.isfinite(hazard_preds)))
    assert bool(jnp.all((hazard_preds >= 0.0) & (hazard_preds <= 1.0)))
    print("KERNEL_OK")
</pallas_src>

<mosaic_0001>
module attributes {stable_mosaic.version = 11 : i64} {
  func.func @_fused_forward_kernel(%arg0: i32, %arg1: memref<2x8x16xf32, #tpu.memory_space<vmem>>, %arg2: memref<2x1xf32, #tpu.memory_space<vmem>>, %arg3: memref<1x32xf32, #tpu.memory_space<vmem>>, %arg4: memref<16x32xbf16, #tpu.memory_space<vmem>>, %arg5: memref<1x32xf32, #tpu.memory_space<vmem>>, %arg6: memref<2x32x32xbf16, #tpu.memory_space<vmem>>, %arg7: memref<2x1x32xf32, #tpu.memory_space<vmem>>, %arg8: memref<2x1x32xf32, #tpu.memory_space<vmem>>, %arg9: memref<2x1x32xf32, #tpu.memory_space<vmem>>, %arg10: memref<2x32x2048xbf16, #tpu.memory_space<vmem>>, %arg11: memref<2x1x2048xf32, #tpu.memory_space<vmem>>, %arg12: memref<2x2048x32xbf16, #tpu.memory_space<vmem>>, %arg13: memref<2x1x32xf32, #tpu.memory_space<vmem>>, %arg14: memref<2x1x32xf32, #tpu.memory_space<vmem>>, %arg15: memref<2x1x32xf32, #tpu.memory_space<vmem>>, %arg16: memref<32x48xbf16, #tpu.memory_space<vmem>>, %arg17: memref<1x48xf32, #tpu.memory_space<vmem>>, %arg18: memref<48x3xf32, #tpu.memory_space<vmem>>, %arg19: memref<1x3xf32, #tpu.memory_space<vmem>>, %arg20: memref<2x3xf32, #tpu.memory_space<vmem>>, %arg21: memref<2x32xf32, #tpu.memory_space<vmem>>) attributes {dimension_semantics = [#tpu.dimension_semantics<parallel>], iteration_bounds = array<i64: 1>, scalar_prefetch = 0 : i64, scratch_operands = 0 : i64, tpu.core_type = #tpu.core_type<tc>, window_params = [{transform_indices = @transform_0, window_bounds = array<i64: 2, 8, 16>}, {transform_indices = @transform_1, window_bounds = array<i64: 2, 1>}, {pipeline_mode = #tpu.pipeline_mode<synchronous>, transform_indices = @transform_2, window_bounds = array<i64: 1, 32>}, {pipeline_mode = #tpu.pipeline_mode<synchronous>, transform_indices = @transform_3, window_bounds = array<i64: 16, 32>}, {pipeline_mode = #tpu.pipeline_mode<synchronous>, transform_indices = @transform_4, window_bounds = array<i64: 1, 32>}, {pipeline_mode = #tpu.pipeline_mode<synchronous>, transform_indices = @transform_5, window_bounds = array<i64: 2, 32, 32>}, {pipeline_mode = #tpu.pipeline_mode<synchronous>, transform_indices = @transform_6, window_bounds = array<i64: 2, 1, 32>}, {pipeline_mode = #tpu.pipeline_mode<synchronous>, transform_indices = @transform_7, window_bounds = array<i64: 2, 1, 32>}, {pipeline_mode = #tpu.pipeline_mode<synchronous>, transform_indices = @transform_8, window_bounds = array<i64: 2, 1, 32>}, {pipeline_mode = #tpu.pipeline_mode<synchronous>, transform_indices = @transform_9, window_bounds = array<i64: 2, 32, 2048>}, {pipeline_mode = #tpu.pipeline_mode<synchronous>, transform_indices = @transform_10, window_bounds = array<i64: 2, 1, 2048>}, {pipeline_mode = #tpu.pipeline_mode<synchronous>, transform_indices = @transform_11, window_bounds = array<i64: 2, 2048, 32>}, {pipeline_mode = #tpu.pipeline_mode<synchronous>, transform_indices = @transform_12, window_bounds = array<i64: 2, 1, 32>}, {pipeline_mode = #tpu.pipeline_mode<synchronous>, transform_indices = @transform_13, window_bounds = array<i64: 2, 1, 32>}, {pipeline_mode = #tpu.pipeline_mode<synchronous>, transform_indices = @transform_14, window_bounds = array<i64: 2, 1, 32>}, {pipeline_mode = #tpu.pipeline_mode<synchronous>, transform_indices = @transform_15, window_bounds = array<i64: 32, 48>}, {pipeline_mode = #tpu.pipeline_mode<synchronous>, transform_indices = @transform_16, window_bounds = array<i64: 1, 48>}, {pipeline_mode = #tpu.pipeline_mode<synchronous>, transform_indices = @transform_17, window_bounds = array<i64: 48, 3>}, {pipeline_mode = #tpu.pipeline_mode<synchronous>, transform_indices = @transform_18, window_bounds = array<i64: 1, 3>}, {transform_indices = @transform_19, window_bounds = array<i64: 2, 3>}, {transform_indices = @transform_20, window_bounds = array<i64: 2, 32>}]} {
    %c0 = arith.constant 0 : index
    %c0_0 = arith.constant 0 : index
    %c0_1 = arith.constant 0 : index
    %0 = vector.load %arg1[%c0, %c0_0, %c0_1] : memref<2x8x16xf32, #tpu.memory_space<vmem>>, vector<2x8x16xf32>
    %cst = arith.constant dense<0.000000e+00> : vector<2x16xf32>
    %1 = vector.multi_reduction <add>, %0, %cst [1] : vector<2x8x16xf32> to vector<2x16xf32>
    %c0_2 = arith.constant 0 : index
    %c0_3 = arith.constant 0 : index
    %2 = vector.load %arg2[%c0_2, %c0_3] : memref<2x1xf32, #tpu.memory_space<vmem>>, vector<2x1xf32>
    %3 = arith.truncf %1 : vector<2x16xf32> to vector<2x16xbf16>
    %c0_4 = arith.constant 0 : index
    %c0_5 = arith.constant 0 : index
    %4 = vector.load %arg4[%c0_4, %c0_5] : memref<16x32xbf16, #tpu.memory_space<vmem>>, vector<16x32xbf16>
    %cst_6 = arith.constant dense<0.000000e+00> : vector<2x32xf32>
    %5 = tpu.matmul %3, %4, %cst_6 {dimension_numbers = #tpu.dot_dimension_numbers<[1], [0], [0], [1], [0, 0, 1, 1], [], []>} : vector<2x16xbf16>, vector<16x32xbf16>, vector<2x32xf32> -> vector<2x32xf32>
    %c0_7 = arith.constant 0 : index
    %c0_8 = arith.constant 0 : index
    %6 = vector.load %arg5[%c0_7, %c0_8] : memref<1x32xf32, #tpu.memory_space<vmem>>, vector<1x32xf32>
    %7 = vector.broadcast %6 : vector<1x32xf32> to vector<2x32xf32>
    %8 = vector.broadcast %2 : vector<2x1xf32> to vector<2x32xf32>
    %9 = arith.mulf %7, %8 : vector<2x32xf32>
    %10 = arith.addf %5, %9 : vector<2x32xf32>
    %cst_9 = arith.constant 9.99999993E-9 : f32
    %11 = vector.broadcast %cst_9 : f32 to vector<2x1xf32>
    %12 = arith.addf %2, %11 : vector<2x1xf32>
    %13 = vector.broadcast %12 : vector<2x1xf32> to vector<2x32xf32>
    %14 = arith.divf %10, %13 : vector<2x32xf32>
    %c0_10 = arith.constant 0 : index
    %c0_11 = arith.constant 0 : index
    %15 = vector.load %arg3[%c0_10, %c0_11] : memref<1x32xf32, #tpu.memory_space<vmem>>, vector<1x32xf32>
    %16 = vector.broadcast %15 : vector<1x32xf32> to vector<2x32xf32>
    %17 = arith.addf %14, %16 : vector<2x32xf32>
    %18 = arith.truncf %17 : vector<2x32xf32> to vector<2x32xbf16>
    %c0_12 = arith.constant 0 : index
    %c0_13 = arith.constant 0 : index
    %c0_14 = arith.constant 0 : index
    %19 = vector.load %arg6[%c0_12, %c0_13, %c0_14] : memref<2x32x32xbf16, #tpu.memory_space<vmem>>, vector<1x32x32xbf16>
    %20 = vector.shape_cast %19 : vector<1x32x32xbf16> to vector<32x32xbf16>
    %cst_15 = arith.constant dense<0.000000e+00> : vector<2x32xf32>
    %21 = tpu.matmul %18, %20, %cst_15 {dimension_numbers = #tpu.dot_dimension_numbers<[1], [0], [0], [1], [0, 0, 1, 1], [], []>} : vector<2x32xbf16>, vector<32x32xbf16>, vector<2x32xf32> -> vector<2x32xf32>
    %c0_16 = arith.constant 0 : index
    %c0_17 = arith.constant 0 : index
    %c0_18 = arith.constant 0 : index
    %22 = vector.load %arg7[%c0_16, %c0_17, %c0_18] : memref<2x1x32xf32, #tpu.memory_space<vmem>>, vector<1x1x32xf32>
    %23 = vector.shape_cast %22 : vector<1x1x32xf32> to vector<1x32xf32>
    %24 = vector.broadcast %23 : vector<1x32xf32> to vector<2x32xf32>
    %25 = arith.addf %21, %24 : vector<2x32xf32>
    %26 = arith.addf %17, %25 : vector<2x32xf32>
    %c0_19 = arith.constant 0 : index
    %c0_20 = arith.constant 0 : index
    %c0_21 = arith.constant 0 : index
    %27 = vector.load %arg8[%c0_19, %c0_20, %c0_21] : memref<2x1x32xf32, #tpu.memory_space<vmem>>, vector<1x1x32xf32>
    %28 = vector.shape_cast %27 : vector<1x1x32xf32> to vector<1x32xf32>
    %c0_22 = arith.constant 0 : index
    %c0_23 = arith.constant 0 : index
    %c0_24 = arith.constant 0 : index
    %29 = vector.load %arg9[%c0_22, %c0_23, %c0_24] : memref<2x1x32xf32, #tpu.memory_space<vmem>>, vector<1x1x32xf32>
    %30 = vector.shape_cast %29 : vector<1x1x32xf32> to vector<1x32xf32>
    %cst_25 = arith.constant dense<0.000000e+00> : vector<2xf32>
    %31 = vector.multi_reduction <add>, %26, %cst_25 [1] : vector<2x32xf32> to vector<2xf32>
    %32 = vector.shape_cast %31 : vector<2xf32> to vector<2x1xf32>
    %cst_26 = arith.constant 3.200000e+01 : f32
    %33 = vector.broadcast %cst_26 : f32 to vector<2x1xf32>
    %34 = arith.divf %32, %33 : vector<2x1xf32>
    %35 = vector.broadcast %34 : vector<2x1xf32> to vector<2x32xf32>
    %36 = arith.subf %26, %35 : vector<2x32xf32>
    %37 = arith.mulf %36, %36 : vector<2x32xf32>
    %cst_27 = arith.constant dense<0.000000e+00> : vector<2xf32>
    %38 = vector.multi_reduction <add>, %37, %cst_27 [1] : vector<2x32xf32> to vector<2xf32>
    %39 = vector.shape_cast %38 : vector<2xf32> to vector<2x1xf32>
    %cst_28 = arith.constant 3.200000e+01 : f32
    %40 = vector.broadcast %cst_28 : f32 to vector<2x1xf32>
    %41 = arith.divf %39, %40 : vector<2x1xf32>
    %42 = vector.broadcast %34 : vector<2x1xf32> to vector<2x32xf32>
    %43 = arith.subf %26, %42 : vector<2x32xf32>
    %cst_29 = arith.constant 9.99999974E-6 : f32
    %44 = vector.broadcast %cst_29 : f32 to vector<2x1xf32>
    %45 = arith.addf %41, %44 : vector<2x1xf32>
    %46 = math.rsqrt %45 : vector<2x1xf32>
    %47 = vector.broadcast %46 : vector<2x1xf32> to vector<2x32xf32>
    %48 = arith.mulf %43, %47 : vector<2x32xf32>
    %49 = vector.broadcast %28 : vector<1x32xf32> to vector<2x32xf32>
    %50 = arith.mulf %48, %49 : vector<2x32xf32>
    %51 = vector.broadcast %30 : vector<1x32xf32> to vector<2x32xf32>
    %52 = arith.addf %50, %51 : vector<2x32xf32>
    %53 = arith.truncf %52 : vector<2x32xf32> to vector<2x32xbf16>
    %c0_30 = arith.constant 0 : index
    %c0_31 = arith.constant 0 : index
    %c0_32 = arith.constant 0 : index
    %54 = vector.load %arg10[%c0_30, %c0_31, %c0_32] : memref<2x32x2048xbf16, #tpu.memory_space<vmem>>, vector<1x32x2048xbf16>
    %55 = vector.shape_cast %54 : vector<1x32x2048xbf16> to vector<32x2048xbf16>
    %cst_33 = arith.constant dense<0.000000e+00> : vector<2x2048xf32>
    %56 = tpu.matmul %53, %55, %cst_33 {dimension_numbers = #tpu.dot_dimension_numbers<[1], [0], [0], [1], [0, 0, 1, 1], [], []>} : vector<2x32xbf16>, vector<32x2048xbf16>, vector<2x2048xf32> -> vector<2x2048xf32>
    %c0_34 = arith.constant 0 : index
    %c0_35 = arith.constant 0 : index
    %c0_36 = arith.constant 0 : index
    %57 = vector.load %arg11[%c0_34, %c0_35, %c0_36] : memref<2x1x2048xf32, #tpu.memory_space<vmem>>, vector<1x1x2048xf32>
    %58 = vector.shape_cast %57 : vector<1x1x2048xf32> to vector<1x2048xf32>
    %59 = vector.broadcast %58 : vector<1x2048xf32> to vector<2x2048xf32>
    %60 = arith.addf %56, %59 : vector<2x2048xf32>
    %cst_37 = arith.constant 0.000000e+00 : f32
    %61 = vector.broadcast %cst_37 : f32 to vector<2x2048xf32>
    %62 = arith.maximumf %60, %61 : vector<2x2048xf32>
    %63 = arith.truncf %62 : vector<2x2048xf32> to vector<2x2048xbf16>
    %c0_38 = arith.constant 0 : index
    %c0_39 = arith.constant 0 : index
    %c0_40 = arith.constant 0 : index
    %64 = vector.load %arg12[%c0_38, %c0_39, %c0_40] : memref<2x2048x32xbf16, #tpu.memory_space<vmem>>, vector<1x2048x32xbf16>
    %65 = vector.shape_cast %64 : vector<1x2048x32xbf16> to vector<2048x32xbf16>
    %cst_41 = arith.constant dense<0.000000e+00> : vector<2x32xf32>
    %66 = tpu.matmul %63, %65, %cst_41 {dimension_numbers = #tpu.dot_dimension_numbers<[1], [0], [0], [1], [0, 0, 1, 1], [], []>} : vector<2x2048xbf16>, vector<2048x32xbf16>, vector<2x32xf32> -> vector<2x32xf32>
    %c0_42 = arith.constant 0 : index
    %c0_43 = arith.constant 0 : index
    %c0_44 = arith.constant 0 : index
    %67 = vector.load %arg13[%c0_42, %c0_43, %c0_44] : memref<2x1x32xf32, #tpu.memory_space<vmem>>, vector<1x1x32xf32>
    %68 = vector.shape_cast %67 : vector<1x1x32xf32> to vector<1x32xf32>
    %69 = vector.broadcast %68 : vector<1x32xf32> to vector<2x32xf32>
    %70 = arith.addf %66, %69 : vector<2x32xf32>
    %71 = arith.addf %52, %70 : vector<2x32xf32>
    %c0_45 = arith.constant 0 : index
    %c0_46 = arith.constant 0 : index
    %c0_47 = arith.constant 0 : index
    %72 = vector.load %arg14[%c0_45, %c0_46, %c0_47] : memref<2x1x32xf32, #tpu.memory_space<vmem>>, vector<1x1x32xf32>
    %73 = vector.shape_cast %72 : vector<1x1x32xf32> to vector<1x32xf32>
    %c0_48 = arith.constant 0 : index
    %c0_49 = arith.constant 0 : index
    %c0_50 = arith.constant 0 : index
    %74 = vector.load %arg15[%c0_48, %c0_49, %c0_50] : memref<2x1x32xf32, #tpu.memory_space<vmem>>, vector<1x1x32xf32>
    %75 = vector.shape_cast %74 : vector<1x1x32xf32> to vector<1x32xf32>
    %cst_51 = arith.constant dense<0.000000e+00> : vector<2xf32>
    %76 = vector.multi_reduction <add>, %71, %cst_51 [1] : vector<2x32xf32> to vector<2xf32>
    %77 = vector.shape_cast %76 : vector<2xf32> to vector<2x1xf32>
    %cst_52 = arith.constant 3.200000e+01 : f32
    %78 = vector.broadcast %cst_52 : f32 to vector<2x1xf32>
    %79 = arith.divf %77, %78 : vector<2x1xf32>
    %80 = vector.broadcast %79 : vector<2x1xf32> to vector<2x32xf32>
    %81 = arith.subf %71, %80 : vector<2x32xf32>
    %82 = arith.mulf %81, %81 : vector<2x32xf32>
    %cst_53 = arith.constant dense<0.000000e+00> : vector<2xf32>
    %83 = vector.multi_reduction <add>, %82, %cst_53 [1] : vector<2x32xf32> to vector<2xf32>
    %84 = vector.shape_cast %83 : vector<2xf32> to vector<2x1xf32>
    %cst_54 = arith.constant 3.200000e+01 : f32
    %85 = vector.broadcast %cst_54 : f32 to vector<2x1xf32>
    %86 = arith.divf %84, %85 : vector<2x1xf32>
    %87 = vector.broadcast %79 : vector<2x1xf32> to vector<2x32xf32>
    %88 = arith.subf %71, %87 : vector<2x32xf32>
    %cst_55 = arith.constant 9.99999974E-6 : f32
    %89 = vector.broadcast %cst_55 : f32 to vector<2x1xf32>
    %90 = arith.addf %86, %89 : vector<2x1xf32>
    %91 = math.rsqrt %90 : vector<2x1xf32>
    %92 = vector.broadcast %91 : vector<2x1xf32> to vector<2x32xf32>
    %93 = arith.mulf %88, %92 : vector<2x32xf32>
    %94 = vector.broadcast %73 : vector<1x32xf32> to vector<2x32xf32>
    %95 = arith.mulf %93, %94 : vector<2x32xf32>
    %96 = vector.broadcast %75 : vector<1x32xf32> to vector<2x32xf32>
    %97 = arith.addf %95, %96 : vector<2x32xf32>
    %98 = arith.truncf %97 : vector<2x32xf32> to vector<2x32xbf16>
    %c1 = arith.constant 1 : index
    %c0_56 = arith.constant 0 : index
    %c0_57 = arith.constant 0 : index
    %99 = vector.load %arg6[%c1, %c0_56, %c0_57] : memref<2x32x32xbf16, #tpu.memory_space<vmem>>, vector<1x32x32xbf16>
    %100 = vector.shape_cast %99 : vector<1x32x32xbf16> to vector<32x32xbf16>
    %cst_58 = arith.constant dense<0.000000e+00> : vector<2x32xf32>
    %101 = tpu.matmul %98, %100, %cst_58 {dimension_numbers = #tpu.dot_dimension_numbers<[1], [0], [0], [1], [0, 0, 1, 1], [], []>} : vector<2x32xbf16>, vector<32x32xbf16>, vector<2x32xf32> -> vector<2x32xf32>
    %c1_59 = arith.constant 1 : index
    %c0_60 = arith.constant 0 : index
    %c0_61 = arith.constant 0 : index
    %102 = vector.load %arg7[%c1_59, %c0_60, %c0_61] : memref<2x1x32xf32, #tpu.memory_space<vmem>>, vector<1x1x32xf32>
    %103 = vector.shape_cast %102 : vector<1x1x32xf32> to vector<1x32xf32>
    %104 = vector.broadcast %103 : vector<1x32xf32> to vector<2x32xf32>
    %105 = arith.addf %101, %104 : vector<2x32xf32>
    %106 = arith.addf %97, %105 : vector<2x32xf32>
    %c1_62 = arith.constant 1 : index
    %c0_63 = arith.constant 0 : index
    %c0_64 = arith.constant 0 : index
    %107 = vector.load %arg8[%c1_62, %c0_63, %c0_64] : memref<2x1x32xf32, #tpu.memory_space<vmem>>, vector<1x1x32xf32>
    %108 = vector.shape_cast %107 : vector<1x1x32xf32> to vector<1x32xf32>
    %c1_65 = arith.constant 1 : index
    %c0_66 = arith.constant 0 : index
    %c0_67 = arith.constant 0 : index
    %109 = vector.load %arg9[%c1_65, %c0_66, %c0_67] : memref<2x1x32xf32, #tpu.memory_space<vmem>>, vector<1x1x32xf32>
    %110 = vector.shape_cast %109 : vector<1x1x32xf32> to vector<1x32xf32>
    %cst_68 = arith.constant dense<0.000000e+00> : vector<2xf32>
    %111 = vector.multi_reduction <add>, %106, %cst_68 [1] : vector<2x32xf32> to vector<2xf32>
    %112 = vector.shape_cast %111 : vector<2xf32> to vector<2x1xf32>
    %cst_69 = arith.constant 3.200000e+01 : f32
    %113 = vector.broadcast %cst_69 : f32 to vector<2x1xf32>
    %114 = arith.divf %112, %113 : vector<2x1xf32>
    %115 = vector.broadcast %114 : vector<2x1xf32> to vector<2x32xf32>
    %116 = arith.subf %106, %115 : vector<2x32xf32>
    %117 = arith.mulf %116, %116 : vector<2x32xf32>
    %cst_70 = arith.constant dense<0.000000e+00> : vector<2xf32>
    %118 = vector.multi_reduction <add>, %117, %cst_70 [1] : vector<2x32xf32> to vector<2xf32>
    %119 = vector.shape_cast %118 : vector<2xf32> to vector<2x1xf32>
    %cst_71 = arith.constant 3.200000e+01 : f32
    %120 = vector.broadcast %cst_71 : f32 to vector<2x1xf32>
    %121 = arith.divf %119, %120 : vector<2x1xf32>
    %122 = vector.broadcast %114 : vector<2x1xf32> to vector<2x32xf32>
    %123 = arith.subf %106, %122 : vector<2x32xf32>
    %cst_72 = arith.constant 9.99999974E-6 : f32
    %124 = vector.broadcast %cst_72 : f32 to vector<2x1xf32>
    %125 = arith.addf %121, %124 : vector<2x1xf32>
    %126 = math.rsqrt %125 : vector<2x1xf32>
    %127 = vector.broadcast %126 : vector<2x1xf32> to vector<2x32xf32>
    %128 = arith.mulf %123, %127 : vector<2x32xf32>
    %129 = vector.broadcast %108 : vector<1x32xf32> to vector<2x32xf32>
    %130 = arith.mulf %128, %129 : vector<2x32xf32>
    %131 = vector.broadcast %110 : vector<1x32xf32> to vector<2x32xf32>
    %132 = arith.addf %130, %131 : vector<2x32xf32>
    %133 = arith.truncf %132 : vector<2x32xf32> to vector<2x32xbf16>
    %c1_73 = arith.constant 1 : index
    %c0_74 = arith.constant 0 : index
    %c0_75 = arith.constant 0 : index
    %134 = vector.load %arg10[%c1_73, %c0_74, %c0_75] : memref<2x32x2048xbf16, #tpu.memory_space<vmem>>, vector<1x32x2048xbf16>
    %135 = vector.shape_cast %134 : vector<1x32x2048xbf16> to vector<32x2048xbf16>
    %cst_76 = arith.constant dense<0.000000e+00> : vector<2x2048xf32>
    %136 = tpu.matmul %133, %135, %cst_76 {dimension_numbers = #tpu.dot_dimension_numbers<[1], [0], [0], [1], [0, 0, 1, 1], [], []>} : vector<2x32xbf16>, vector<32x2048xbf16>, vector<2x2048xf32> -> vector<2x2048xf32>
    %c1_77 = arith.constant 1 : index
    %c0_78 = arith.constant 0 : index
    %c0_79 = arith.constant 0 : index
    %137 = vector.load %arg11[%c1_77, %c0_78, %c0_79] : memref<2x1x2048xf32, #tpu.memory_space<vmem>>, vector<1x1x2048xf32>
    %138 = vector.shape_cast %137 : vector<1x1x2048xf32> to vector<1x2048xf32>
    %139 = vector.broadcast %138 : vector<1x2048xf32> to vector<2x2048xf32>
    %140 = arith.addf %136, %139 : vector<2x2048xf32>
    %cst_80 = arith.constant 0.000000e+00 : f32
    %141 = vector.broadcast %cst_80 : f32 to vector<2x2048xf32>
    %142 = arith.maximumf %140, %141 : vector<2x2048xf32>
    %143 = arith.truncf %142 : vector<2x2048xf32> to vector<2x2048xbf16>
    %c1_81 = arith.constant 1 : index
    %c0_82 = arith.constant 0 : index
    %c0_83 = arith.constant 0 : index
    %144 = vector.load %arg12[%c1_81, %c0_82, %c0_83] : memref<2x2048x32xbf16, #tpu.memory_space<vmem>>, vector<1x2048x32xbf16>
    %145 = vector.shape_cast %144 : vector<1x2048x32xbf16> to vector<2048x32xbf16>
    %cst_84 = arith.constant dense<0.000000e+00> : vector<2x32xf32>
    %146 = tpu.matmul %143, %145, %cst_84 {dimension_numbers = #tpu.dot_dimension_numbers<[1], [0], [0], [1], [0, 0, 1, 1], [], []>} : vector<2x2048xbf16>, vector<2048x32xbf16>, vector<2x32xf32> -> vector<2x32xf32>
    %c1_85 = arith.constant 1 : index
    %c0_86 = arith.constant 0 : index
    %c0_87 = arith.constant 0 : index
    %147 = vector.load %arg13[%c1_85, %c0_86, %c0_87] : memref<2x1x32xf32, #tpu.memory_space<vmem>>, vector<1x1x32xf32>
    %148 = vector.shape_cast %147 : vector<1x1x32xf32> to vector<1x32xf32>
    %149 = vector.broadcast %148 : vector<1x32xf32> to vector<2x32xf32>
    %150 = arith.addf %146, %149 : vector<2x32xf32>
    %151 = arith.addf %132, %150 : vector<2x32xf32>
    %c1_88 = arith.constant 1 : index
    %c0_89 = arith.constant 0 : index
    %c0_90 = arith.constant 0 : index
    %152 = vector.load %arg14[%c1_88, %c0_89, %c0_90] : memref<2x1x32xf32, #tpu.memory_space<vmem>>, vector<1x1x32xf32>
    %153 = vector.shape_cast %152 : vector<1x1x32xf32> to vector<1x32xf32>
    %c1_91 = arith.constant 1 : index
    %c0_92 = arith.constant 0 : index
    %c0_93 = arith.constant 0 : index
    %154 = vector.load %arg15[%c1_91, %c0_92, %c0_93] : memref<2x1x32xf32, #tpu.memory_space<vmem>>, vector<1x1x32xf32>
    %155 = vector.shape_cast %154 : vector<1x1x32xf32> to vector<1x32xf32>
    %cst_94 = arith.constant dense<0.000000e+00> : vector<2xf32>
    %156 = vector.multi_reduction <add>, %151, %cst_94 [1] : vector<2x32xf32> to vector<2xf32>
    %157 = vector.shape_cast %156 : vector<2xf32> to vector<2x1xf32>
    %cst_95 = arith.constant 3.200000e+01 : f32
    %158 = vector.broadcast %cst_95 : f32 to vector<2x1xf32>
    %159 = arith.divf %157, %158 : vector<2x1xf32>
    %160 = vector.broadcast %159 : vector<2x1xf32> to vector<2x32xf32>
    %161 = arith.subf %151, %160 : vector<2x32xf32>
    %162 = arith.mulf %161, %161 : vector<2x32xf32>
    %cst_96 = arith.constant dense<0.000000e+00> : vector<2xf32>
    %163 = vector.multi_reduction <add>, %162, %cst_96 [1] : vector<2x32xf32> to vector<2xf32>
    %164 = vector.shape_cast %163 : vector<2xf32> to vector<2x1xf32>
    %cst_97 = arith.constant 3.200000e+01 : f32
    %165 = vector.broadcast %cst_97 : f32 to vector<2x1xf32>
    %166 = arith.divf %164, %165 : vector<2x1xf32>
    %167 = vector.broadcast %159 : vector<2x1xf32> to vector<2x32xf32>
    %168 = arith.subf %151, %167 : vector<2x32xf32>
    %cst_98 = arith.constant 9.99999974E-6 : f32
    %169 = vector.broadcast %cst_98 : f32 to vector<2x1xf32>
    %170 = arith.addf %166, %169 : vector<2x1xf32>
    %171 = math.rsqrt %170 : vector<2x1xf32>
    %172 = vector.broadcast %171 : vector<2x1xf32> to vector<2x32xf32>
    %173 = arith.mulf %168, %172 : vector<2x32xf32>
    %174 = vector.broadcast %153 : vector<1x32xf32> to vector<2x32xf32>
    %175 = arith.mulf %173, %174 : vector<2x32xf32>
    %176 = vector.broadcast %155 : vector<1x32xf32> to vector<2x32xf32>
    %177 = arith.addf %175, %176 : vector<2x32xf32>
    %c0_99 = arith.constant 0 : index
    %c0_100 = arith.constant 0 : index
    %178 = vector.load %arg21[%c0_99, %c0_100] : memref<2x32xf32, #tpu.memory_space<vmem>>, vector<2x32xf32>
    tpu.vector_store %arg21[%c0_99, %c0_100], %177 {strides = array<i32>} : memref<2x32xf32, #tpu.memory_space<vmem>>, vector<2x32xf32>,
    %179 = arith.truncf %177 : vector<2x32xf32> to vector<2x32xbf16>
    %c0_101 = arith.constant 0 : index
    %c0_102 = arith.constant 0 : index
    %180 = vector.load %arg16[%c0_101, %c0_102] : memref<32x48xbf16, #tpu.memory_space<vmem>>, vector<32x48xbf16>
    %cst_103 = arith.constant dense<0.000000e+00> : vector<2x48xf32>
    %181 = tpu.matmul %179, %180, %cst_103 {dimension_numbers = #tpu.dot_dimension_numbers<[1], [0], [0], [1], [0, 0, 1, 1], [], []>} : vector<2x32xbf16>, vector<32x48xbf16>, vector<2x48xf32> -> vector<2x48xf32>
    %c0_104 = arith.constant 0 : index
    %c0_105 = arith.constant 0 : index
    %182 = vector.load %arg17[%c0_104, %c0_105] : memref<1x48xf32, #tpu.memory_space<vmem>>, vector<1x48xf32>
    %183 = vector.broadcast %182 : vector<1x48xf32> to vector<2x48xf32>
    %184 = arith.addf %181, %183 : vector<2x48xf32>
    %cst_106 = arith.constant 0.000000e+00 : f32
    %185 = vector.broadcast %cst_106 : f32 to vector<2x48xf32>
    %186 = arith.maximumf %184, %185 : vector<2x48xf32>
    %c0_107 = arith.constant 0 : index
    %c0_108 = arith.constant 0 : index
    %187 = vector.load %arg18[%c0_107, %c0_108] : memref<48x3xf32, #tpu.memory_space<vmem>>, vector<48x3xf32>
    %cst_109 = arith.constant dense<0.000000e+00> : vector<2x3xf32>
    %188 = tpu.matmul %186, %187, %cst_109 {dimension_numbers = #tpu.dot_dimension_numbers<[1], [0], [0], [1], [0, 0, 1, 1], [], []>} : vector<2x48xf32>, vector<48x3xf32>, vector<2x3xf32> -> vector<2x3xf32>
    %c0_110 = arith.constant 0 : index
    %c0_111 = arith.constant 0 : index
    %189 = vector.load %arg19[%c0_110, %c0_111] : memref<1x3xf32, #tpu.memory_space<vmem>>, vector<1x3xf32>
    %190 = vector.broadcast %189 : vector<1x3xf32> to vector<2x3xf32>
    %191 = arith.addf %188, %190 : vector<2x3xf32>
    %192 = arith.negf %191 : vector<2x3xf32>
    %193 = math.exp %192 : vector<2x3xf32>
    %cst_112 = arith.constant 1.000000e+00 : f32
    %194 = vector.broadcast %cst_112 : f32 to vector<2x3xf32>
    %195 = arith.addf %194, %193 : vector<2x3xf32>
    %196 = arith.divf %194, %195 : vector<2x3xf32>
    %c0_113 = arith.constant 0 : index
    %c0_114 = arith.constant 0 : index
    %197 = vector.load %arg20[%c0_113, %c0_114] : memref<2x3xf32, #tpu.memory_space<vmem>>, vector<2x3xf32>
    tpu.vector_store %arg20[%c0_113, %c0_114], %196 {strides = array<i32>} : memref<2x3xf32, #tpu.memory_space<vmem>>, vector<2x3xf32>,
    return
  }
  func.func @transform_0(%arg0: i32) -> (i32, i32, i32) {
    %c0_i32 = arith.constant 0 : i32
    %c0_i32_0 = arith.constant 0 : i32
    %c0_i32_1 = arith.constant 0 : i32
    return %arg0, %c0_i32, %c0_i32_0 : i32, i32, i32
  }
  func.func @transform_1(%arg0: i32) -> (i32, i32) {
    %c0_i32 = arith.constant 0 : i32
    %c0_i32_0 = arith.constant 0 : i32
    return %arg0, %c0_i32 : i32, i32
  }
  func.func @transform_2(%arg0: i32) -> (i32, i32) {
    %c0_i32 = arith.constant 0 : i32
    %c0_i32_0 = arith.constant 0 : i32
    %c0_i32_1 = arith.constant 0 : i32
    return %c0_i32, %c0_i32_0 : i32, i32
  }
  func.func @transform_3(%arg0: i32) -> (i32, i32) {
    %c0_i32 = arith.constant 0 : i32
    %c0_i32_0 = arith.constant 0 : i32
    %c0_i32_1 = arith.constant 0 : i32
    return %c0_i32, %c0_i32_0 : i32, i32
  }
  func.func @transform_4(%arg0: i32) -> (i32, i32) {
    %c0_i32 = arith.constant 0 : i32
    %c0_i32_0 = arith.constant 0 : i32
    %c0_i32_1 = arith.constant 0 : i32
    return %c0_i32, %c0_i32_0 : i32, i32
  }
  func.func @transform_5(%arg0: i32) -> (i32, i32, i32) {
    %c0_i32 = arith.constant 0 : i32
    %c0_i32_0 = arith.constant 0 : i32
    %c0_i32_1 = arith.constant 0 : i32
    %c0_i32_2 = arith.constant 0 : i32
    return %c0_i32, %c0_i32_0, %c0_i32_1 : i32, i32, i32
  }
  func.func @transform_6(%arg0: i32) -> (i32, i32, i32) {
    %c0_i32 = arith.constant 0 : i32
    %c0_i32_0 = arith.constant 0 : i32
    %c0_i32_1 = arith.constant 0 : i32
    %c0_i32_2 = arith.constant 0 : i32
    return %c0_i32, %c0_i32_0, %c0_i32_1 : i32, i32, i32
  }
  func.func @transform_7(%arg0: i32) -> (i32, i32, i32) {
    %c0_i32 = arith.constant 0 : i32
    %c0_i32_0 = arith.constant 0 : i32
    %c0_i32_1 = arith.constant 0 : i32
    %c0_i32_2 = arith.constant 0 : i32
    return %c0_i32, %c0_i32_0, %c0_i32_1 : i32, i32, i32
  }
  func.func @transform_8(%arg0: i32) -> (i32, i32, i32) {
    %c0_i32 = arith.constant 0 : i32
    %c0_i32_0 = arith.constant 0 : i32
    %c0_i32_1 = arith.constant 0 : i32
    %c0_i32_2 = arith.constant 0 : i32
    return %c0_i32, %c0_i32_0, %c0_i32_1 : i32, i32, i32
  }
  func.func @transform_9(%arg0: i32) -> (i32, i32, i32) {
    %c0_i32 = arith.constant 0 : i32
    %c0_i32_0 = arith.constant 0 : i32
    %c0_i32_1 = arith.constant 0 : i32
    %c0_i32_2 = arith.constant 0 : i32
    return %c0_i32, %c0_i32_0, %c0_i32_1 : i32, i32, i32
  }
  func.func @transform_10(%arg0: i32) -> (i32, i32, i32) {
    %c0_i32 = arith.constant 0 : i32
    %c0_i32_0 = arith.constant 0 : i32
    %c0_i32_1 = arith.constant 0 : i32
    %c0_i32_2 = arith.constant 0 : i32
    return %c0_i32, %c0_i32_0, %c0_i32_1 : i32, i32, i32
  }
  func.func @transform_11(%arg0: i32) -> (i32, i32, i32) {
    %c0_i32 = arith.constant 0 : i32
    %c0_i32_0 = arith.constant 0 : i32
    %c0_i32_1 = arith.constant 0 : i32
    %c0_i32_2 = arith.constant 0 : i32
    return %c0_i32, %c0_i32_0, %c0_i32_1 : i32, i32, i32
  }
  func.func @transform_12(%arg0: i32) -> (i32, i32, i32) {
    %c0_i32 = arith.constant 0 : i32
    %c0_i32_0 = arith.constant 0 : i32
    %c0_i32_1 = arith.constant 0 : i32
    %c0_i32_2 = arith.constant 0 : i32
    return %c0_i32, %c0_i32_0, %c0_i32_1 : i32, i32, i32
  }
  func.func @transform_13(%arg0: i32) -> (i32, i32, i32) {
    %c0_i32 = arith.constant 0 : i32
    %c0_i32_0 = arith.constant 0 : i32
    %c0_i32_1 = arith.constant 0 : i32
    %c0_i32_2 = arith.constant 0 : i32
    return %c0_i32, %c0_i32_0, %c0_i32_1 : i32, i32, i32
  }
  func.func @transform_14(%arg0: i32) -> (i32, i32, i32) {
    %c0_i32 = arith.constant 0 : i32
    %c0_i32_0 = arith.constant 0 : i32
    %c0_i32_1 = arith.constant 0 : i32
    %c0_i32_2 = arith.constant 0 : i32
    return %c0_i32, %c0_i32_0, %c0_i32_1 : i32, i32, i32
  }
  func.func @transform_15(%arg0: i32) -> (i32, i32) {
    %c0_i32 = arith.constant 0 : i32
    %c0_i32_0 = arith.constant 0 : i32
    %c0_i32_1 = arith.constant 0 : i32
    return %c0_i32, %c0_i32_0 : i32, i32
  }
  func.func @transform_16(%arg0: i32) -> (i32, i32) {
    %c0_i32 = arith.constant 0 : i32
    %c0_i32_0 = arith.constant 0 : i32
    %c0_i32_1 = arith.constant 0 : i32
    return %c0_i32, %c0_i32_0 : i32, i32
  }
  func.func @transform_17(%arg0: i32) -> (i32, i32) {
    %c0_i32 = arith.constant 0 : i32
    %c0_i32_0 = arith.constant 0 : i32
    %c0_i32_1 = arith.constant 0 : i32
    return %c0_i32, %c0_i32_0 : i32, i32
  }
  func.func @transform_18(%arg0: i32) -> (i32, i32) {
    %c0_i32 = arith.constant 0 : i32
    %c0_i32_0 = arith.constant 0 : i32
    %c0_i32_1 = arith.constant 0 : i32
    return %c0_i32, %c0_i32_0 : i32, i32
  }
  func.func @transform_19(%arg0: i32) -> (i32, i32) {
    %c0_i32 = arith.constant 0 : i32
    %c0_i32_0 = arith.constant 0 : i32
    return %arg0, %c0_i32 : i32, i32
  }
  func.func @transform_20(%arg0: i32) -> (i32, i32) {
    %c0_i32 = arith.constant 0 : i32
    %c0_i32_0 = arith.constant 0 : i32
    return %arg0, %c0_i32 : i32, i32
  }
}

</mosaic_0001>

<llo_original>
// kernel: hazard_transformer_forward.1
$region0: #{hazard_transformer_forward.1}
  #allocation0 [shape = 'u32[]', space=smem, size = 0x4, offset = 0x4, fixed_abs, tag = 'smem constant byte address 0x4 - core index']
  #allocation1 [shape = 'u32[144,128]{1,0:T(1,128)}', space=vmem, size = 0x12000, scoped, tag = 'internal scratch']
  %s0 = inlined_call_operand.vmem [shape: f32[2,8,16], index: 0, kind: input, shape index: {}]
  %s1 = inlined_call_operand.vmem [shape: f32[2,1], index: 1, kind: input, shape index: {}]
  %s2 = inlined_call_operand.vmem [shape: f32[1,32], index: 2, kind: input, shape index: {}]
  %s3 = inlined_call_operand.vmem [shape: bf16[16,32], index: 3, kind: input, shape index: {}]
  %s4 = inlined_call_operand.vmem [shape: f32[1,32], index: 4, kind: input, shape index: {}]
  %s5 = inlined_call_operand.vmem [shape: bf16[2,32,32], index: 5, kind: input, shape index: {}]
  %s6 = inlined_call_operand.vmem [shape: f32[2,1,32], index: 6, kind: input, shape index: {}]
  %s7 = inlined_call_operand.vmem [shape: f32[2,1,32], index: 7, kind: input, shape index: {}]
  %s8 = inlined_call_operand.vmem [shape: f32[2,1,32], index: 8, kind: input, shape index: {}]
  %s9 = inlined_call_operand.vmem [shape: bf16[2,32,2048], index: 9, kind: input, shape index: {}]
  %s10 = inlined_call_operand.vmem [shape: f32[2,1,2048], index: 10, kind: input, shape index: {}]
  %s11 = inlined_call_operand.vmem [shape: bf16[2,2048,32], index: 11, kind: input, shape index: {}]
  %s12 = inlined_call_operand.vmem [shape: f32[2,1,32], index: 12, kind: input, shape index: {}]
  %s13 = inlined_call_operand.vmem [shape: f32[2,1,32], index: 13, kind: input, shape index: {}]
  %s14 = inlined_call_operand.vmem [shape: f32[2,1,32], index: 14, kind: input, shape index: {}]
  %s15 = inlined_call_operand.vmem [shape: bf16[32,48], index: 15, kind: input, shape index: {}]
  %s16 = inlined_call_operand.vmem [shape: f32[1,48], index: 16, kind: input, shape index: {}]
  %s17 = inlined_call_operand.vmem [shape: f32[48,3], index: 17, kind: input, shape index: {}]
  %s18 = inlined_call_operand.vmem [shape: f32[1,3], index: 18, kind: input, shape index: {}]
  %s19 = inlined_call_operand.hbm [shape: f32[2,3], index: 19, kind: output, shape index: {0}]
  %s20 = inlined_call_operand.hbm [shape: f32[2,32], index: 20, kind: output, shape index: {1}]
  %21 = xla_tuple %s19, %s20
  %s22 = sld [smem:[#allocation0]]
  $region94: #{hazard_transformer_forward.1} parent=0
    _
  %s24 = ssub.s32 1, %s22
  %s25 = scalar_select 0, %s24, %s22
  $region1: #{hazard_transformer_forward.1} parent=0
    #allocation2 [shape = 'u8[1024]{0}', space=vmem, size = 0x400, scoped, tag = 'output window, operand 0, single buffered']
    #allocation3 [shape = 's32[1]{0}', space=sflag, size = 0x4, scoped, tag = 'scoped memory for hazard_transformer_forward.1']
    #allocation4 [shape = 'u8[1024]{0}', space=vmem, size = 0x400, scoped, tag = 'output window, operand 1, single buffered']
    #allocation5 [shape = 's32[1]{0}', space=sflag, size = 0x4, scoped, tag = 'scoped memory for hazard_transformer_forward.1']
    %26 = vsyncpa [#allocation3], 0
    %27 = vsyncpa [#allocation5], 0
    // Predicated region
    $region2: #{hazard_transformer_forward.1} parent=1 // pred_check
      _
    $region3: #{hazard_transformer_forward.1} parent=1 // pred_check_branch
      %29 = sbr.rel (0) target = $region5
    $region4: #{hazard_transformer_forward.1} parent=1 // pred_region
      _
    $region5: #{hazard_transformer_forward.1} parent=1 // pred_fallthru
      _
    // Predicated region
    $region6: #{hazard_transformer_forward.1} parent=1 // pred_check
      _
    $region7: #{hazard_transformer_forward.1} parent=1 // pred_check_branch
      %31 = sbr.rel (0) target = $region9
    $region8: #{hazard_transformer_forward.1} parent=1 // pred_region
      _
    $region9: #{hazard_transformer_forward.1} parent=1 // pred_fallthru
      _
    // Predicated region
    $region10: #{hazard_transformer_forward.1} parent=1 // pred_check
      _
    $region11: #{hazard_transformer_forward.1} parent=1 // pred_check_branch
      %33 = sbr.rel (0) target = $region13
    $region12: #{hazard_transformer_forward.1} parent=1 // pred_region
      _
    $region13: #{hazard_transformer_forward.1} parent=1 // pred_fallthru
      _
    // Predicated region
    $region14: #{hazard_transformer_forward.1} parent=1 // pred_check
      _
    $region15: #{hazard_transformer_forward.1} parent=1 // pred_check_branch
      %35 = sbr.rel (0) target = $region17
    $region16: #{hazard_transformer_forward.1} parent=1 // pred_region
      _
    $region17: #{hazard_transformer_forward.1} parent=1 // pred_fallthru
      _
    // Predicated region
    $region18: #{hazard_transformer_forward.1} parent=1 // pred_check
      _
    $region19: #{hazard_transformer_forward.1} parent=1 // pred_check_branch
      %37 = sbr.rel (0) target = $region21
    $region20: #{hazard_transformer_forward.1} parent=1 // pred_region
      _
    $region21: #{hazard_transformer_forward.1} parent=1 // pred_fallthru
      _
    // Predicated region
    $region22: #{hazard_transformer_forward.1} parent=1 // pred_check
      _
    $region23: #{hazard_transformer_forward.1} parent=1 // pred_check_branch
      %39 = sbr.rel (0) target = $region25
    $region24: #{hazard_transformer_forward.1} parent=1 // pred_region
      _
    $region25: #{hazard_transformer_forward.1} parent=1 // pred_fallthru
      _
    // Predicated region
    $region26: #{hazard_transformer_forward.1} parent=1 // pred_check
      _
    $region27: #{hazard_transformer_forward.1} parent=1 // pred_check_branch
      %41 = sbr.rel (0) target = $region29
    $region28: #{hazard_transformer_forward.1} parent=1 // pred_region
      _
    $region29: #{hazard_transformer_forward.1} parent=1 // pred_fallthru
      _
    // Predicated region
    $region30: #{hazard_transformer_forward.1} parent=1 // pred_check
      _
    $region31: #{hazard_transformer_forward.1} parent=1 // pred_check_branch
      %43 = sbr.rel (0) target = $region33
    $region32: #{hazard_transformer_forward.1} parent=1 // pred_region
      _
    $region33: #{hazard_transformer_forward.1} parent=1 // pred_fallthru
      _
    // Predicated region
    $region34: #{hazard_transformer_forward.1} parent=1 // pred_check
      _
    $region35: #{hazard_transformer_forward.1} parent=1 // pred_check_branch
      %45 = sbr.rel (0) target = $region37
    $region36: #{hazard_transformer_forward.1} parent=1 // pred_region
      _
    $region37: #{hazard_transformer_forward.1} parent=1 // pred_fallthru
      _
    // Predicated region
    $region38: #{hazard_transformer_forward.1} parent=1 // pred_check
      _
    $region39: #{hazard_transformer_forward.1} parent=1 // pred_check_branch
      %47 = sbr.rel (0) target = $region41
    $region40: #{hazard_transformer_forward.1} parent=1 // pred_region
      _
    $region41: #{hazard_transformer_forward.1} parent=1 // pred_fallthru
      _
    // Predicated region
    $region42: #{hazard_transformer_forward.1} parent=1 // pred_check
      _
    $region43: #{hazard_transformer_forward.1} parent=1 // pred_check_branch
      %49 = sbr.rel (0) target = $region45
    $region44: #{hazard_transformer_forward.1} parent=1 // pred_region
      _
    $region45: #{hazard_transformer_forward.1} parent=1 // pred_fallthru
      _
    // Predicated region
    $region46: #{hazard_transformer_forward.1} parent=1 // pred_check
      _
    $region47: #{hazard_transformer_forward.1} parent=1 // pred_check_branch
      %51 = sbr.rel (0) target = $region49
    $region48: #{hazard_transformer_forward.1} parent=1 // pred_region
      _
    $region49: #{hazard_transformer_forward.1} parent=1 // pred_fallthru
      _
    // Predicated region
    $region50: #{hazard_transformer_forward.1} parent=1 // pred_check
      _
    $region51: #{hazard_transformer_forward.1} parent=1 // pred_check_branch
      %53 = sbr.rel (0) target = $region53
    $region52: #{hazard_transformer_forward.1} parent=1 // pred_region
      _
    $region53: #{hazard_transformer_forward.1} parent=1 // pred_fallthru
      _
    // Predicated region
    $region54: #{hazard_transformer_forward.1} parent=1 // pred_check
      _
    $region55: #{hazard_transformer_forward.1} parent=1 // pred_check_branch
      %55 = sbr.rel (0) target = $region57
    $region56: #{hazard_transformer_forward.1} parent=1 // pred_region
      _
    $region57: #{hazard_transformer_forward.1} parent=1 // pred_fallthru
      _
    // Predicated region
    $region58: #{hazard_transformer_forward.1} parent=1 // pred_check
      _
    $region59: #{hazard_transformer_forward.1} parent=1 // pred_check_branch
      %57 = sbr.rel (0) target = $region61
    $region60: #{hazard_transformer_forward.1} parent=1 // pred_region
      _
    $region61: #{hazard_transformer_forward.1} parent=1 // pred_fallthru
      _
    // Predicated region
    $region62: #{hazard_transformer_forward.1} parent=1 // pred_check
      _
    $region63: #{hazard_transformer_forward.1} parent=1 // pred_check_branch
      %59 = sbr.rel (0) target = $region65
    $region64: #{hazard_transformer_forward.1} parent=1 // pred_region
      _
    $region65: #{hazard_transformer_forward.1} parent=1 // pred_fallthru
      _
    // Predicated region
    $region66: #{hazard_transformer_forward.1} parent=1 // pred_check
      _
    $region67: #{hazard_transformer_forward.1} parent=1 // pred_check_branch
      %61 = sbr.rel (0) target = $region69
    $region68: #{hazard_transformer_forward.1} parent=1 // pred_region
      _
    $region69: #{hazard_transformer_forward.1} parent=1 // pred_fallthru
      _
    // Predicated region
    $region70: #{hazard_transformer_forward.1} parent=1 // pred_check
      _
    $region71: #{hazard_transformer_forward.1} parent=1 // pred_check_branch
      %63 = sbr.rel (0) target = $region73
    $region72: #{hazard_transformer_forward.1} parent=1 // pred_region
      _
    $region73: #{hazard_transformer_forward.1} parent=1 // pred_fallthru
      _
    // Predicated region
    $region74: #{hazard_transformer_forward.1} parent=1 // pred_check
      _
    $region75: #{hazard_transformer_forward.1} parent=1 // pred_check_branch
      %65 = sbr.rel (0) target = $region77
    $region76: #{hazard_transformer_forward.1} parent=1 // pred_region
      _
    $region77: #{hazard_transformer_forward.1} parent=1 // pred_fallthru
      _
    %v67 = vld [vmem:[%s0] sm:$0xff]
    %v68 = vld [vmem:[%s0 + $0x8] sm:$0xff]
    %vm69 = vcmask 130048
    %v70 = vsel %vm69, %v67, 0.0
    %v71 = vrot.slane %v70, 4
    %v72 = vadd.f32 %v70, %v71
    %v73 = vrot.slane %v72, 2
    %v74 = vadd.f32 %v72, %v73
    %v75 = vrot.slane %v74, 1
    %v76 = vadd.f32 %v74, %v75
    %v77 = vsel %vm69, %v68, 0.0
    %v78 = vrot.slane %v77, 4
    %v79 = vadd.f32 %v77, %v78
    %v80 = vrot.slane %v79, 2
    %v81 = vadd.f32 %v79, %v80
    %v82 = vrot.slane %v81, 1
    %v83 = vadd.f32 %v81, %v82
    %v84 = vld [vmem:[%s1] sm:$0x3]
    %v85 = vpack.c.bf16 %v76, %v76
    %v86 = vpack.c.bf16 %v83, %v83
    %v87 = vld [vmem:[%s3] sm:$0xf]
    %v88 = vld [vmem:[%s3 + $0x4] sm:$0xf]
    %v89 = vld [vmem:[%s4] sm:$0x1]
    %v91 = vlaneseq
    %v92 = vshrl.u32 %v91, 7
    %v93 = vsub.s32 0, %v92
    %v94 = vrot.slane %v89, %v93
    %97 = vset.pattern.permute.xlu0 0
    %98 = vperm.xlu0 %97, %v84
    %v99 = vpop.permute.xlu0 %98
    %v101 = vmul.f32 %v94, %v99
    %v104 = vunpack.c.l.b16 %v85
    %v105 = vunpack.c.l.b16 %v86
    %vm106 = vcmask 1041409
    %v107 = vsel %vm106, %v105, %v104
    %v108 = vpack.c.b16 %v107, %v107
    %v111 = vunpack.c.l.b16 %v87
    %v112 = vunpack.c.l.b16 %v88
    %v113 = vpack.c.b16 %v112, %v111
    %v116 = vsel %vm69, %v108, 0
    %118 = vmatprep.subr.bf16.mxu0 0
    %119 = vmatpush1.bf16.msra.mxu0 0
    %120 = vmatprep.subr.bf16.mxu0 0
    %121 = vmatpush1.bf16.msra.mxu0 0
    %122 = vmatprep.subr.bf16.mxu0 0
    %123 = vmatpush1.bf16.msra.mxu0 0
    %124 = vmatprep.subr.bf16.mxu0 0
    %125 = vmatpush1.bf16.msra.mxu0 0
    %126 = vmatprep.subr.bf16.mxu0 0
    %127 = vmatpush1.bf16.msra.mxu0 0
    %128 = vmatprep.subr.bf16.mxu0 0
    %129 = vmatpush1.bf16.msra.mxu0 0
    %130 = vmatprep.subr.bf16.mxu0 0
    %131 = vmatpush1.bf16.msra.mxu0 0
    %132 = vmatprep.subr.bf16.mxu0 0
    %133 = vmatpush1.bf16.msra.mxu0 %v113
    %134 = vmatprep.subr.bf16.mxu0 0
    %135 = vmatpush2.bf16.msra.mxu0 0
    %136 = vmatprep.subr.bf16.mxu0 0
    %137 = vmatpush2.bf16.msra.mxu0 0
    %138 = vmatprep.subr.bf16.mxu0 0
    %139 = vmatpush2.bf16.msra.mxu0 0
    %140 = vmatprep.subr.bf16.mxu0 0
    %141 = vmatpush2.bf16.msra.mxu0 0
    %142 = vmatprep.subr.bf16.mxu0 0
    %143 = vmatpush2.bf16.msra.mxu0 0
    %144 = vmatprep.subr.bf16.mxu0 0
    %145 = vmatpush2.bf16.msra.mxu0 0
    %146 = vmatprep.subr.bf16.mxu0 0
    %147 = vmatpush2.bf16.msra.mxu0 0
    %148 = vmatprep.subr.bf16.mxu0 0
    %149 = vmatpush2.bf16.msra.mxu0 0
    %150 = vmatprep.mubr.bf16.mxu0 0
    %151 = vmatmul.mubr.bf16.gmra.mxu0 %v116
    %v152 = vpop.f32.mrf.mxu0
    %v153 = vadd.f32 %v101, %v152
    %v154 = vpop.f32.mrf.mxu0
    %v155 = vpop.f32.mrf.mxu0
    %v156 = vpop.f32.mrf.mxu0
    %157 = vdwg.mxu0
    %v158 = vadd.f32 %v84, 1e-08
    %160 = vset.pattern.permute.xlu0 0
    %161 = vperm.xlu0 %160, %v158
    %v162 = vpop.permute.xlu0 %161
    %v164 = vrcp.pop %v162
    %v165 = vmul.f32 %v153, %v164
    %v166 = vld [vmem:[%s2] sm:$0x1]
    %v168 = vlaneseq
    %v169 = vshrl.u32 %v168, 7
    %v170 = vsub.s32 0, %v169
    %v171 = vrot.slane %v166, %v170
    %v173 = vadd.f32 %v165, %v171
    %v174 = vpack.c.bf16 %v173, %v173
    %v175 = vld [vmem:[%s5] sm:$0xf]
    %v176 = vld [vmem:[%s5 + $0x4] sm:$0xf]
    %v177 = vld [vmem:[%s5 + $0x8] sm:$0xf]
    %v178 = vld [vmem:[%s5 + $0xc] sm:$0xf]
    %v179 = vld [vmem:[%s6] sm:$0x1]
    %v181 = vlaneseq
    %v182 = vshrl.u32 %v181, 7
    %v183 = vsub.s32 0, %v182
    %v184 = vrot.slane %v179, %v183
    %v190 = vunpack.c.l.b16 %v175
    %v191 = vunpack.c.l.b16 %v176
    %v192 = vunpack.c.l.b16 %v177
    %v193 = vunpack.c.l.b16 %v178
    %v194 = vpack.c.b16 %v191, %v190
    %v195 = vpack.c.b16 %v193, %v192
    %vm198 = vcmask 261120
    %v200 = vsel %vm198, %v174, 0
    %202 = vmatprep.subr.bf16.mxu0 0
    %203 = vmatpush1.bf16.msra.mxu0 0
    %204 = vmatprep.subr.bf16.mxu0 0
    %205 = vmatpush1.bf16.msra.mxu0 0
    %206 = vmatprep.subr.bf16.mxu0 0
    %207 = vmatpush1.bf16.msra.mxu0 0
    %208 = vmatprep.subr.bf16.mxu0 0
    %209 = vmatpush1.bf16.msra.mxu0 0
    %210 = vmatprep.subr.bf16.mxu0 0
    %211 = vmatpush1.bf16.msra.mxu0 0
    %212 = vmatprep.subr.bf16.mxu0 0
    %213 = vmatpush1.bf16.msra.mxu0 0
    %214 = vmatprep.subr.bf16.mxu0 0
    %215 = vmatpush1.bf16.msra.mxu0 %v195
    %216 = vmatprep.subr.bf16.mxu0 0
    %217 = vmatpush1.bf16.msra.mxu0 %v194
    %218 = vmatprep.subr.bf16.mxu0 0
    %219 = vmatpush2.bf16.msra.mxu0 0
    %220 = vmatprep.subr.bf16.mxu0 0
    %221 = vmatpush2.bf16.msra.mxu0 0
    %222 = vmatprep.subr.bf16.mxu0 0
    %223 = vmatpush2.bf16.msra.mxu0 0
    %224 = vmatprep.subr.bf16.mxu0 0
    %225 = vmatpush2.bf16.msra.mxu0 0
    %226 = vmatprep.subr.bf16.mxu0 0
    %227 = vmatpush2.bf16.msra.mxu0 0
    %228 = vmatprep.subr.bf16.mxu0 0
    %229 = vmatpush2.bf16.msra.mxu0 0
    %230 = vmatprep.subr.bf16.mxu0 0
    %231 = vmatpush2.bf16.msra.mxu0 0
    %232 = vmatprep.subr.bf16.mxu0 0
    %233 = vmatpush2.bf16.msra.mxu0 0
    %234 = vmatprep.mubr.bf16.mxu0 0
    %235 = vmatmul.mubr.bf16.gmra.mxu0 %v200
    %v236 = vpop.f32.mrf.mxu0
    %v237 = vadd.f32 %v184, %v236
    %v238 = vpop.f32.mrf.mxu0
    %v239 = vpop.f32.mrf.mxu0
    %v240 = vpop.f32.mrf.mxu0
    %241 = vdwg.mxu0
    %v242 = vadd.f32 %v173, %v237
    %v243 = vld [vmem:[%s7] sm:$0x1]
    %v244 = vld [vmem:[%s8] sm:$0x1]
    %vm245 = vcmask 254976
    %v246 = vsel %vm245, %v242, 0.0
    %247 = vadd.xlane.f32.xlu0 %v246
    %v248 = vpop.xlane.xlu0 %247
    %v249 = vrcp.pop 32.0
    %v250 = vmul.f32 %v248, %v249
    %v251 = vsub.f32 %v242, %v250
    %v252 = vmul.f32 %v251, %v251
    %v253 = vsel %vm245, %v252, 0.0
    %254 = vadd.xlane.f32.xlu0 %v253
    %v255 = vpop.xlane.xlu0 %254
    %v256 = vmul.f32 %v255, %v249
    %v257 = vadd.f32 %v256, 1e-05
    %v258 = vrsqrt.pop %v257
    %v259 = vmul.f32 %v251, %v258
    %v261 = vlaneseq
    %v262 = vshrl.u32 %v261, 7
    %v263 = vsub.s32 0, %v262
    %v264 = vrot.slane %v243, %v263
    %v266 = vmul.f32 %v259, %v264
    %v268 = vlaneseq
    %v269 = vshrl.u32 %v268, 7
    %v270 = vsub.s32 0, %v269
    %v271 = vrot.slane %v244, %v270
    %v273 = vadd.f32 %v266, %v271
    %v274 = vpack.c.bf16 %v273, %v273
    %v275 = vld [vmem:[%s9] sm:$0xff]
    %v276 = vld [vmem:[%s9 + $0x8] sm:$0xff]
    %v277 = vld [vmem:[%s9 + $0x10] sm:$0xff]
    %v278 = vld [vmem:[%s9 + $0x18] sm:$0xff]
    %v279 = vld [vmem:[%s9 + $0x20] sm:$0xff]
    %v280 = vld [vmem:[%s9 + $0x28] sm:$0xff]
    %v281 = vld [vmem:[%s9 + $0x30] sm:$0xff]
    %v282 = vld [vmem:[%s9 + $0x38] sm:$0xff]
    %v283 = vld [vmem:[%s9 + $0x40] sm:$0xff]
    %v284 = vld [vmem:[%s9 + $0x48] sm:$0xff]
    %v285 = vld [vmem:[%s9 + $0x50] sm:$0xff]
    %v286 = vld [vmem:[%s9 + $0x58] sm:$0xff]
    %v287 = vld [vmem:[%s9 + $0x60] sm:$0xff]
    %v288 = vld [vmem:[%s9 + $0x68] sm:$0xff]
    %v289 = vld [vmem:[%s9 + $0x70] sm:$0xff]
    %v290 = vld [vmem:[%s9 + $0x78] sm:$0xff]
    %v291 = vld [vmem:[%s9 + $0x80] sm:$0xff]
    %v292 = vld [vmem:[%s9 + $0x88] sm:$0xff]
    %v293 = vld [vmem:[%s9 + $0x90] sm:$0xff]
    %v294 = vld [vmem:[%s9 + $0x98] sm:$0xff]
    %v295 = vld [vmem:[%s9 + $0xa0] sm:$0xff]
    %v296 = vld [vmem:[%s9 + $0xa8] sm:$0xff]
    %v297 = vld [vmem:[%s9 + $0xb0] sm:$0xff]
    %v298 = vld [vmem:[%s9 + $0xb8] sm:$0xff]
    %v299 = vld [vmem:[%s9 + $0xc0] sm:$0xff]
    %v300 = vld [vmem:[%s9 + $0xc8] sm:$0xff]
    %v301 = vld [vmem:[%s9 + $0xd0] sm:$0xff]
    %v302 = vld [vmem:[%s9 + $0xd8] sm:$0xff]
    %v303 = vld [vmem:[%s9 + $0xe0] sm:$0xff]
    %v304 = vld [vmem:[%s9 + $0xe8] sm:$0xff]
    %v305 = vld [vmem:[%s9 + $0xf0] sm:$0xff]
    %v306 = vld [vmem:[%s9 + $0xf8] sm:$0xff]
    %v307 = vld [vmem:[%s10] sm:$0xff]
    %v308 = vld [vmem:[%s10 + $0x8] sm:$0xff]
    %v311 = vlaneseq
    %v312 = vshrl.u32 %v311, 7
    %v313 = vsub.s32 0, %v312
    %v314 = vrot.slane %v307, %v313
    %v315 = vlaneseq
    %v316 = vshrl.u32 %v315, 7
    %v317 = vsub.s32 1, %v316
    %v318 = vrot.slane %v307, %v317
    %v319 = vlaneseq
    %v320 = vshrl.u32 %v319, 7
    %v321 = vsub.s32 2, %v320
    %v322 = vrot.slane %v307, %v321
    %v323 = vlaneseq
    %v324 = vshrl.u32 %v323, 7
    %v325 = vsub.s32 3, %v324
    %v326 = vrot.slane %v307, %v325
    %v327 = vlaneseq
    %v328 = vshrl.u32 %v327, 7
    %v329 = vsub.s32 4, %v328
    %v330 = vrot.slane %v307, %v329
    %v331 = vlaneseq
    %v332 = vshrl.u32 %v331, 7
    %v333 = vsub.s32 5, %v332
    %v334 = vrot.slane %v307, %v333
    %v335 = vlaneseq
    %v336 = vshrl.u32 %v335, 7
    %v337 = vsub.s32 6, %v336
    %v338 = vrot.slane %v307, %v337
    %v339 = vlaneseq
    %v340 = vshrl.u32 %v339, 7
    %v341 = vsub.s32 7, %v340
    %v342 = vrot.slane %v307, %v341
    %v343 = vlaneseq
    %v344 = vshrl.u32 %v343, 7
    %v345 = vsub.s32 0, %v344
    %v346 = vrot.slane %v308, %v345
    %v347 = vlaneseq
    %v348 = vshrl.u32 %v347, 7
    %v349 = vsub.s32 1, %v348
    %v350 = vrot.slane %v308, %v349
    %v351 = vlaneseq
    %v352 = vshrl.u32 %v351, 7
    %v353 = vsub.s32 2, %v352
    %v354 = vrot.slane %v308, %v353
    %v355 = vlaneseq
    %v356 = vshrl.u32 %v355, 7
    %v357 = vsub.s32 3, %v356
    %v358 = vrot.slane %v308, %v357
    %v359 = vlaneseq
    %v360 = vshrl.u32 %v359, 7
    %v361 = vsub.s32 4, %v360
    %v362 = vrot.slane %v308, %v361
    %v363 = vlaneseq
    %v364 = vshrl.u32 %v363, 7
    %v365 = vsub.s32 5, %v364
    %v366 = vrot.slane %v308, %v365
    %v367 = vlaneseq
    %v368 = vshrl.u32 %v367, 7
    %v369 = vsub.s32 6, %v368
    %v370 = vrot.slane %v308, %v369
    %v371 = vlaneseq
    %v372 = vshrl.u32 %v371, 7
    %v373 = vsub.s32 7, %v372
    %v374 = vrot.slane %v308, %v373
    %v423 = vunpack.c.l.b16 %v275
    %v424 = vunpack.c.h.b16 %v275
    %v425 = vunpack.c.l.b16 %v276
    %v426 = vunpack.c.h.b16 %v276
    %v427 = vunpack.c.l.b16 %v277
    %v428 = vunpack.c.h.b16 %v277
    %v429 = vunpack.c.l.b16 %v278
    %v430 = vunpack.c.h.b16 %v278
    %v431 = vunpack.c.l.b16 %v279
    %v432 = vunpack.c.h.b16 %v279
    %v433 = vunpack.c.l.b16 %v280
    %v434 = vunpack.c.h.b16 %v280
    %v435 = vunpack.c.l.b16 %v281
    %v436 = vunpack.c.h.b16 %v281
    %v437 = vunpack.c.l.b16 %v282
    %v438 = vunpack.c.h.b16 %v282
    %v439 = vunpack.c.l.b16 %v283
    %v440 = vunpack.c.h.b16 %v283
    %v441 = vunpack.c.l.b16 %v284
    %v442 = vunpack.c.h.b16 %v284
    %v443 = vunpack.c.l.b16 %v285
    %v444 = vunpack.c.h.b16 %v285
    %v445 = vunpack.c.l.b16 %v286
    %v446 = vunpack.c.h.b16 %v286
    %v447 = vunpack.c.l.b16 %v287
    %v448 = vunpack.c.h.b16 %v287
    %v449 = vunpack.c.l.b16 %v288
    %v450 = vunpack.c.h.b16 %v288
    %v451 = vunpack.c.l.b16 %v289
    %v452 = vunpack.c.h.b16 %v289
    %v453 = vunpack.c.l.b16 %v290
    %v454 = vunpack.c.h.b16 %v290
    %v455 = vunpack.c.l.b16 %v291
    %v456 = vunpack.c.h.b16 %v291
    %v457 = vunpack.c.l.b16 %v292
    %v458 = vunpack.c.h.b16 %v292
    %v459 = vunpack.c.l.b16 %v293
    %v460 = vunpack.c.h.b16 %v293
    %v461 = vunpack.c.l.b16 %v294
    %v462 = vunpack.c.h.b16 %v294
    %v463 = vunpack.c.l.b16 %v295
    %v464 = vunpack.c.h.b16 %v295
    %v465 = vunpack.c.l.b16 %v296
    %v466 = vunpack.c.h.b16 %v296
    %v467 = vunpack.c.l.b16 %v297
    %v468 = vunpack.c.h.b16 %v297
    %v469 = vunpack.c.l.b16 %v298
    %v470 = vunpack.c.h.b16 %v298
    %v471 = vunpack.c.l.b16 %v299
    %v472 = vunpack.c.h.b16 %v299
    %v473 = vunpack.c.l.b16 %v300
    %v474 = vunpack.c.h.b16 %v300
    %v475 = vunpack.c.l.b16 %v301
    %v476 = vunpack.c.h.b16 %v301
    %v477 = vunpack.c.l.b16 %v302
    %v478 = vunpack.c.h.b16 %v302
    %v479 = vunpack.c.l.b16 %v303
    %v480 = vunpack.c.h.b16 %v303
    %v481 = vunpack.c.l.b16 %v304
    %v482 = vunpack.c.h.b16 %v304
    %v483 = vunpack.c.l.b16 %v305
    %v484 = vunpack.c.h.b16 %v305
    %v485 = vunpack.c.l.b16 %v306
    %v486 = vunpack.c.h.b16 %v306
    %v487 = vpack.c.b16 %v439, %v423
    %v488 = vpack.c.b16 %v440, %v424
    %v489 = vpack.c.b16 %v441, %v425
    %v490 = vpack.c.b16 %v442, %v426
    %v491 = vpack.c.b16 %v443, %v427
    %v492 = vpack.c.b16 %v444, %v428
    %v493 = vpack.c.b16 %v445, %v429
    %v494 = vpack.c.b16 %v446, %v430
    %v495 = vpack.c.b16 %v447, %v431
    %v496 = vpack.c.b16 %v448, %v432
    %v497 = vpack.c.b16 %v449, %v433
    %v498 = vpack.c.b16 %v450, %v434
    %v499 = vpack.c.b16 %v451, %v435
    %v500 = vpack.c.b16 %v452, %v436
    %v501 = vpack.c.b16 %v453, %v437
    %v502 = vpack.c.b16 %v454, %v438
    %v503 = vpack.c.b16 %v471, %v455
    %v504 = vpack.c.b16 %v472, %v456
    %v505 = vpack.c.b16 %v473, %v457
    %v506 = vpack.c.b16 %v474, %v458
    %v507 = vpack.c.b16 %v475, %v459
    %v508 = vpack.c.b16 %v476, %v460
    %v509 = vpack.c.b16 %v477, %v461
    %v510 = vpack.c.b16 %v478, %v462
    %v511 = vpack.c.b16 %v479, %v463
    %v512 = vpack.c.b16 %v480, %v464
    %v513 = vpack.c.b16 %v481, %v465
    %v514 = vpack.c.b16 %v482, %v466
    %v515 = vpack.c.b16 %v483, %v467
    %v516 = vpack.c.b16 %v484, %v468
    %v517 = vpack.c.b16 %v485, %v469
    %v518 = vpack.c.b16 %v486, %v470
    %v552 = vsel %vm198, %v274, 0
    %554 = vmatprep.subr.bf16.mxu0 0
    %555 = vmatpush1.bf16.msra.mxu0 0
    %556 = vmatprep.subr.bf16.mxu0 0
    %557 = vmatpush1.bf16.msra.mxu0 0
    %558 = vmatprep.subr.bf16.mxu0 0
    %559 = vmatpush1.bf16.msra.mxu0 0
    %560 = vmatprep.subr.bf16.mxu0 0
    %561 = vmatpush1.bf16.msra.mxu0 0
    %562 = vmatprep.subr.bf16.mxu0 0
    %563 = vmatpush1.bf16.msra.mxu0 0
    %564 = vmatprep.subr.bf16.mxu0 0
    %565 = vmatpush1.bf16.msra.mxu0 0
    %566 = vmatprep.subr.bf16.mxu0 %v504
    %567 = vmatpush1.bf16.msra.mxu0 %v503
    %568 = vmatprep.subr.bf16.mxu0 %v488
    %569 = vmatpush1.bf16.msra.mxu0 %v487
    %570 = vmatprep.subr.bf16.mxu0 0
    %571 = vmatpush2.bf16.msra.mxu0 0
    %572 = vmatprep.subr.bf16.mxu0 0
    %573 = vmatpush2.bf16.msra.mxu0 0
    %574 = vmatprep.subr.bf16.mxu0 0
    %575 = vmatpush2.bf16.msra.mxu0 0
    %576 = vmatprep.subr.bf16.mxu0 0
    %577 = vmatpush2.bf16.msra.mxu0 0
    %578 = vmatprep.subr.bf16.mxu0 0
    %579 = vmatpush2.bf16.msra.mxu0 0
    %580 = vmatprep.subr.bf16.mxu0 0
    %581 = vmatpush2.bf16.msra.mxu0 0
    %582 = vmatprep.subr.bf16.mxu0 0
    %583 = vmatpush2.bf16.msra.mxu0 0
    %584 = vmatprep.subr.bf16.mxu0 0
    %585 = vmatpush2.bf16.msra.mxu0 0
    %586 = vmatprep.mubr.bf16.mxu0 0
    %587 = vmatmul.mubr.bf16.gmra.mxu0 %v552
    %v588 = vpop.f32.mrf.mxu0
    %v589 = vadd.f32 %v314, %v588
    %v590 = vpop.f32.mrf.mxu0
    %v591 = vadd.f32 %v318, %v590
    %v592 = vpop.f32.mrf.mxu0
    %v593 = vpop.f32.mrf.mxu0
    %594 = vdwg.mxu0
    %595 = vmatprep.subr.bf16.mxu0 0
    %596 = vmatpush1.bf16.msra.mxu0 0
    %597 = vmatprep.subr.bf16.mxu0 0
    %598 = vmatpush1.bf16.msra.mxu0 0
    %599 = vmatprep.subr.bf16.mxu0 0
    %600 = vmatpush1.bf16.msra.mxu0 0
    %601 = vmatprep.subr.bf16.mxu0 0
    %602 = vmatpush1.bf16.msra.mxu0 0
    %603 = vmatprep.subr.bf16.mxu0 0
    %604 = vmatpush1.bf16.msra.mxu0 0
    %605 = vmatprep.subr.bf16.mxu0 0
    %606 = vmatpush1.bf16.msra.mxu0 0
    %607 = vmatprep.subr.bf16.mxu0 %v506
    %608 = vmatpush1.bf16.msra.mxu0 %v505
    %609 = vmatprep.subr.bf16.mxu0 %v490
    %610 = vmatpush1.bf16.msra.mxu0 %v489
    %611 = vmatprep.subr.bf16.mxu0 0
    %612 = vmatpush2.bf16.msra.mxu0 0
    %613 = vmatprep.subr.bf16.mxu0 0
    %614 = vmatpush2.bf16.msra.mxu0 0
    %615 = vmatprep.subr.bf16.mxu0 0
    %616 = vmatpush2.bf16.msra.mxu0 0
    %617 = vmatprep.subr.bf16.mxu0 0
    %618 = vmatpush2.bf16.msra.mxu0 0
    %619 = vmatprep.subr.bf16.mxu0 0
    %620 = vmatpush2.bf16.msra.mxu0 0
    %621 = vmatprep.subr.bf16.mxu0 0
    %622 = vmatpush2.bf16.msra.mxu0 0
    %623 = vmatprep.subr.bf16.mxu0 0
    %624 = vmatpush2.bf16.msra.mxu0 0
    %625 = vmatprep.subr.bf16.mxu0 0
    %626 = vmatpush2.bf16.msra.mxu0 0
    %627 = vmatprep.mubr.bf16.mxu0 0
    %628 = vmatmul.mubr.bf16.gmra.mxu0 %v552
    %v629 = vpop.f32.mrf.mxu0
    %v630 = vadd.f32 %v322, %v629
    %v631 = vpop.f32.mrf.mxu0
    %v632 = vadd.f32 %v326, %v631
    %v633 = vpop.f32.mrf.mxu0
    %v634 = vpop.f32.mrf.mxu0
    %635 = vdwg.mxu0
    %636 = vmatprep.subr.bf16.mxu0 0
    %637 = vmatpush1.bf16.msra.mxu0 0
    %638 = vmatprep.subr.bf16.mxu0 0
    %639 = vmatpush1.bf16.msra.mxu0 0
    %640 = vmatprep.subr.bf16.mxu0 0
    %641 = vmatpush1.bf16.msra.mxu0 0
    %642 = vmatprep.subr.bf16.mxu0 0
    %643 = vmatpush1.bf16.msra.mxu0 0
    %644 = vmatprep.subr.bf16.mxu0 0
    %645 = vmatpush1.bf16.msra.mxu0 0
    %646 = vmatprep.subr.bf16.mxu0 0
    %647 = vmatpush1.bf16.msra.mxu0 0
    %648 = vmatprep.subr.bf16.mxu0 %v508
    %649 = vmatpush1.bf16.msra.mxu0 %v507
    %650 = vmatprep.subr.bf16.mxu0 %v492
    %651 = vmatpush1.bf16.msra.mxu0 %v491
    %652 = vmatprep.subr.bf16.mxu0 0
    %653 = vmatpush2.bf16.msra.mxu0 0
    %654 = vmatprep.subr.bf16.mxu0 0
    %655 = vmatpush2.bf16.msra.mxu0 0
    %656 = vmatprep.subr.bf16.mxu0 0
    %657 = vmatpush2.bf16.msra.mxu0 0
    %658 = vmatprep.subr.bf16.mxu0 0
    %659 = vmatpush2.bf16.msra.mxu0 0
    %660 = vmatprep.subr.bf16.mxu0 0
    %661 = vmatpush2.bf16.msra.mxu0 0
    %662 = vmatprep.subr.bf16.mxu0 0
    %663 = vmatpush2.bf16.msra.mxu0 0
    %664 = vmatprep.subr.bf16.mxu0 0
    %665 = vmatpush2.bf16.msra.mxu0 0
    %666 = vmatprep.subr.bf16.mxu0 0
    %667 = vmatpush2.bf16.msra.mxu0 0
    %668 = vmatprep.mubr.bf16.mxu0 0
    %669 = vmatmul.mubr.bf16.gmra.mxu0 %v552
    %v670 = vpop.f32.mrf.mxu0
    %v671 = vadd.f32 %v330, %v670
    %v672 = vpop.f32.mrf.mxu0
    %v673 = vadd.f32 %v334, %v672
    %v674 = vpop.f32.mrf.mxu0
    %v675 = vpop.f32.mrf.mxu0
    %676 = vdwg.mxu0
    %677 = vmatprep.subr.bf16.mxu0 0
    %678 = vmatpush1.bf16.msra.mxu0 0
    %679 = vmatprep.subr.bf16.mxu0 0
    %680 = vmatpush1.bf16.msra.mxu0 0
    %681 = vmatprep.subr.bf16.mxu0 0
    %682 = vmatpush1.bf16.msra.mxu0 0
    %683 = vmatprep.subr.bf16.mxu0 0
    %684 = vmatpush1.bf16.msra.mxu0 0
    %685 = vmatprep.subr.bf16.mxu0 0
    %686 = vmatpush1.bf16.msra.mxu0 0
    %687 = vmatprep.subr.bf16.mxu0 0
    %688 = vmatpush1.bf16.msra.mxu0 0
    %689 = vmatprep.subr.bf16.mxu0 %v510
    %690 = vmatpush1.bf16.msra.mxu0 %v509
    %691 = vmatprep.subr.bf16.mxu0 %v494
    %692 = vmatpush1.bf16.msra.mxu0 %v493
    %693 = vmatprep.subr.bf16.mxu0 0
    %694 = vmatpush2.bf16.msra.mxu0 0
    %695 = vmatprep.subr.bf16.mxu0 0
    %696 = vmatpush2.bf16.msra.mxu0 0
    %697 = vmatprep.subr.bf16.mxu0 0
    %698 = vmatpush2.bf16.msra.mxu0 0
    %699 = vmatprep.subr.bf16.mxu0 0
    %700 = vmatpush2.bf16.msra.mxu0 0
    %701 = vmatprep.subr.bf16.mxu0 0
    %702 = vmatpush2.bf16.msra.mxu0 0
    %703 = vmatprep.subr.bf16.mxu0 0
    %704 = vmatpush2.bf16.msra.mxu0 0
    %705 = vmatprep.subr.bf16.mxu0 0
    %706 = vmatpush2.bf16.msra.mxu0 0
    %707 = vmatprep.subr.bf16.mxu0 0
    %708 = vmatpush2.bf16.msra.mxu0 0
    %709 = vmatprep.mubr.bf16.mxu0 0
    %710 = vmatmul.mubr.bf16.gmra.mxu0 %v552
    %v711 = vpop.f32.mrf.mxu0
    %v712 = vadd.f32 %v338, %v711
    %v713 = vpop.f32.mrf.mxu0
    %v714 = vadd.f32 %v342, %v713
    %v715 = vpop.f32.mrf.mxu0
    %v716 = vpop.f32.mrf.mxu0
    %717 = vdwg.mxu0
    %718 = vmatprep.subr.bf16.mxu0 0
    %719 = vmatpush1.bf16.msra.mxu0 0
    %720 = vmatprep.subr.bf16.mxu0 0
    %721 = vmatpush1.bf16.msra.mxu0 0
    %722 = vmatprep.subr.bf16.mxu0 0
    %723 = vmatpush1.bf16.msra.mxu0 0
    %724 = vmatprep.subr.bf16.mxu0 0
    %725 = vmatpush1.bf16.msra.mxu0 0
    %726 = vmatprep.subr.bf16.mxu0 0
    %727 = vmatpush1.bf16.msra.mxu0 0
    %728 = vmatprep.subr.bf16.mxu0 0
    %729 = vmatpush1.bf16.msra.mxu0 0
    %730 = vmatprep.subr.bf16.mxu0 %v512
    %731 = vmatpush1.bf16.msra.mxu0 %v511
    %732 = vmatprep.subr.bf16.mxu0 %v496
    %733 = vmatpush1.bf16.msra.mxu0 %v495
    %734 = vmatprep.subr.bf16.mxu0 0
    %735 = vmatpush2.bf16.msra.mxu0 0
    %736 = vmatprep.subr.bf16.mxu0 0
    %737 = vmatpush2.bf16.msra.mxu0 0
    %738 = vmatprep.subr.bf16.mxu0 0
    %739 = vmatpush2.bf16.msra.mxu0 0
    %740 = vmatprep.subr.bf16.mxu0 0
    %741 = vmatpush2.bf16.msra.mxu0 0
    %742 = vmatprep.subr.bf16.mxu0 0
    %743 = vmatpush2.bf16.msra.mxu0 0
    %744 = vmatprep.subr.bf16.mxu0 0
    %745 = vmatpush2.bf16.msra.mxu0 0
    %746 = vmatprep.subr.bf16.mxu0 0
    %747 = vmatpush2.bf16.msra.mxu0 0
    %748 = vmatprep.subr.bf16.mxu0 0
    %749 = vmatpush2.bf16.msra.mxu0 0
    %750 = vmatprep.mubr.bf16.mxu0 0
    %751 = vmatmul.mubr.bf16.gmra.mxu0 %v552
    %v752 = vpop.f32.mrf.mxu0
    %v753 = vadd.f32 %v346, %v752
    %v754 = vpop.f32.mrf.mxu0
    %v755 = vadd.f32 %v350, %v754
    %v756 = vpop.f32.mrf.mxu0
    %v757 = vpop.f32.mrf.mxu0
    %758 = vdwg.mxu0
    %759 = vmatprep.subr.bf16.mxu0 0
    %760 = vmatpush1.bf16.msra.mxu0 0
    %761 = vmatprep.subr.bf16.mxu0 0
    %762 = vmatpush1.bf16.msra.mxu0 0
    %763 = vmatprep.subr.bf16.mxu0 0
    %764 = vmatpush1.bf16.msra.mxu0 0
    %765 = vmatprep.subr.bf16.mxu0 0
    %766 = vmatpush1.bf16.msra.mxu0 0
    %767 = vmatprep.subr.bf16.mxu0 0
    %768 = vmatpush1.bf16.msra.mxu0 0
    %769 = vmatprep.subr.bf16.mxu0 0
    %770 = vmatpush1.bf16.msra.mxu0 0
    %771 = vmatprep.subr.bf16.mxu0 %v514
    %772 = vmatpush1.bf16.msra.mxu0 %v513
    %773 = vmatprep.subr.bf16.mxu0 %v498
    %774 = vmatpush1.bf16.msra.mxu0 %v497
    %775 = vmatprep.subr.bf16.mxu0 0
    %776 = vmatpush2.bf16.msra.mxu0 0
    %777 = vmatprep.subr.bf16.mxu0 0
    %778 = vmatpush2.bf16.msra.mxu0 0
    %779 = vmatprep.subr.bf16.mxu0 0
    %780 = vmatpush2.bf16.msra.mxu0 0
    %781 = vmatprep.subr.bf16.mxu0 0
    %782 = vmatpush2.bf16.msra.mxu0 0
    %783 = vmatprep.subr.bf16.mxu0 0
    %784 = vmatpush2.bf16.msra.mxu0 0
    %785 = vmatprep.subr.bf16.mxu0 0
    %786 = vmatpush2.bf16.msra.mxu0 0
    %787 = vmatprep.subr.bf16.mxu0 0
    %788 = vmatpush2.bf16.msra.mxu0 0
    %789 = vmatprep.subr.bf16.mxu0 0
    %790 = vmatpush2.bf16.msra.mxu0 0
    %791 = vmatprep.mubr.bf16.mxu0 0
    %792 = vmatmul.mubr.bf16.gmra.mxu0 %v552
    %v793 = vpop.f32.mrf.mxu0
    %v794 = vadd.f32 %v354, %v793
    %v795 = vpop.f32.mrf.mxu0
    %v796 = vadd.f32 %v358, %v795
    %v797 = vpop.f32.mrf.mxu0
    %v798 = vpop.f32.mrf.mxu0
    %799 = vdwg.mxu0
    %800 = vmatprep.subr.bf16.mxu0 0
    %801 = vmatpush1.bf16.msra.mxu0 0
    %802 = vmatprep.subr.bf16.mxu0 0
    %803 = vmatpush1.bf16.msra.mxu0 0
    %804 = vmatprep.subr.bf16.mxu0 0
    %805 = vmatpush1.bf16.msra.mxu0 0
    %806 = vmatprep.subr.bf16.mxu0 0
    %807 = vmatpush1.bf16.msra.mxu0 0
    %808 = vmatprep.subr.bf16.mxu0 0
    %809 = vmatpush1.bf16.msra.mxu0 0
    %810 = vmatprep.subr.bf16.mxu0 0
    %811 = vmatpush1.bf16.msra.mxu0 0
    %812 = vmatprep.subr.bf16.mxu0 %v516
    %813 = vmatpush1.bf16.msra.mxu0 %v515
    %814 = vmatprep.subr.bf16.mxu0 %v500
    %815 = vmatpush1.bf16.msra.mxu0 %v499
    %816 = vmatprep.subr.bf16.mxu0 0
    %817 = vmatpush2.bf16.msra.mxu0 0
    %818 = vmatprep.subr.bf16.mxu0 0
    %819 = vmatpush2.bf16.msra.mxu0 0
    %820 = vmatprep.subr.bf16.mxu0 0
    %821 = vmatpush2.bf16.msra.mxu0 0
    %822 = vmatprep.subr.bf16.mxu0 0
    %823 = vmatpush2.bf16.msra.mxu0 0
    %824 = vmatprep.subr.bf16.mxu0 0
    %825 = vmatpush2.bf16.msra.mxu0 0
    %826 = vmatprep.subr.bf16.mxu0 0
    %827 = vmatpush2.bf16.msra.mxu0 0
    %828 = vmatprep.subr.bf16.mxu0 0
    %829 = vmatpush2.bf16.msra.mxu0 0
    %830 = vmatprep.subr.bf16.mxu0 0
    %831 = vmatpush2.bf16.msra.mxu0 0
    %832 = vmatprep.mubr.bf16.mxu0 0
    %833 = vmatmul.mubr.bf16.gmra.mxu0 %v552
    %v834 = vpop.f32.mrf.mxu0
    %v835 = vadd.f32 %v362, %v834
    %v836 = vpop.f32.mrf.mxu0
    %v837 = vadd.f32 %v366, %v836
    %v838 = vpop.f32.mrf.mxu0
    %v839 = vpop.f32.mrf.mxu0
    %840 = vdwg.mxu0
    %841 = vmatprep.subr.bf16.mxu0 0
    %842 = vmatpush1.bf16.msra.mxu0 0
    %843 = vmatprep.subr.bf16.mxu0 0
    %844 = vmatpush1.bf16.msra.mxu0 0
    %845 = vmatprep.subr.bf16.mxu0 0
    %846 = vmatpush1.bf16.msra.mxu0 0
    %847 = vmatprep.subr.bf16.mxu0 0
    %848 = vmatpush1.bf16.msra.mxu0 0
    %849 = vmatprep.subr.bf16.mxu0 0
    %850 = vmatpush1.bf16.msra.mxu0 0
    %851 = vmatprep.subr.bf16.mxu0 0
    %852 = vmatpush1.bf16.msra.mxu0 0
    %853 = vmatprep.subr.bf16.mxu0 %v518
    %854 = vmatpush1.bf16.msra.mxu0 %v517
    %855 = vmatprep.subr.bf16.mxu0 %v502
    %856 = vmatpush1.bf16.msra.mxu0 %v501
    %857 = vmatprep.subr.bf16.mxu0 0
    %858 = vmatpush2.bf16.msra.mxu0 0
    %859 = vmatprep.subr.bf16.mxu0 0
    %860 = vmatpush2.bf16.msra.mxu0 0
    %861 = vmatprep.subr.bf16.mxu0 0
    %862 = vmatpush2.bf16.msra.mxu0 0
    %863 = vmatprep.subr.bf16.mxu0 0
    %864 = vmatpush2.bf16.msra.mxu0 0
    %865 = vmatprep.subr.bf16.mxu0 0
    %866 = vmatpush2.bf16.msra.mxu0 0
    %867 = vmatprep.subr.bf16.mxu0 0
    %868 = vmatpush2.bf16.msra.mxu0 0
    %869 = vmatprep.subr.bf16.mxu0 0
    %870 = vmatpush2.bf16.msra.mxu0 0
    %871 = vmatprep.subr.bf16.mxu0 0
    %872 = vmatpush2.bf16.msra.mxu0 0
    %873 = vmatprep.mubr.bf16.mxu0 0
    %874 = vmatmul.mubr.bf16.gmra.mxu0 %v552
    %v875 = vpop.f32.mrf.mxu0
    %v876 = vadd.f32 %v370, %v875
    %v877 = vpop.f32.mrf.mxu0
    %v878 = vadd.f32 %v374, %v877
    %v879 = vpop.f32.mrf.mxu0
    %v880 = vpop.f32.mrf.mxu0
    %881 = vdwg.mxu0
    %v882 = vmax.f32 %v589, 0.0
    %v883 = vmax.f32 %v591, 0.0
    %v884 = vmax.f32 %v630, 0.0
    %v885 = vmax.f32 %v632, 0.0
    %v886 = vmax.f32 %v671, 0.0
    %v887 = vmax.f32 %v673, 0.0
    %v888 = vmax.f32 %v712, 0.0
    %v889 = vmax.f32 %v714, 0.0
    %v890 = vmax.f32 %v753, 0.0
    %v891 = vmax.f32 %v755, 0.0
    %v892 = vmax.f32 %v794, 0.0
    %v893 = vmax.f32 %v796, 0.0
    %v894 = vmax.f32 %v835, 0.0
    %v895 = vmax.f32 %v837, 0.0
    %v896 = vmax.f32 %v876, 0.0
    %v897 = vmax.f32 %v878, 0.0
    %v898 = vpack.c.bf16 %v882, %v882
    %v899 = vpack.c.bf16 %v883, %v883
    %v900 = vpack.c.bf16 %v884, %v884
    %v901 = vpack.c.bf16 %v885, %v885
    %v902 = vpack.c.bf16 %v886, %v886
    %v903 = vpack.c.bf16 %v887, %v887
    %v904 = vpack.c.bf16 %v888, %v888
    %v905 = vpack.c.bf16 %v889, %v889
    %v906 = vpack.c.bf16 %v890, %v890
    %v907 = vpack.c.bf16 %v891, %v891
    %v908 = vpack.c.bf16 %v892, %v892
    %v909 = vpack.c.bf16 %v893, %v893
    %v910 = vpack.c.bf16 %v894, %v894
    %v911 = vpack.c.bf16 %v895, %v895
    %v912 = vpack.c.bf16 %v896, %v896
    %v913 = vpack.c.bf16 %v897, %v897
    %v914 = vld [vmem:[%s11] sm:$0xf]
    %v915 = vld [vmem:[%s11 + $0x4] sm:$0xf]
    %v916 = vld [vmem:[%s11 + $0x8] sm:$0xf]
    %v917 = vld [vmem:[%s11 + $0xc] sm:$0xf]
    %v918 = vld [vmem:[%s11 + $0x10] sm:$0xf]
    %v919 = vld [vmem:[%s11 + $0x14] sm:$0xf]
    %v920 = vld [vmem:[%s11 + $0x18] sm:$0xf]
    %v921 = vld [vmem:[%s11 + $0x1c] sm:$0xf]
    %v922 = vld [vmem:[%s11 + $0x20] sm:$0xf]
    %v923 = vld [vmem:[%s11 + $0x24] sm:$0xf]
    %v924 = vld [vmem:[%s11 + $0x28] sm:$0xf]
    %v925 = vld [vmem:[%s11 + $0x2c] sm:$0xf]
    %v926 = vld [vmem:[%s11 + $0x30] sm:$0xf]
    %v927 = vld [vmem:[%s11 + $0x34] sm:$0xf]
    %v928 = vld [vmem:[%s11 + $0x38] sm:$0xf]
    %v929 = vld [vmem:[%s11 + $0x3c] sm:$0xf]
    %v930 = vld [vmem:[%s11 + $0x40] sm:$0xf]
    %v931 = vld [vmem:[%s11 + $0x44] sm:$0xf]
    %v932 = vld [vmem:[%s11 + $0x48] sm:$0xf]
    %v933 = vld [vmem:[%s11 + $0x4c] sm:$0xf]
    %v934 = vld [vmem:[%s11 + $0x50] sm:$0xf]
    %v935 = vld [vmem:[%s11 + $0x54] sm:$0xf]
    %v936 = vld [vmem:[%s11 + $0x58] sm:$0xf]
    %v937 = vld [vmem:[%s11 + $0x5c] sm:$0xf]
    %v938 = vld [vmem:[%s11 + $0x60] sm:$0xf]
    %v939 = vld [vmem:[%s11 + $0x64] sm:$0xf]
    %v940 = vld [vmem:[%s11 + $0x68] sm:$0xf]
    %v941 = vld [vmem:[%s11 + $0x6c] sm:$0xf]
    %v942 = vld [vmem:[%s11 + $0x70] sm:$0xf]
    %v943 = vld [vmem:[%s11 + $0x74] sm:$0xf]
    %v944 = vld [vmem:[%s11 + $0x78] sm:$0xf]
    %v945 = vld [vmem:[%s11 + $0x7c] sm:$0xf]
    %v946 = vld [vmem:[%s11 + $0x80] sm:$0xf]
    %v947 = vld [vmem:[%s11 + $0x84] sm:$0xf]
    %v948 = vld [vmem:[%s11 + $0x88] sm:$0xf]
    %v949 = vld [vmem:[%s11 + $0x8c] sm:$0xf]
    %v950 = vld [vmem:[%s11 + $0x90] sm:$0xf]
    %v951 = vld [vmem:[%s11 + $0x94] sm:$0xf]
    %v952 = vld [vmem:[%s11 + $0x98] sm:$0xf]
    %v953 = vld [vmem:[%s11 + $0x9c] sm:$0xf]
    %v954 = vld [vmem:[%s11 + $0xa0] sm:$0xf]
    %v955 = vld [vmem:[%s11 + $0xa4] sm:$0xf]
    %v956 = vld [vmem:[%s11 + $0xa8] sm:$0xf]
    %v957 = vld [vmem:[%s11 + $0xac] sm:$0xf]
    %v958 = vld [vmem:[%s11 + $0xb0] sm:$0xf]
    %v959 = vld [vmem:[%s11 + $0xb4] sm:$0xf]
    %v960 = vld [vmem:[%s11 + $0xb8] sm:$0xf]
    %v961 = vld [vmem:[%s11 + $0xbc] sm:$0xf]
    %v962 = vld [vmem:[%s11 + $0xc0] sm:$0xf]
    %v963 = vld [vmem:[%s11 + $0xc4] sm:$0xf]
    %v964 = vld [vmem:[%s11 + $0xc8] sm:$0xf]
    %v965 = vld [vmem:[%s11 + $0xcc] sm:$0xf]
    %v966 = vld [vmem:[%s11 + $0xd0] sm:$0xf]
    %v967 = vld [vmem:[%s11 + $0xd4] sm:$0xf]
    %v968 = vld [vmem:[%s11 + $0xd8] sm:$0xf]
    %v969 = vld [vmem:[%s11 + $0xdc] sm:$0xf]
    %v970 = vld [vmem:[%s11 + $0xe0] sm:$0xf]
    %v971 = vld [vmem:[%s11 + $0xe4] sm:$0xf]
    %v972 = vld [vmem:[%s11 + $0xe8] sm:$0xf]
    %v973 = vld [vmem:[%s11 + $0xec] sm:$0xf]
    %v974 = vld [vmem:[%s11 + $0xf0] sm:$0xf]
    %v975 = vld [vmem:[%s11 + $0xf4] sm:$0xf]
    %v976 = vld [vmem:[%s11 + $0xf8] sm:$0xf]
    %v977 = vld [vmem:[%s11 + $0xfc] sm:$0xf]
    %v978 = vld [vmem:[%s11 + $0x100] sm:$0xf]
    %v979 = vld [vmem:[%s11 + $0x104] sm:$0xf]
    %v980 = vld [vmem:[%s11 + $0x108] sm:$0xf]
    %v981 = vld [vmem:[%s11 + $0x10c] sm:$0xf]
    %v982 = vld [vmem:[%s11 + $0x110] sm:$0xf]
    %v983 = vld [vmem:[%s11 + $0x114] sm:$0xf]
    %v984 = vld [vmem:[%s11 + $0x118] sm:$0xf]
    %v985 = vld [vmem:[%s11 + $0x11c] sm:$0xf]
    %v986 = vld [vmem:[%s11 + $0x120] sm:$0xf]
    %v987 = vld [vmem:[%s11 + $0x124] sm:$0xf]
    %v988 = vld [vmem:[%s11 + $0x128] sm:$0xf]
    %v989 = vld [vmem:[%s11 + $0x12c] sm:$0xf]
    %v990 = vld [vmem:[%s11 + $0x130] sm:$0xf]
    %v991 = vld [vmem:[%s11 + $0x134] sm:$0xf]
    %v992 = vld [vmem:[%s11 + $0x138] sm:$0xf]
    %v993 = vld [vmem:[%s11 + $0x13c] sm:$0xf]
    %v994 = vld [vmem:[%s11 + $0x140] sm:$0xf]
    %v995 = vld [vmem:[%s11 + $0x144] sm:$0xf]
    %v996 = vld [vmem:[%s11 + $0x148] sm:$0xf]
    %v997 = vld [vmem:[%s11 + $0x14c] sm:$0xf]
    %v998 = vld [vmem:[%s11 + $0x150] sm:$0xf]
    %v999 = vld [vmem:[%s11 + $0x154] sm:$0xf]
    %v1000 = vld [vmem:[%s11 + $0x158] sm:$0xf]
    %v1001 = vld [vmem:[%s11 + $0x15c] sm:$0xf]
    %v1002 = vld [vmem:[%s11 + $0x160] sm:$0xf]
    %v1003 = vld [vmem:[%s11 + $0x164] sm:$0xf]
    %v1004 = vld [vmem:[%s11 + $0x168] sm:$0xf]
    %v1005 = vld [vmem:[%s11 + $0x16c] sm:$0xf]
    %v1006 = vld [vmem:[%s11 + $0x170] sm:$0xf]
    %v1007 = vld [vmem:[%s11 + $0x174] sm:$0xf]
    %v1008 = vld [vmem:[%s11 + $0x178] sm:$0xf]
    %v1009 = vld [vmem:[%s11 + $0x17c] sm:$0xf]
    %v1010 = vld [vmem:[%s11 + $0x180] sm:$0xf]
    %v1011 = vld [vmem:[%s11 + $0x184] sm:$0xf]
    %v1012 = vld [vmem:[%s11 + $0x188] sm:$0xf]
    %v1013 = vld [vmem:[%s11 + $0x18c] sm:$0xf]
    %v1014 = vld [vmem:[%s11 + $0x190] sm:$0xf]
    %v1015 = vld [vmem:[%s11 + $0x194] sm:$0xf]
    %v1016 = vld [vmem:[%s11 + $0x198] sm:$0xf]
    %v1017 = vld [vmem:[%s11 + $0x19c] sm:$0xf]
    %v1018 = vld [vmem:[%s11 + $0x1a0] sm:$0xf]
    %v1019 = vld [vmem:[%s11 + $0x1a4] sm:$0xf]
    %v1020 = vld [vmem:[%s11 + $0x1a8] sm:$0xf]
    %v1021 = vld [vmem:[%s11 + $0x1ac] sm:$0xf]
    %v1022 = vld [vmem:[%s11 + $0x1b0] sm:$0xf]
    %v1023 = vld [vmem:[%s11 + $0x1b4] sm:$0xf]
    %v1024 = vld [vmem:[%s11 + $0x1b8] sm:$0xf]
    %v1025 = vld [vmem:[%s11 + $0x1bc] sm:$0xf]
    %v1026 = vld [vmem:[%s11 + $0x1c0] sm:$0xf]
    %v1027 = vld [vmem:[%s11 + $0x1c4] sm:$0xf]
    %v1028 = vld [vmem:[%s11 + $0x1c8] sm:$0xf]
    %v1029 = vld [vmem:[%s11 + $0x1cc] sm:$0xf]
    %v1030 = vld [vmem:[%s11 + $0x1d0] sm:$0xf]
    %v1031 = vld [vmem:[%s11 + $0x1d4] sm:$0xf]
    %v1032 = vld [vmem:[%s11 + $0x1d8] sm:$0xf]
    %v1033 = vld [vmem:[%s11 + $0x1dc] sm:$0xf]
    %v1034 = vld [vmem:[%s11 + $0x1e0] sm:$0xf]
    %v1035 = vld [vmem:[%s11 + $0x1e4] sm:$0xf]
    %v1036 = vld [vmem:[%s11 + $0x1e8] sm:$0xf]
    %v1037 = vld [vmem:[%s11 + $0x1ec] sm:$0xf]
    %v1038 = vld [vmem:[%s11 + $0x1f0] sm:$0xf]
    %v1039 = vld [vmem:[%s11 + $0x1f4] sm:$0xf]
    %v1040 = vld [vmem:[%s11 + $0x1f8] sm:$0xf]
    %v1041 = vld [vmem:[%s11 + $0x1fc] sm:$0xf]
    %v1042 = vld [vmem:[%s11 + $0x200] sm:$0xf]
    %v1043 = vld [vmem:[%s11 + $0x204] sm:$0xf]
    %v1044 = vld [vmem:[%s11 + $0x208] sm:$0xf]
    %v1045 = vld [vmem:[%s11 + $0x20c] sm:$0xf]
    %v1046 = vld [vmem:[%s11 + $0x210] sm:$0xf]
    %v1047 = vld [vmem:[%s11 + $0x214] sm:$0xf]
    %v1048 = vld [vmem:[%s11 + $0x218] sm:$0xf]
    %v1049 = vld [vmem:[%s11 + $0x21c] sm:$0xf]
    %v1050 = vld [vmem:[%s11 + $0x220] sm:$0xf]
    %v1051 = vld [vmem:[%s11 + $0x224] sm:$0xf]
    %v1052 = vld [vmem:[%s11 + $0x228] sm:$0xf]
    %v1053 = vld [vmem:[%s11 + $0x22c] sm:$0xf]
    %v1054 = vld [vmem:[%s11 + $0x230] sm:$0xf]
    %v1055 = vld [vmem:[%s11 + $0x234] sm:$0xf]
    %v1056 = vld [vmem:[%s11 + $0x238] sm:$0xf]
    %v1057 = vld [vmem:[%s11 + $0x23c] sm:$0xf]
    %v1058 = vld [vmem:[%s11 + $0x240] sm:$0xf]
    %v1059 = vld [vmem:[%s11 + $0x244] sm:$0xf]
    %v1060 = vld [vmem:[%s11 + $0x248] sm:$0xf]
    %v1061 = vld [vmem:[%s11 + $0x24c] sm:$0xf]
    %v1062 = vld [vmem:[%s11 + $0x250] sm:$0xf]
    %v1063 = vld [vmem:[%s11 + $0x254] sm:$0xf]
    %v1064 = vld [vmem:[%s11 + $0x258] sm:$0xf]
    %v1065 = vld [vmem:[%s11 + $0x25c] sm:$0xf]
    %v1066 = vld [vmem:[%s11 + $0x260] sm:$0xf]
    %v1067 = vld [vmem:[%s11 + $0x264] sm:$0xf]
    %v1068 = vld [vmem:[%s11 + $0x268] sm:$0xf]
    %v1069 = vld [vmem:[%s11 + $0x26c] sm:$0xf]
    %v1070 = vld [vmem:[%s11 + $0x270] sm:$0xf]
    %v1071 = vld [vmem:[%s11 + $0x274] sm:$0xf]
    %v1072 = vld [vmem:[%s11 + $0x278] sm:$0xf]
    %v1073 = vld [vmem:[%s11 + $0x27c] sm:$0xf]
    %v1074 = vld [vmem:[%s11 + $0x280] sm:$0xf]
    %v1075 = vld [vmem:[%s11 + $0x284] sm:$0xf]
    %v1076 = vld [vmem:[%s11 + $0x288] sm:$0xf]
    %v1077 = vld [vmem:[%s11 + $0x28c] sm:$0xf]
    %v1078 = vld [vmem:[%s11 + $0x290] sm:$0xf]
    %v1079 = vld [vmem:[%s11 + $0x294] sm:$0xf]
    %v1080 = vld [vmem:[%s11 + $0x298] sm:$0xf]
    %v1081 = vld [vmem:[%s11 + $0x29c] sm:$0xf]
    %v1082 = vld [vmem:[%s11 + $0x2a0] sm:$0xf]
    %v1083 = vld [vmem:[%s11 + $0x2a4] sm:$0xf]
    %v1084 = vld [vmem:[%s11 + $0x2a8] sm:$0xf]
    %v1085 = vld [vmem:[%s11 + $0x2ac] sm:$0xf]
    %v1086 = vld [vmem:[%s11 + $0x2b0] sm:$0xf]
    %v1087 = vld [vmem:[%s11 + $0x2b4] sm:$0xf]
    %v1088 = vld [vmem:[%s11 + $0x2b8] sm:$0xf]
    %v1089 = vld [vmem:[%s11 + $0x2bc] sm:$0xf]
    %v1090 = vld [vmem:[%s11 + $0x2c0] sm:$0xf]
    %v1091 = vld [vmem:[%s11 + $0x2c4] sm:$0xf]
    %v1092 = vld [vmem:[%s11 + $0x2c8] sm:$0xf]
    %v1093 = vld [vmem:[%s11 + $0x2cc] sm:$0xf]
    %v1094 = vld [vmem:[%s11 + $0x2d0] sm:$0xf]
    %v1095 = vld [vmem:[%s11 + $0x2d4] sm:$0xf]
    %v1096 = vld [vmem:[%s11 + $0x2d8] sm:$0xf]
    %v1097 = vld [vmem:[%s11 + $0x2dc] sm:$0xf]
    %v1098 = vld [vmem:[%s11 + $0x2e0] sm:$0xf]
    %v1099 = vld [vmem:[%s11 + $0x2e4] sm:$0xf]
    %v1100 = vld [vmem:[%s11 + $0x2e8] sm:$0xf]
    %v1101 = vld [vmem:[%s11 + $0x2ec] sm:$0xf]
    %v1102 = vld [vmem:[%s11 + $0x2f0] sm:$0xf]
    %v1103 = vld [vmem:[%s11 + $0x2f4] sm:$0xf]
    %v1104 = vld [vmem:[%s11 + $0x2f8] sm:$0xf]
    %v1105 = vld [vmem:[%s11 + $0x2fc] sm:$0xf]
    %v1106 = vld [vmem:[%s11 + $0x300] sm:$0xf]
    %v1107 = vld [vmem:[%s11 + $0x304] sm:$0xf]
    %v1108 = vld [vmem:[%s11 + $0x308] sm:$0xf]
    %v1109 = vld [vmem:[%s11 + $0x30c] sm:$0xf]
    %v1110 = vld [vmem:[%s11 + $0x310] sm:$0xf]
    %v1111 = vld [vmem:[%s11 + $0x314] sm:$0xf]
    %v1112 = vld [vmem:[%s11 + $0x318] sm:$0xf]
    %v1113 = vld [vmem:[%s11 + $0x31c] sm:$0xf]
    %v1114 = vld [vmem:[%s11 + $0x320] sm:$0xf]
    %v1115 = vld [vmem:[%s11 + $0x324] sm:$0xf]
    %v1116 = vld [vmem:[%s11 + $0x328] sm:$0xf]
    %v1117 = vld [vmem:[%s11 + $0x32c] sm:$0xf]
    %v1118 = vld [vmem:[%s11 + $0x330] sm:$0xf]
    %v1119 = vld [vmem:[%s11 + $0x334] sm:$0xf]
    %v1120 = vld [vmem:[%s11 + $0x338] sm:$0xf]
    %v1121 = vld [vmem:[%s11 + $0x33c] sm:$0xf]
    %v1122 = vld [vmem:[%s11 + $0x340] sm:$0xf]
    %v1123 = vld [vmem:[%s11 + $0x344] sm:$0xf]
    %v1124 = vld [vmem:[%s11 + $0x348] sm:$0xf]
    %v1125 = vld [vmem:[%s11 + $0x34c] sm:$0xf]
    %v1126 = vld [vmem:[%s11 + $0x350] sm:$0xf]
    %v1127 = vld [vmem:[%s11 + $0x354] sm:$0xf]
    %v1128 = vld [vmem:[%s11 + $0x358] sm:$0xf]
    %v1129 = vld [vmem:[%s11 + $0x35c] sm:$0xf]
    %v1130 = vld [vmem:[%s11 + $0x360] sm:$0xf]
    %v1131 = vld [vmem:[%s11 + $0x364] sm:$0xf]
    %v1132 = vld [vmem:[%s11 + $0x368] sm:$0xf]
    %v1133 = vld [vmem:[%s11 + $0x36c] sm:$0xf]
    %v1134 = vld [vmem:[%s11 + $0x370] sm:$0xf]
    %v1135 = vld [vmem:[%s11 + $0x374] sm:$0xf]
    %v1136 = vld [vmem:[%s11 + $0x378] sm:$0xf]
    %v1137 = vld [vmem:[%s11 + $0x37c] sm:$0xf]
    %v1138 = vld [vmem:[%s11 + $0x380] sm:$0xf]
    %v1139 = vld [vmem:[%s11 + $0x384] sm:$0xf]
    %v1140 = vld [vmem:[%s11 + $0x388] sm:$0xf]
    %v1141 = vld [vmem:[%s11 + $0x38c] sm:$0xf]
    %v1142 = vld [vmem:[%s11 + $0x390] sm:$0xf]
    %v1143 = vld [vmem:[%s11 + $0x394] sm:$0xf]
    %v1144 = vld [vmem:[%s11 + $0x398] sm:$0xf]
    %v1145 = vld [vmem:[%s11 + $0x39c] sm:$0xf]
    %v1146 = vld [vmem:[%s11 + $0x3a0] sm:$0xf]
    %v1147 = vld [vmem:[%s11 + $0x3a4] sm:$0xf]
    %v1148 = vld [vmem:[%s11 + $0x3a8] sm:$0xf]
    %v1149 = vld [vmem:[%s11 + $0x3ac] sm:$0xf]
    %v1150 = vld [vmem:[%s11 + $0x3b0] sm:$0xf]
    %v1151 = vld [vmem:[%s11 + $0x3b4] sm:$0xf]
    %v1152 = vld [vmem:[%s11 + $0x3b8] sm:$0xf]
    %v1153 = vld [vmem:[%s11 + $0x3bc] sm:$0xf]
    %v1154 = vld [vmem:[%s11 + $0x3c0] sm:$0xf]
    %v1155 = vld [vmem:[%s11 + $0x3c4] sm:$0xf]
    %v1156 = vld [vmem:[%s11 + $0x3c8] sm:$0xf]
    %v1157 = vld [vmem:[%s11 + $0x3cc] sm:$0xf]
    %v1158 = vld [vmem:[%s11 + $0x3d0] sm:$0xf]
    %v1159 = vld [vmem:[%s11 + $0x3d4] sm:$0xf]
    %v1160 = vld [vmem:[%s11 + $0x3d8] sm:$0xf]
    %v1161 = vld [vmem:[%s11 + $0x3dc] sm:$0xf]
    %v1162 = vld [vmem:[%s11 + $0x3e0] sm:$0xf]
    %v1163 = vld [vmem:[%s11 + $0x3e4] sm:$0xf]
    %v1164 = vld [vmem:[%s11 + $0x3e8] sm:$0xf]
    %v1165 = vld [vmem:[%s11 + $0x3ec] sm:$0xf]
    %v1166 = vld [vmem:[%s11 + $0x3f0] sm:$0xf]
    %v1167 = vld [vmem:[%s11 + $0x3f4] sm:$0xf]
    %v1168 = vld [vmem:[%s11 + $0x3f8] sm:$0xf]
    %v1169 = vld [vmem:[%s11 + $0x3fc] sm:$0xf]
    %v1170 = vld [vmem:[%s12] sm:$0x1]
    %v1172 = vlaneseq
    %v1173 = vshrl.u32 %v1172, 7
    %v1174 = vsub.s32 0, %v1173
    %v1175 = vrot.slane %v1170, %v1174
    %v1433 = vunpack.c.l.b16 %v914
    %v1434 = vunpack.c.l.b16 %v915
    %v1435 = vunpack.c.l.b16 %v916
    %v1436 = vunpack.c.l.b16 %v917
    %v1437 = vunpack.c.l.b16 %v918
    %v1438 = vunpack.c.l.b16 %v919
    %v1439 = vunpack.c.l.b16 %v920
    %v1440 = vunpack.c.l.b16 %v921
    %v1441 = vunpack.c.l.b16 %v922
    %v1442 = vunpack.c.l.b16 %v923
    %v1443 = vunpack.c.l.b16 %v924
    %v1444 = vunpack.c.l.b16 %v925
    %v1445 = vunpack.c.l.b16 %v926
    %v1446 = vunpack.c.l.b16 %v927
    %v1447 = vunpack.c.l.b16 %v928
    %v1448 = vunpack.c.l.b16 %v929
    %v1449 = vunpack.c.l.b16 %v930
    %v1450 = vunpack.c.l.b16 %v931
    %v1451 = vunpack.c.l.b16 %v932
    %v1452 = vunpack.c.l.b16 %v933
    %v1453 = vunpack.c.l.b16 %v934
    %v1454 = vunpack.c.l.b16 %v935
    %v1455 = vunpack.c.l.b16 %v936
    %v1456 = vunpack.c.l.b16 %v937
    %v1457 = vunpack.c.l.b16 %v938
    %v1458 = vunpack.c.l.b16 %v939
    %v1459 = vunpack.c.l.b16 %v940
    %v1460 = vunpack.c.l.b16 %v941
    %v1461 = vunpack.c.l.b16 %v942
    %v1462 = vunpack.c.l.b16 %v943
    %v1463 = vunpack.c.l.b16 %v944
    %v1464 = vunpack.c.l.b16 %v945
    %v1465 = vunpack.c.l.b16 %v946
    %v1466 = vunpack.c.l.b16 %v947
    %v1467 = vunpack.c.l.b16 %v948
    %v1468 = vunpack.c.l.b16 %v949
    %v1469 = vunpack.c.l.b16 %v950
    %v1470 = vunpack.c.l.b16 %v951
    %v1471 = vunpack.c.l.b16 %v952
    %v1472 = vunpack.c.l.b16 %v953
    %v1473 = vunpack.c.l.b16 %v954
    %v1474 = vunpack.c.l.b16 %v955
    %v1475 = vunpack.c.l.b16 %v956
    %v1476 = vunpack.c.l.b16 %v957
    %v1477 = vunpack.c.l.b16 %v958
    %v1478 = vunpack.c.l.b16 %v959
    %v1479 = vunpack.c.l.b16 %v960
    %v1480 = vunpack.c.l.b16 %v961
    %v1481 = vunpack.c.l.b16 %v962
    %v1482 = vunpack.c.l.b16 %v963
    %v1483 = vunpack.c.l.b16 %v964
    %v1484 = vunpack.c.l.b16 %v965
    %v1485 = vunpack.c.l.b16 %v966
    %v1486 = vunpack.c.l.b16 %v967
    %v1487 = vunpack.c.l.b16 %v968
    %v1488 = vunpack.c.l.b16 %v969
    %v1489 = vunpack.c.l.b16 %v970
    %v1490 = vunpack.c.l.b16 %v971
    %v1491 = vunpack.c.l.b16 %v972
    %v1492 = vunpack.c.l.b16 %v973
    %v1493 = vunpack.c.l.b16 %v974
    %v1494 = vunpack.c.l.b16 %v975
    %v1495 = vunpack.c.l.b16 %v976
    %v1496 = vunpack.c.l.b16 %v977
    %v1497 = vunpack.c.l.b16 %v978
    %v1498 = vunpack.c.l.b16 %v979
    %v1499 = vunpack.c.l.b16 %v980
    %v1500 = vunpack.c.l.b16 %v981
    %v1501 = vunpack.c.l.b16 %v982
    %v1502 = vunpack.c.l.b16 %v983
    %v1503 = vunpack.c.l.b16 %v984
    %v1504 = vunpack.c.l.b16 %v985
    %v1505 = vunpack.c.l.b16 %v986
    %v1506 = vunpack.c.l.b16 %v987
    %v1507 = vunpack.c.l.b16 %v988
    %v1508 = vunpack.c.l.b16 %v989
    %v1509 = vunpack.c.l.b16 %v990
    %v1510 = vunpack.c.l.b16 %v991
    %v1511 = vunpack.c.l.b16 %v992
    %v1512 = vunpack.c.l.b16 %v993
    %v1513 = vunpack.c.l.b16 %v994
    %v1514 = vunpack.c.l.b16 %v995
    %v1515 = vunpack.c.l.b16 %v996
    %v1516 = vunpack.c.l.b16 %v997
    %v1517 = vunpack.c.l.b16 %v998
    %v1518 = vunpack.c.l.b16 %v999
    %v1519 = vunpack.c.l.b16 %v1000
    %v1520 = vunpack.c.l.b16 %v1001
    %v1521 = vunpack.c.l.b16 %v1002
    %v1522 = vunpack.c.l.b16 %v1003
    %v1523 = vunpack.c.l.b16 %v1004
    %v1524 = vunpack.c.l.b16 %v1005
    %v1525 = vunpack.c.l.b16 %v1006
    %v1526 = vunpack.c.l.b16 %v1007
    %v1527 = vunpack.c.l.b16 %v1008
    %v1528 = vunpack.c.l.b16 %v1009
    %v1529 = vunpack.c.l.b16 %v1010
    %v1530 = vunpack.c.l.b16 %v1011
    %v1531 = vunpack.c.l.b16 %v1012
    %v1532 = vunpack.c.l.b16 %v1013
    %v1533 = vunpack.c.l.b16 %v1014
    %v1534 = vunpack.c.l.b16 %v1015
    %v1535 = vunpack.c.l.b16 %v1016
    %v1536 = vunpack.c.l.b16 %v1017
    %v1537 = vunpack.c.l.b16 %v1018
    %v1538 = vunpack.c.l.b16 %v1019
    %v1539 = vunpack.c.l.b16 %v1020
    %v1540 = vunpack.c.l.b16 %v1021
    %v1541 = vunpack.c.l.b16 %v1022
    %v1542 = vunpack.c.l.b16 %v1023
    %v1543 = vunpack.c.l.b16 %v1024
    %v1544 = vunpack.c.l.b16 %v1025
    %v1545 = vunpack.c.l.b16 %v1026
    %v1546 = vunpack.c.l.b16 %v1027
    %v1547 = vunpack.c.l.b16 %v1028
    %v1548 = vunpack.c.l.b16 %v1029
    %v1549 = vunpack.c.l.b16 %v1030
    %v1550 = vunpack.c.l.b16 %v1031
    %v1551 = vunpack.c.l.b16 %v1032
    %v1552 = vunpack.c.l.b16 %v1033
    %v1553 = vunpack.c.l.b16 %v1034
    %v1554 = vunpack.c.l.b16 %v1035
    %v1555 = vunpack.c.l.b16 %v1036
    %v1556 = vunpack.c.l.b16 %v1037
    %v1557 = vunpack.c.l.b16 %v1038
    %v1558 = vunpack.c.l.b16 %v1039
    %v1559 = vunpack.c.l.b16 %v1040
    %v1560 = vunpack.c.l.b16 %v1041
    %v1561 = vunpack.c.l.b16 %v1042
    %v1562 = vunpack.c.l.b16 %v1043
    %v1563 = vunpack.c.l.b16 %v1044
    %v1564 = vunpack.c.l.b16 %v1045
    %v1565 = vunpack.c.l.b16 %v1046
    %v1566 = vunpack.c.l.b16 %v1047
    %v1567 = vunpack.c.l.b16 %v1048
    %v1568 = vunpack.c.l.b16 %v1049
    %v1569 = vunpack.c.l.b16 %v1050
    %v1570 = vunpack.c.l.b16 %v1051
    %v1571 = vunpack.c.l.b16 %v1052
    %v1572 = vunpack.c.l.b16 %v1053
    %v1573 = vunpack.c.l.b16 %v1054
    %v1574 = vunpack.c.l.b16 %v1055
    %v1575 = vunpack.c.l.b16 %v1056
    %v1576 = vunpack.c.l.b16 %v1057
    %v1577 = vunpack.c.l.b16 %v1058
    %v1578 = vunpack.c.l.b16 %v1059
    %v1579 = vunpack.c.l.b16 %v1060
    %v1580 = vunpack.c.l.b16 %v1061
    %v1581 = vunpack.c.l.b16 %v1062
    %v1582 = vunpack.c.l.b16 %v1063
    %v1583 = vunpack.c.l.b16 %v1064
    %v1584 = vunpack.c.l.b16 %v1065
    %v1585 = vunpack.c.l.b16 %v1066
    %v1586 = vunpack.c.l.b16 %v1067
    %v1587 = vunpack.c.l.b16 %v1068
    %v1588 = vunpack.c.l.b16 %v1069
    %v1589 = vunpack.c.l.b16 %v1070
    %v1590 = vunpack.c.l.b16 %v1071
    %v1591 = vunpack.c.l.b16 %v1072
    %v1592 = vunpack.c.l.b16 %v1073
    %v1593 = vunpack.c.l.b16 %v1074
    %v1594 = vunpack.c.l.b16 %v1075
    %v1595 = vunpack.c.l.b16 %v1076
    %v1596 = vunpack.c.l.b16 %v1077
    %v1597 = vunpack.c.l.b16 %v1078
    %v1598 = vunpack.c.l.b16 %v1079
    %v1599 = vunpack.c.l.b16 %v1080
    %v1600 = vunpack.c.l.b16 %v1081
    %v1601 = vunpack.c.l.b16 %v1082
    %v1602 = vunpack.c.l.b16 %v1083
    %v1603 = vunpack.c.l.b16 %v1084
    %v1604 = vunpack.c.l.b16 %v1085
    %v1605 = vunpack.c.l.b16 %v1086
    %v1606 = vunpack.c.l.b16 %v1087
    %v1607 = vunpack.c.l.b16 %v1088
    %v1608 = vunpack.c.l.b16 %v1089
    %v1609 = vunpack.c.l.b16 %v1090
    %v1610 = vunpack.c.l.b16 %v1091
    %v1611 = vunpack.c.l.b16 %v1092
    %v1612 = vunpack.c.l.b16 %v1093
    %v1613 = vunpack.c.l.b16 %v1094
    %v1614 = vunpack.c.l.b16 %v1095
    %v1615 = vunpack.c.l.b16 %v1096
    %v1616 = vunpack.c.l.b16 %v1097
    %v1617 = vunpack.c.l.b16 %v1098
    %v1618 = vunpack.c.l.b16 %v1099
    %v1619 = vunpack.c.l.b16 %v1100
    %v1620 = vunpack.c.l.b16 %v1101
    %v1621 = vunpack.c.l.b16 %v1102
    %v1622 = vunpack.c.l.b16 %v1103
    %v1623 = vunpack.c.l.b16 %v1104
    %v1624 = vunpack.c.l.b16 %v1105
    %v1625 = vunpack.c.l.b16 %v1106
    %v1626 = vunpack.c.l.b16 %v1107
    %v1627 = vunpack.c.l.b16 %v1108
    %v1628 = vunpack.c.l.b16 %v1109
    %v1629 = vunpack.c.l.b16 %v1110
    %v1630 = vunpack.c.l.b16 %v1111
    %v1631 = vunpack.c.l.b16 %v1112
    %v1632 = vunpack.c.l.b16 %v1113
    %v1633 = vunpack.c.l.b16 %v1114
    %v1634 = vunpack.c.l.b16 %v1115
    %v1635 = vunpack.c.l.b16 %v1116
    %v1636 = vunpack.c.l.b16 %v1117
    %v1637 = vunpack.c.l.b16 %v1118
    %v1638 = vunpack.c.l.b16 %v1119
    %v1639 = vunpack.c.l.b16 %v1120
    %v1640 = vunpack.c.l.b16 %v1121
    %v1641 = vunpack.c.l.b16 %v1122
    %v1642 = vunpack.c.l.b16 %v1123
    %v1643 = vunpack.c.l.b16 %v1124
    %v1644 = vunpack.c.l.b16 %v1125
    %v1645 = vunpack.c.l.b16 %v1126
    %v1646 = vunpack.c.l.b16 %v1127
    %v1647 = vunpack.c.l.b16 %v1128
    %v1648 = vunpack.c.l.b16 %v1129
    %v1649 = vunpack.c.l.b16 %v1130
    %v1650 = vunpack.c.l.b16 %v1131
    %v1651 = vunpack.c.l.b16 %v1132
    %v1652 = vunpack.c.l.b16 %v1133
    %v1653 = vunpack.c.l.b16 %v1134
    %v1654 = vunpack.c.l.b16 %v1135
    %v1655 = vunpack.c.l.b16 %v1136
    %v1656 = vunpack.c.l.b16 %v1137
    %v1657 = vunpack.c.l.b16 %v1138
    %v1658 = vunpack.c.l.b16 %v1139
    %v1659 = vunpack.c.l.b16 %v1140
    %v1660 = vunpack.c.l.b16 %v1141
    %v1661 = vunpack.c.l.b16 %v1142
    %v1662 = vunpack.c.l.b16 %v1143
    %v1663 = vunpack.c.l.b16 %v1144
    %v1664 = vunpack.c.l.b16 %v1145
    %v1665 = vunpack.c.l.b16 %v1146
    %v1666 = vunpack.c.l.b16 %v1147
    %v1667 = vunpack.c.l.b16 %v1148
    %v1668 = vunpack.c.l.b16 %v1149
    %v1669 = vunpack.c.l.b16 %v1150
    %v1670 = vunpack.c.l.b16 %v1151
    %v1671 = vunpack.c.l.b16 %v1152
    %v1672 = vunpack.c.l.b16 %v1153
    %v1673 = vunpack.c.l.b16 %v1154
    %v1674 = vunpack.c.l.b16 %v1155
    %v1675 = vunpack.c.l.b16 %v1156
    %v1676 = vunpack.c.l.b16 %v1157
    %v1677 = vunpack.c.l.b16 %v1158
    %v1678 = vunpack.c.l.b16 %v1159
    %v1679 = vunpack.c.l.b16 %v1160
    %v1680 = vunpack.c.l.b16 %v1161
    %v1681 = vunpack.c.l.b16 %v1162
    %v1682 = vunpack.c.l.b16 %v1163
    %v1683 = vunpack.c.l.b16 %v1164
    %v1684 = vunpack.c.l.b16 %v1165
    %v1685 = vunpack.c.l.b16 %v1166
    %v1686 = vunpack.c.l.b16 %v1167
    %v1687 = vunpack.c.l.b16 %v1168
    %v1688 = vunpack.c.l.b16 %v1169
    %v1689 = vpack.c.b16 %v1434, %v1433
    %v1690 = vpack.c.b16 %v1436, %v1435
    %v1691 = vpack.c.b16 %v1438, %v1437
    %v1692 = vpack.c.b16 %v1440, %v1439
    %v1693 = vpack.c.b16 %v1442, %v1441
    %v1694 = vpack.c.b16 %v1444, %v1443
    %v1695 = vpack.c.b16 %v1446, %v1445
    %v1696 = vpack.c.b16 %v1448, %v1447
    %v1697 = vpack.c.b16 %v1450, %v1449
    %v1698 = vpack.c.b16 %v1452, %v1451
    %v1699 = vpack.c.b16 %v1454, %v1453
    %v1700 = vpack.c.b16 %v1456, %v1455
    %v1701 = vpack.c.b16 %v1458, %v1457
    %v1702 = vpack.c.b16 %v1460, %v1459
    %v1703 = vpack.c.b16 %v1462, %v1461
    %v1704 = vpack.c.b16 %v1464, %v1463
    %v1705 = vpack.c.b16 %v1466, %v1465
    %v1706 = vpack.c.b16 %v1468, %v1467
    %v1707 = vpack.c.b16 %v1470, %v1469
    %v1708 = vpack.c.b16 %v1472, %v1471
    %v1709 = vpack.c.b16 %v1474, %v1473
    %v1710 = vpack.c.b16 %v1476, %v1475
    %v1711 = vpack.c.b16 %v1478, %v1477
    %v1712 = vpack.c.b16 %v1480, %v1479
    %v1713 = vpack.c.b16 %v1482, %v1481
    %v1714 = vpack.c.b16 %v1484, %v1483
    %v1715 = vpack.c.b16 %v1486, %v1485
    %v1716 = vpack.c.b16 %v1488, %v1487
    %v1717 = vpack.c.b16 %v1490, %v1489
    %v1718 = vpack.c.b16 %v1492, %v1491
    %v1719 = vpack.c.b16 %v1494, %v1493
    %v1720 = vpack.c.b16 %v1496, %v1495
    %v1721 = vpack.c.b16 %v1498, %v1497
    %v1722 = vpack.c.b16 %v1500, %v1499
    %v1723 = vpack.c.b16 %v1502, %v1501
    %v1724 = vpack.c.b16 %v1504, %v1503
    %v1725 = vpack.c.b16 %v1506, %v1505
    %v1726 = vpack.c.b16 %v1508, %v1507
    %v1727 = vpack.c.b16 %v1510, %v1509
    %v1728 = vpack.c.b16 %v1512, %v1511
    %v1729 = vpack.c.b16 %v1514, %v1513
    %v1730 = vpack.c.b16 %v1516, %v1515
    %v1731 = vpack.c.b16 %v1518, %v1517
    %v1732 = vpack.c.b16 %v1520, %v1519
    %v1733 = vpack.c.b16 %v1522, %v1521
    %v1734 = vpack.c.b16 %v1524, %v1523
    %v1735 = vpack.c.b16 %v1526, %v1525
    %v1736 = vpack.c.b16 %v1528, %v1527
    %v1737 = vpack.c.b16 %v1530, %v1529
    %v1738 = vpack.c.b16 %v1532, %v1531
    %v1739 = vpack.c.b16 %v1534, %v1533
    %v1740 = vpack.c.b16 %v1536, %v1535
    %v1741 = vpack.c.b16 %v1538, %v1537
    %v1742 = vpack.c.b16 %v1540, %v1539
    %v1743 = vpack.c.b16 %v1542, %v1541
    %v1744 = vpack.c.b16 %v1544, %v1543
    %v1745 = vpack.c.b16 %v1546, %v1545
    %v1746 = vpack.c.b16 %v1548, %v1547
    %v1747 = vpack.c.b16 %v1550, %v1549
    %v1748 = vpack.c.b16 %v1552, %v1551
    %v1749 = vpack.c.b16 %v1554, %v1553
    %v1750 = vpack.c.b16 %v1556, %v1555
    %v1751 = vpack.c.b16 %v1558, %v1557
    %v1752 = vpack.c.b16 %v1560, %v1559
    %v1753 = vpack.c.b16 %v1562, %v1561
    %v1754 = vpack.c.b16 %v1564, %v1563
    %v1755 = vpack.c.b16 %v1566, %v1565
    %v1756 = vpack.c.b16 %v1568, %v1567
    %v1757 = vpack.c.b16 %v1570, %v1569
    %v1758 = vpack.c.b16 %v1572, %v1571
    %v1759 = vpack.c.b16 %v1574, %v1573
    %v1760 = vpack.c.b16 %v1576, %v1575
    %v1761 = vpack.c.b16 %v1578, %v1577
    %v1762 = vpack.c.b16 %v1580, %v1579
    %v1763 = vpack.c.b16 %v1582, %v1581
    %v1764 = vpack.c.b16 %v1584, %v1583
    %v1765 = vpack.c.b16 %v1586, %v1585
    %v1766 = vpack.c.b16 %v1588, %v1587
    %v1767 = vpack.c.b16 %v1590, %v1589
    %v1768 = vpack.c.b16 %v1592, %v1591
    %v1769 = vpack.c.b16 %v1594, %v1593
    %v1770 = vpack.c.b16 %v1596, %v1595
    %v1771 = vpack.c.b16 %v1598, %v1597
    %v1772 = vpack.c.b16 %v1600, %v1599
    %v1773 = vpack.c.b16 %v1602, %v1601
    %v1774 = vpack.c.b16 %v1604, %v1603
    %v1775 = vpack.c.b16 %v1606, %v1605
    %v1776 = vpack.c.b16 %v1608, %v1607
    %v1777 = vpack.c.b16 %v1610, %v1609
    %v1778 = vpack.c.b16 %v1612, %v1611
    %v1779 = vpack.c.b16 %v1614, %v1613
    %v1780 = vpack.c.b16 %v1616, %v1615
    %v1781 = vpack.c.b16 %v1618, %v1617
    %v1782 = vpack.c.b16 %v1620, %v1619
    %v1783 = vpack.c.b16 %v1622, %v1621
    %v1784 = vpack.c.b16 %v1624, %v1623
    %v1785 = vpack.c.b16 %v1626, %v1625
    %v1786 = vpack.c.b16 %v1628, %v1627
    %v1787 = vpack.c.b16 %v1630, %v1629
    %v1788 = vpack.c.b16 %v1632, %v1631
    %v1789 = vpack.c.b16 %v1634, %v1633
    %v1790 = vpack.c.b16 %v1636, %v1635
    %v1791 = vpack.c.b16 %v1638, %v1637
    %v1792 = vpack.c.b16 %v1640, %v1639
    %v1793 = vpack.c.b16 %v1642, %v1641
    %v1794 = vpack.c.b16 %v1644, %v1643
    %v1795 = vpack.c.b16 %v1646, %v1645
    %v1796 = vpack.c.b16 %v1648, %v1647
    %v1797 = vpack.c.b16 %v1650, %v1649
    %v1798 = vpack.c.b16 %v1652, %v1651
    %v1799 = vpack.c.b16 %v1654, %v1653
    %v1800 = vpack.c.b16 %v1656, %v1655
    %v1801 = vpack.c.b16 %v1658, %v1657
    %v1802 = vpack.c.b16 %v1660, %v1659
    %v1803 = vpack.c.b16 %v1662, %v1661
    %v1804 = vpack.c.b16 %v1664, %v1663
    %v1805 = vpack.c.b16 %v1666, %v1665
    %v1806 = vpack.c.b16 %v1668, %v1667
    %v1807 = vpack.c.b16 %v1670, %v1669
    %v1808 = vpack.c.b16 %v1672, %v1671
    %v1809 = vpack.c.b16 %v1674, %v1673
    %v1810 = vpack.c.b16 %v1676, %v1675
    %v1811 = vpack.c.b16 %v1678, %v1677
    %v1812 = vpack.c.b16 %v1680, %v1679
    %v1813 = vpack.c.b16 %v1682, %v1681
    %v1814 = vpack.c.b16 %v1684, %v1683
    %v1815 = vpack.c.b16 %v1686, %v1685
    %v1816 = vpack.c.b16 %v1688, %v1687
    %1945 = vmatprep.subr.bf16.mxu0 0
    %1946 = vmatpush1.bf16.msra.mxu0 %v1696
    %1947 = vmatprep.subr.bf16.mxu0 0
    %1948 = vmatpush1.bf16.msra.mxu0 %v1695
    %1949 = vmatprep.subr.bf16.mxu0 0
    %1950 = vmatpush1.bf16.msra.mxu0 %v1694
    %1951 = vmatprep.subr.bf16.mxu0 0
    %1952 = vmatpush1.bf16.msra.mxu0 %v1693
    %1953 = vmatprep.subr.bf16.mxu0 0
    %1954 = vmatpush1.bf16.msra.mxu0 %v1692
    %1955 = vmatprep.subr.bf16.mxu0 0
    %1956 = vmatpush1.bf16.msra.mxu0 %v1691
    %1957 = vmatprep.subr.bf16.mxu0 0
    %1958 = vmatpush1.bf16.msra.mxu0 %v1690
    %1959 = vmatprep.subr.bf16.mxu0 0
    %1960 = vmatpush1.bf16.msra.mxu0 %v1689
    %1961 = vmatprep.subr.bf16.mxu0 0
    %1962 = vmatpush2.bf16.msra.mxu0 %v1704
    %1963 = vmatprep.subr.bf16.mxu0 0
    %1964 = vmatpush2.bf16.msra.mxu0 %v1703
    %1965 = vmatprep.subr.bf16.mxu0 0
    %1966 = vmatpush2.bf16.msra.mxu0 %v1702
    %1967 = vmatprep.subr.bf16.mxu0 0
    %1968 = vmatpush2.bf16.msra.mxu0 %v1701
    %1969 = vmatprep.subr.bf16.mxu0 0
    %1970 = vmatpush2.bf16.msra.mxu0 %v1700
    %1971 = vmatprep.subr.bf16.mxu0 0
    %1972 = vmatpush2.bf16.msra.mxu0 %v1699
    %1973 = vmatprep.subr.bf16.mxu0 0
    %1974 = vmatpush2.bf16.msra.mxu0 %v1698
    %1975 = vmatprep.subr.bf16.mxu0 0
    %1976 = vmatpush2.bf16.msra.mxu0 %v1697
    %1977 = vmatprep.mubr.bf16.mxu0 %v899
    %1978 = vmatmul.mubr.bf16.gmra.mxu0 %v898
    %v1979 = vpop.f32.mrf.mxu0
    %v1980 = vadd.f32 %v1175, %v1979
    %v1981 = vpop.f32.mrf.mxu0
    %v1982 = vpop.f32.mrf.mxu0
    %v1983 = vpop.f32.mrf.mxu0
    %1984 = vdwg.mxu0
    %1985 = vmatprep.subr.bf16.mxu0 0
    %1986 = vmatpush1.bf16.msra.mxu0 %v1712
    %1987 = vmatprep.subr.bf16.mxu0 0
    %1988 = vmatpush1.bf16.msra.mxu0 %v1711
    %1989 = vmatprep.subr.bf16.mxu0 0
    %1990 = vmatpush1.bf16.msra.mxu0 %v1710
    %1991 = vmatprep.subr.bf16.mxu0 0
    %1992 = vmatpush1.bf16.msra.mxu0 %v1709
    %1993 = vmatprep.subr.bf16.mxu0 0
    %1994 = vmatpush1.bf16.msra.mxu0 %v1708
    %1995 = vmatprep.subr.bf16.mxu0 0
    %1996 = vmatpush1.bf16.msra.mxu0 %v1707
    %1997 = vmatprep.subr.bf16.mxu0 0
    %1998 = vmatpush1.bf16.msra.mxu0 %v1706
    %1999 = vmatprep.subr.bf16.mxu0 0
    %2000 = vmatpush1.bf16.msra.mxu0 %v1705
    %2001 = vmatprep.subr.bf16.mxu0 0
    %2002 = vmatpush2.bf16.msra.mxu0 %v1720
    %2003 = vmatprep.subr.bf16.mxu0 0
    %2004 = vmatpush2.bf16.msra.mxu0 %v1719
    %2005 = vmatprep.subr.bf16.mxu0 0
    %2006 = vmatpush2.bf16.msra.mxu0 %v1718
    %2007 = vmatprep.subr.bf16.mxu0 0
    %2008 = vmatpush2.bf16.msra.mxu0 %v1717
    %2009 = vmatprep.subr.bf16.mxu0 0
    %2010 = vmatpush2.bf16.msra.mxu0 %v1716
    %2011 = vmatprep.subr.bf16.mxu0 0
    %2012 = vmatpush2.bf16.msra.mxu0 %v1715
    %2013 = vmatprep.subr.bf16.mxu0 0
    %2014 = vmatpush2.bf16.msra.mxu0 %v1714
    %2015 = vmatprep.subr.bf16.mxu0 0
    %2016 = vmatpush2.bf16.msra.mxu0 %v1713
    %2017 = vmatprep.mubr.bf16.mxu0 %v901
    %2018 = vmatmul.mubr.bf16.gmra.mxu0 %v900
    %v2019 = vpop.f32.mrf.mxu0
    %v2020 = vadd.f32 %v1980, %v2019
    %v2021 = vpop.f32.mrf.mxu0
    %v2022 = vpop.f32.mrf.mxu0
    %v2023 = vpop.f32.mrf.mxu0
    %2024 = vdwg.mxu0
    %2025 = vmatprep.subr.bf16.mxu0 0
    %2026 = vmatpush1.bf16.msra.mxu0 %v1728
    %2027 = vmatprep.subr.bf16.mxu0 0
    %2028 = vmatpush1.bf16.msra.mxu0 %v1727
    %2029 = vmatprep.subr.bf16.mxu0 0
    %2030 = vmatpush1.bf16.msra.mxu0 %v1726
    %2031 = vmatprep.subr.bf16.mxu0 0
    %2032 = vmatpush1.bf16.msra.mxu0 %v1725
    %2033 = vmatprep.subr.bf16.mxu0 0
    %2034 = vmatpush1.bf16.msra.mxu0 %v1724
    %2035 = vmatprep.subr.bf16.mxu0 0
    %2036 = vmatpush1.bf16.msra.mxu0 %v1723
    %2037 = vmatprep.subr.bf16.mxu0 0
    %2038 = vmatpush1.bf16.msra.mxu0 %v1722
    %2039 = vmatprep.subr.bf16.mxu0 0
    %2040 = vmatpush1.bf16.msra.mxu0 %v1721
    %2041 = vmatprep.subr.bf16.mxu0 0
    %2042 = vmatpush2.bf16.msra.mxu0 %v1736
    %2043 = vmatprep.subr.bf16.mxu0 0
    %2044 = vmatpush2.bf16.msra.mxu0 %v1735
    %2045 = vmatprep.subr.bf16.mxu0 0
    %2046 = vmatpush2.bf16.msra.mxu0 %v1734
    %2047 = vmatprep.subr.bf16.mxu0 0
    %2048 = vmatpush2.bf16.msra.mxu0 %v1733
    %2049 = vmatprep.subr.bf16.mxu0 0
    %2050 = vmatpush2.bf16.msra.mxu0 %v1732
    %2051 = vmatprep.subr.bf16.mxu0 0
    %2052 = vmatpush2.bf16.msra.mxu0 %v1731
    %2053 = vmatprep.subr.bf16.mxu0 0
    %2054 = vmatpush2.bf16.msra.mxu0 %v1730
    %2055 = vmatprep.subr.bf16.mxu0 0
    %2056 = vmatpush2.bf16.msra.mxu0 %v1729
    %2057 = vmatprep.mubr.bf16.mxu0 %v903
    %2058 = vmatmul.mubr.bf16.gmra.mxu0 %v902
    %v2059 = vpop.f32.mrf.mxu0
    %v2060 = vadd.f32 %v2020, %v2059
    %v2061 = vpop.f32.mrf.mxu0
    %v2062 = vpop.f32.mrf.mxu0
    %v2063 = vpop.f32.mrf.mxu0
    %2064 = vdwg.mxu0
    %2065 = vmatprep.subr.bf16.mxu0 0
    %2066 = vmatpush1.bf16.msra.mxu0 %v1744
    %2067 = vmatprep.subr.bf16.mxu0 0
    %2068 = vmatpush1.bf16.msra.mxu0 %v1743
    %2069 = vmatprep.subr.bf16.mxu0 0
    %2070 = vmatpush1.bf16.msra.mxu0 %v1742
    %2071 = vmatprep.subr.bf16.mxu0 0
    %2072 = vmatpush1.bf16.msra.mxu0 %v1741
    %2073 = vmatprep.subr.bf16.mxu0 0
    %2074 = vmatpush1.bf16.msra.mxu0 %v1740
    %2075 = vmatprep.subr.bf16.mxu0 0
    %2076 = vmatpush1.bf16.msra.mxu0 %v1739
    %2077 = vmatprep.subr.bf16.mxu0 0
    %2078 = vmatpush1.bf16.msra.mxu0 %v1738
    %2079 = vmatprep.subr.bf16.mxu0 0
    %2080 = vmatpush1.bf16.msra.mxu0 %v1737
    %2081 = vmatprep.subr.bf16.mxu0 0
    %2082 = vmatpush2.bf16.msra.mxu0 %v1752
    %2083 = vmatprep.subr.bf16.mxu0 0
    %2084 = vmatpush2.bf16.msra.mxu0 %v1751
    %2085 = vmatprep.subr.bf16.mxu0 0
    %2086 = vmatpush2.bf16.msra.mxu0 %v1750
    %2087 = vmatprep.subr.bf16.mxu0 0
    %2088 = vmatpush2.bf16.msra.mxu0 %v1749
    %2089 = vmatprep.subr.bf16.mxu0 0
    %2090 = vmatpush2.bf16.msra.mxu0 %v1748
    %2091 = vmatprep.subr.bf16.mxu0 0
    %2092 = vmatpush2.bf16.msra.mxu0 %v1747
    %2093 = vmatprep.subr.bf16.mxu0 0
    %2094 = vmatpush2.bf16.msra.mxu0 %v1746
    %2095 = vmatprep.subr.bf16.mxu0 0
    %2096 = vmatpush2.bf16.msra.mxu0 %v1745
    %2097 = vmatprep.mubr.bf16.mxu0 %v905
    %2098 = vmatmul.mubr.bf16.gmra.mxu0 %v904
    %v2099 = vpop.f32.mrf.mxu0
    %v2100 = vadd.f32 %v2060, %v2099
    %v2101 = vpop.f32.mrf.mxu0
    %v2102 = vpop.f32.mrf.mxu0
    %v2103 = vpop.f32.mrf.mxu0
    %2104 = vdwg.mxu0
    %2105 = vmatprep.subr.bf16.mxu0 0
    %2106 = vmatpush1.bf16.msra.mxu0 %v1760
    %2107 = vmatprep.subr.bf16.mxu0 0
    %2108 = vmatpush1.bf16.msra.mxu0 %v1759
    %2109 = vmatprep.subr.bf16.mxu0 0
    %2110 = vmatpush1.bf16.msra.mxu0 %v1758
    %2111 = vmatprep.subr.bf16.mxu0 0
    %2112 = vmatpush1.bf16.msra.mxu0 %v1757
    %2113 = vmatprep.subr.bf16.mxu0 0
    %2114 = vmatpush1.bf16.msra.mxu0 %v1756
    %2115 = vmatprep.subr.bf16.mxu0 0
    %2116 = vmatpush1.bf16.msra.mxu0 %v1755
    %2117 = vmatprep.subr.bf16.mxu0 0
    %2118 = vmatpush1.bf16.msra.mxu0 %v1754
    %2119 = vmatprep.subr.bf16.mxu0 0
    %2120 = vmatpush1.bf16.msra.mxu0 %v1753
    %2121 = vmatprep.subr.bf16.mxu0 0
    %2122 = vmatpush2.bf16.msra.mxu0 %v1768
    %2123 = vmatprep.subr.bf16.mxu0 0
    %2124 = vmatpush2.bf16.msra.mxu0 %v1767
    %2125 = vmatprep.subr.bf16.mxu0 0
    %2126 = vmatpush2.bf16.msra.mxu0 %v1766
    %2127 = vmatprep.subr.bf16.mxu0 0
    %2128 = vmatpush2.bf16.msra.mxu0 %v1765
    %2129 = vmatprep.subr.bf16.mxu0 0
    %2130 = vmatpush2.bf16.msra.mxu0 %v1764
    %2131 = vmatprep.subr.bf16.mxu0 0
    %2132 = vmatpush2.bf16.msra.mxu0 %v1763
    %2133 = vmatprep.subr.bf16.mxu0 0
    %2134 = vmatpush2.bf16.msra.mxu0 %v1762
    %2135 = vmatprep.subr.bf16.mxu0 0
    %2136 = vmatpush2.bf16.msra.mxu0 %v1761
    %2137 = vmatprep.mubr.bf16.mxu0 %v907
    %2138 = vmatmul.mubr.bf16.gmra.mxu0 %v906
    %v2139 = vpop.f32.mrf.mxu0
    %v2140 = vadd.f32 %v2100, %v2139
    %v2141 = vpop.f32.mrf.mxu0
    %v2142 = vpop.f32.mrf.mxu0
    %v2143 = vpop.f32.mrf.mxu0
    %2144 = vdwg.mxu0
    %2145 = vmatprep.subr.bf16.mxu0 0
    %2146 = vmatpush1.bf16.msra.mxu0 %v1776
    %2147 = vmatprep.subr.bf16.mxu0 0
    %2148 = vmatpush1.bf16.msra.mxu0 %v1775
    %2149 = vmatprep.subr.bf16.mxu0 0
    %2150 = vmatpush1.bf16.msra.mxu0 %v1774
    %2151 = vmatprep.subr.bf16.mxu0 0
    %2152 = vmatpush1.bf16.msra.mxu0 %v1773
    %2153 = vmatprep.subr.bf16.mxu0 0
    %2154 = vmatpush1.bf16.msra.mxu0 %v1772
    %2155 = vmatprep.subr.bf16.mxu0 0
    %2156 = vmatpush1.bf16.msra.mxu0 %v1771
    %2157 = vmatprep.subr.bf16.mxu0 0
    %2158 = vmatpush1.bf16.msra.mxu0 %v1770
    %2159 = vmatprep.subr.bf16.mxu0 0
    %2160 = vmatpush1.bf16.msra.mxu0 %v1769
    %2161 = vmatprep.subr.bf16.mxu0 0
    %2162 = vmatpush2.bf16.msra.mxu0 %v1784
    %2163 = vmatprep.subr.bf16.mxu0 0
    %2164 = vmatpush2.bf16.msra.mxu0 %v1783
    %2165 = vmatprep.subr.bf16.mxu0 0
    %2166 = vmatpush2.bf16.msra.mxu0 %v1782
    %2167 = vmatprep.subr.bf16.mxu0 0
    %2168 = vmatpush2.bf16.msra.mxu0 %v1781
    %2169 = vmatprep.subr.bf16.mxu0 0
    %2170 = vmatpush2.bf16.msra.mxu0 %v1780
    %2171 = vmatprep.subr.bf16.mxu0 0
    %2172 = vmatpush2.bf16.msra.mxu0 %v1779
    %2173 = vmatprep.subr.bf16.mxu0 0
    %2174 = vmatpush2.bf16.msra.mxu0 %v1778
    %2175 = vmatprep.subr.bf16.mxu0 0
    %2176 = vmatpush2.bf16.msra.mxu0 %v1777
    %2177 = vmatprep.mubr.bf16.mxu0 %v909
    %2178 = vmatmul.mubr.bf16.gmra.mxu0 %v908
    %v2179 = vpop.f32.mrf.mxu0
    %v2180 = vadd.f32 %v2140, %v2179
    %v2181 = vpop.f32.mrf.mxu0
    %v2182 = vpop.f32.mrf.mxu0
    %v2183 = vpop.f32.mrf.mxu0
    %2184 = vdwg.mxu0
    %2185 = vmatprep.subr.bf16.mxu0 0
    %2186 = vmatpush1.bf16.msra.mxu0 %v1792
    %2187 = vmatprep.subr.bf16.mxu0 0
    %2188 = vmatpush1.bf16.msra.mxu0 %v1791
    %2189 = vmatprep.subr.bf16.mxu0 0
    %2190 = vmatpush1.bf16.msra.mxu0 %v1790
    %2191 = vmatprep.subr.bf16.mxu0 0
    %2192 = vmatpush1.bf16.msra.mxu0 %v1789
    %2193 = vmatprep.subr.bf16.mxu0 0
    %2194 = vmatpush1.bf16.msra.mxu0 %v1788
    %2195 = vmatprep.subr.bf16.mxu0 0
    %2196 = vmatpush1.bf16.msra.mxu0 %v1787
    %2197 = vmatprep.subr.bf16.mxu0 0
    %2198 = vmatpush1.bf16.msra.mxu0 %v1786
    %2199 = vmatprep.subr.bf16.mxu0 0
    %2200 = vmatpush1.bf16.msra.mxu0 %v1785
    %2201 = vmatprep.subr.bf16.mxu0 0
    %2202 = vmatpush2.bf16.msra.mxu0 %v1800
    %2203 = vmatprep.subr.bf16.mxu0 0
    %2204 = vmatpush2.bf16.msra.mxu0 %v1799
    %2205 = vmatprep.subr.bf16.mxu0 0
    %2206 = vmatpush2.bf16.msra.mxu0 %v1798
    %2207 = vmatprep.subr.bf16.mxu0 0
    %2208 = vmatpush2.bf16.msra.mxu0 %v1797
    %2209 = vmatprep.subr.bf16.mxu0 0
    %2210 = vmatpush2.bf16.msra.mxu0 %v1796
    %2211 = vmatprep.subr.bf16.mxu0 0
    %2212 = vmatpush2.bf16.msra.mxu0 %v1795
    %2213 = vmatprep.subr.bf16.mxu0 0
    %2214 = vmatpush2.bf16.msra.mxu0 %v1794
    %2215 = vmatprep.subr.bf16.mxu0 0
    %2216 = vmatpush2.bf16.msra.mxu0 %v1793
    %2217 = vmatprep.mubr.bf16.mxu0 %v911
    %2218 = vmatmul.mubr.bf16.gmra.mxu0 %v910
    %v2219 = vpop.f32.mrf.mxu0
    %v2220 = vadd.f32 %v2180, %v2219
    %v2221 = vpop.f32.mrf.mxu0
    %v2222 = vpop.f32.mrf.mxu0
    %v2223 = vpop.f32.mrf.mxu0
    %2224 = vdwg.mxu0
    %2225 = vmatprep.subr.bf16.mxu0 0
    %2226 = vmatpush1.bf16.msra.mxu0 %v1808
    %2227 = vmatprep.subr.bf16.mxu0 0
    %2228 = vmatpush1.bf16.msra.mxu0 %v1807
    %2229 = vmatprep.subr.bf16.mxu0 0
    %2230 = vmatpush1.bf16.msra.mxu0 %v1806
    %2231 = vmatprep.subr.bf16.mxu0 0
    %2232 = vmatpush1.bf16.msra.mxu0 %v1805
    %2233 = vmatprep.subr.bf16.mxu0 0
    %2234 = vmatpush1.bf16.msra.mxu0 %v1804
    %2235 = vmatprep.subr.bf16.mxu0 0
    %2236 = vmatpush1.bf16.msra.mxu0 %v1803
    %2237 = vmatprep.subr.bf16.mxu0 0
    %2238 = vmatpush1.bf16.msra.mxu0 %v1802
    %2239 = vmatprep.subr.bf16.mxu0 0
    %2240 = vmatpush1.bf16.msra.mxu0 %v1801
    %2241 = vmatprep.subr.bf16.mxu0 0
    %2242 = vmatpush2.bf16.msra.mxu0 %v1816
    %2243 = vmatprep.subr.bf16.mxu0 0
    %2244 = vmatpush2.bf16.msra.mxu0 %v1815
    %2245 = vmatprep.subr.bf16.mxu0 0
    %2246 = vmatpush2.bf16.msra.mxu0 %v1814
    %2247 = vmatprep.subr.bf16.mxu0 0
    %2248 = vmatpush2.bf16.msra.mxu0 %v1813
    %2249 = vmatprep.subr.bf16.mxu0 0
    %2250 = vmatpush2.bf16.msra.mxu0 %v1812
    %2251 = vmatprep.subr.bf16.mxu0 0
    %2252 = vmatpush2.bf16.msra.mxu0 %v1811
    %2253 = vmatprep.subr.bf16.mxu0 0
    %2254 = vmatpush2.bf16.msra.mxu0 %v1810
    %2255 = vmatprep.subr.bf16.mxu0 0
    %2256 = vmatpush2.bf16.msra.mxu0 %v1809
    %2257 = vmatprep.mubr.bf16.mxu0 %v913
    %2258 = vmatmul.mubr.bf16.gmra.mxu0 %v912
    %v2259 = vpop.f32.mrf.mxu0
    %v2260 = vadd.f32 %v2220, %v2259
    %v2261 = vpop.f32.mrf.mxu0
    %v2262 = vpop.f32.mrf.mxu0
    %v2263 = vpop.f32.mrf.mxu0
    %2264 = vdwg.mxu0
    %v2265 = vadd.f32 %v273, %v2260
    %v2266 = vld [vmem:[%s13] sm:$0x1]
    %v2267 = vld [vmem:[%s14] sm:$0x1]
    %v2268 = vsel %vm245, %v2265, 0.0
    %2269 = vadd.xlane.f32.xlu0 %v2268
    %v2270 = vpop.xlane.xlu0 %2269
    %v2271 = vmul.f32 %v2270, %v249
    %v2272 = vsub.f32 %v2265, %v2271
    %v2273 = vmul.f32 %v2272, %v2272
    %v2274 = vsel %vm245, %v2273, 0.0
    %2275 = vadd.xlane.f32.xlu0 %v2274
    %v2276 = vpop.xlane.xlu0 %2275
    %v2277 = vmul.f32 %v2276, %v249
    %v2278 = vadd.f32 %v2277, 1e-05
    %v2279 = vrsqrt.pop %v2278
    %v2280 = vmul.f32 %v2272, %v2279
    %v2282 = vlaneseq
    %v2283 = vshrl.u32 %v2282, 7
    %v2284 = vsub.s32 0, %v2283
    %v2285 = vrot.slane %v2266, %v2284
    %v2287 = vmul.f32 %v2280, %v2285
    %v2289 = vlaneseq
    %v2290 = vshrl.u32 %v2289, 7
    %v2291 = vsub.s32 0, %v2290
    %v2292 = vrot.slane %v2267, %v2291
    %v2294 = vadd.f32 %v2287, %v2292
    %v2295 = vpack.c.bf16 %v2294, %v2294
    %s2296 = scalar_lea.vmem %s5, 16
    %v2297 = vld [vmem:[%s2296] sm:$0xf]
    %v2298 = vld [vmem:[%s2296 + $0x4] sm:$0xf]
    %v2299 = vld [vmem:[%s2296 + $0x8] sm:$0xf]
    %v2300 = vld [vmem:[%s2296 + $0xc] sm:$0xf]
    %s2301 = scalar_lea.vmem %s6, 1
    %v2302 = vld [vmem:[%s2301] sm:$0x1]
    %v2304 = vlaneseq
    %v2305 = vshrl.u32 %v2304, 7
    %v2306 = vsub.s32 0, %v2305
    %v2307 = vrot.slane %v2302, %v2306
    %v2313 = vunpack.c.l.b16 %v2297
    %v2314 = vunpack.c.l.b16 %v2298
    %v2315 = vunpack.c.l.b16 %v2299
    %v2316 = vunpack.c.l.b16 %v2300
    %v2317 = vpack.c.b16 %v2314, %v2313
    %v2318 = vpack.c.b16 %v2316, %v2315
    %v2322 = vsel %vm198, %v2295, 0
    %2324 = vmatprep.subr.bf16.mxu0 0
    %2325 = vmatpush1.bf16.msra.mxu0 0
    %2326 = vmatprep.subr.bf16.mxu0 0
    %2327 = vmatpush1.bf16.msra.mxu0 0
    %2328 = vmatprep.subr.bf16.mxu0 0
    %2329 = vmatpush1.bf16.msra.mxu0 0
    %2330 = vmatprep.subr.bf16.mxu0 0
    %2331 = vmatpush1.bf16.msra.mxu0 0
    %2332 = vmatprep.subr.bf16.mxu0 0
    %2333 = vmatpush1.bf16.msra.mxu0 0
    %2334 = vmatprep.subr.bf16.mxu0 0
    %2335 = vmatpush1.bf16.msra.mxu0 0
    %2336 = vmatprep.subr.bf16.mxu0 0
    %2337 = vmatpush1.bf16.msra.mxu0 %v2318
    %2338 = vmatprep.subr.bf16.mxu0 0
    %2339 = vmatpush1.bf16.msra.mxu0 %v2317
    %2340 = vmatprep.subr.bf16.mxu0 0
    %2341 = vmatpush2.bf16.msra.mxu0 0
    %2342 = vmatprep.subr.bf16.mxu0 0
    %2343 = vmatpush2.bf16.msra.mxu0 0
    %2344 = vmatprep.subr.bf16.mxu0 0
    %2345 = vmatpush2.bf16.msra.mxu0 0
    %2346 = vmatprep.subr.bf16.mxu0 0
    %2347 = vmatpush2.bf16.msra.mxu0 0
    %2348 = vmatprep.subr.bf16.mxu0 0
    %2349 = vmatpush2.bf16.msra.mxu0 0
    %2350 = vmatprep.subr.bf16.mxu0 0
    %2351 = vmatpush2.bf16.msra.mxu0 0
    %2352 = vmatprep.subr.bf16.mxu0 0
    %2353 = vmatpush2.bf16.msra.mxu0 0
    %2354 = vmatprep.subr.bf16.mxu0 0
    %2355 = vmatpush2.bf16.msra.mxu0 0
    %2356 = vmatprep.mubr.bf16.mxu0 0
    %2357 = vmatmul.mubr.bf16.gmra.mxu0 %v2322
    %v2358 = vpop.f32.mrf.mxu0
    %v2359 = vadd.f32 %v2307, %v2358
    %v2360 = vpop.f32.mrf.mxu0
    %v2361 = vpop.f32.mrf.mxu0
    %v2362 = vpop.f32.mrf.mxu0
    %2363 = vdwg.mxu0
    %v2364 = vadd.f32 %v2294, %v2359
    %s2365 = scalar_lea.vmem %s7, 1
    %v2366 = vld [vmem:[%s2365] sm:$0x1]
    %s2367 = scalar_lea.vmem %s8, 1
    %v2368 = vld [vmem:[%s2367] sm:$0x1]
    %v2369 = vsel %vm245, %v2364, 0.0
    %2370 = vadd.xlane.f32.xlu0 %v2369
    %v2371 = vpop.xlane.xlu0 %2370
    %v2372 = vmul.f32 %v2371, %v249
    %v2373 = vsub.f32 %v2364, %v2372
    %v2374 = vmul.f32 %v2373, %v2373
    %v2375 = vsel %vm245, %v2374, 0.0
    %2376 = vadd.xlane.f32.xlu0 %v2375
    %v2377 = vpop.xlane.xlu0 %2376
    %v2378 = vmul.f32 %v2377, %v249
    %v2379 = vadd.f32 %v2378, 1e-05
    %v2380 = vrsqrt.pop %v2379
    %v2381 = vmul.f32 %v2373, %v2380
    %v2383 = vlaneseq
    %v2384 = vshrl.u32 %v2383, 7
    %v2385 = vsub.s32 0, %v2384
    %v2386 = vrot.slane %v2366, %v2385
    %v2388 = vmul.f32 %v2381, %v2386
    %v2390 = vlaneseq
    %v2391 = vshrl.u32 %v2390, 7
    %v2392 = vsub.s32 0, %v2391
    %v2393 = vrot.slane %v2368, %v2392
    %v2395 = vadd.f32 %v2388, %v2393
    %v2396 = vpack.c.bf16 %v2395, %v2395
    %s2397 = scalar_lea.vmem %s9, 256
    %v2398 = vld [vmem:[%s2397] sm:$0xff]
    %v2399 = vld [vmem:[%s2397 + $0x8] sm:$0xff]
    %v2400 = vld [vmem:[%s2397 + $0x10] sm:$0xff]
    %v2401 = vld [vmem:[%s2397 + $0x18] sm:$0xff]
    %v2402 = vld [vmem:[%s2397 + $0x20] sm:$0xff]
    %v2403 = vld [vmem:[%s2397 + $0x28] sm:$0xff]
    %v2404 = vld [vmem:[%s2397 + $0x30] sm:$0xff]
    %v2405 = vld [vmem:[%s2397 + $0x38] sm:$0xff]
    %v2406 = vld [vmem:[%s2397 + $0x40] sm:$0xff]
    %v2407 = vld [vmem:[%s2397 + $0x48] sm:$0xff]
    %v2408 = vld [vmem:[%s2397 + $0x50] sm:$0xff]
    %v2409 = vld [vmem:[%s2397 + $0x58] sm:$0xff]
    %v2410 = vld [vmem:[%s2397 + $0x60] sm:$0xff]
    %v2411 = vld [vmem:[%s2397 + $0x68] sm:$0xff]
    %v2412 = vld [vmem:[%s2397 + $0x70] sm:$0xff]
    %v2413 = vld [vmem:[%s2397 + $0x78] sm:$0xff]
    %v2414 = vld [vmem:[%s2397 + $0x80] sm:$0xff]
    %v2415 = vld [vmem:[%s2397 + $0x88] sm:$0xff]
    %v2416 = vld [vmem:[%s2397 + $0x90] sm:$0xff]
    %v2417 = vld [vmem:[%s2397 + $0x98] sm:$0xff]
    %v2418 = vld [vmem:[%s2397 + $0xa0] sm:$0xff]
    %v2419 = vld [vmem:[%s2397 + $0xa8] sm:$0xff]
    %v2420 = vld [vmem:[%s2397 + $0xb0] sm:$0xff]
    %v2421 = vld [vmem:[%s2397 + $0xb8] sm:$0xff]
    %v2422 = vld [vmem:[%s2397 + $0xc0] sm:$0xff]
    %v2423 = vld [vmem:[%s2397 + $0xc8] sm:$0xff]
    %v2424 = vld [vmem:[%s2397 + $0xd0] sm:$0xff]
    %v2425 = vld [vmem:[%s2397 + $0xd8] sm:$0xff]
    %v2426 = vld [vmem:[%s2397 + $0xe0] sm:$0xff]
    %v2427 = vld [vmem:[%s2397 + $0xe8] sm:$0xff]
    %v2428 = vld [vmem:[%s2397 + $0xf0] sm:$0xff]
    %v2429 = vld [vmem:[%s2397 + $0xf8] sm:$0xff]
    %s2430 = scalar_lea.vmem %s10, 16
    %v2431 = vld [vmem:[%s2430] sm:$0xff]
    %v2432 = vld [vmem:[%s2430 + $0x8] sm:$0xff]
    %v2435 = vlaneseq
    %v2436 = vshrl.u32 %v2435, 7
    %v2437 = vsub.s32 0, %v2436
    %v2438 = vrot.slane %v2431, %v2437
    %v2439 = vlaneseq
    %v2440 = vshrl.u32 %v2439, 7
    %v2441 = vsub.s32 1, %v2440
    %v2442 = vrot.slane %v2431, %v2441
    %v2443 = vlaneseq
    %v2444 = vshrl.u32 %v2443, 7
    %v2445 = vsub.s32 2, %v2444
    %v2446 = vrot.slane %v2431, %v2445
    %v2447 = vlaneseq
    %v2448 = vshrl.u32 %v2447, 7
    %v2449 = vsub.s32 3, %v2448
    %v2450 = vrot.slane %v2431, %v2449
    %v2451 = vlaneseq
    %v2452 = vshrl.u32 %v2451, 7
    %v2453 = vsub.s32 4, %v2452
    %v2454 = vrot.slane %v2431, %v2453
    %v2455 = vlaneseq
    %v2456 = vshrl.u32 %v2455, 7
    %v2457 = vsub.s32 5, %v2456
    %v2458 = vrot.slane %v2431, %v2457
    %v2459 = vlaneseq
    %v2460 = vshrl.u32 %v2459, 7
    %v2461 = vsub.s32 6, %v2460
    %v2462 = vrot.slane %v2431, %v2461
    %v2463 = vlaneseq
    %v2464 = vshrl.u32 %v2463, 7
    %v2465 = vsub.s32 7, %v2464
    %v2466 = vrot.slane %v2431, %v2465
    %v2467 = vlaneseq
    %v2468 = vshrl.u32 %v2467, 7
    %v2469 = vsub.s32 0, %v2468
    %v2470 = vrot.slane %v2432, %v2469
    %v2471 = vlaneseq
    %v2472 = vshrl.u32 %v2471, 7
    %v2473 = vsub.s32 1, %v2472
    %v2474 = vrot.slane %v2432, %v2473
    %v2475 = vlaneseq
    %v2476 = vshrl.u32 %v2475, 7
    %v2477 = vsub.s32 2, %v2476
    %v2478 = vrot.slane %v2432, %v2477
    %v2479 = vlaneseq
    %v2480 = vshrl.u32 %v2479, 7
    %v2481 = vsub.s32 3, %v2480
    %v2482 = vrot.slane %v2432, %v2481
    %v2483 = vlaneseq
    %v2484 = vshrl.u32 %v2483, 7
    %v2485 = vsub.s32 4, %v2484
    %v2486 = vrot.slane %v2432, %v2485
    %v2487 = vlaneseq
    %v2488 = vshrl.u32 %v2487, 7
    %v2489 = vsub.s32 5, %v2488
    %v2490 = vrot.slane %v2432, %v2489
    %v2491 = vlaneseq
    %v2492 = vshrl.u32 %v2491, 7
    %v2493 = vsub.s32 6, %v2492
    %v2494 = vrot.slane %v2432, %v2493
    %v2495 = vlaneseq
    %v2496 = vshrl.u32 %v2495, 7
    %v2497 = vsub.s32 7, %v2496
    %v2498 = vrot.slane %v2432, %v2497
    %v2547 = vunpack.c.l.b16 %v2398
    %v2548 = vunpack.c.h.b16 %v2398
    %v2549 = vunpack.c.l.b16 %v2399
    %v2550 = vunpack.c.h.b16 %v2399
    %v2551 = vunpack.c.l.b16 %v2400
    %v2552 = vunpack.c.h.b16 %v2400
    %v2553 = vunpack.c.l.b16 %v2401
    %v2554 = vunpack.c.h.b16 %v2401
    %v2555 = vunpack.c.l.b16 %v2402
    %v2556 = vunpack.c.h.b16 %v2402
    %v2557 = vunpack.c.l.b16 %v2403
    %v2558 = vunpack.c.h.b16 %v2403
    %v2559 = vunpack.c.l.b16 %v2404
    %v2560 = vunpack.c.h.b16 %v2404
    %v2561 = vunpack.c.l.b16 %v2405
    %v2562 = vunpack.c.h.b16 %v2405
    %v2563 = vunpack.c.l.b16 %v2406
    %v2564 = vunpack.c.h.b16 %v2406
    %v2565 = vunpack.c.l.b16 %v2407
    %v2566 = vunpack.c.h.b16 %v2407
    %v2567 = vunpack.c.l.b16 %v2408
    %v2568 = vunpack.c.h.b16 %v2408
    %v2569 = vunpack.c.l.b16 %v2409
    %v2570 = vunpack.c.h.b16 %v2409
    %v2571 = vunpack.c.l.b16 %v2410
    %v2572 = vunpack.c.h.b16 %v2410
    %v2573 = vunpack.c.l.b16 %v2411
    %v2574 = vunpack.c.h.b16 %v2411
    %v2575 = vunpack.c.l.b16 %v2412
    %v2576 = vunpack.c.h.b16 %v2412
    %v2577 = vunpack.c.l.b16 %v2413
    %v2578 = vunpack.c.h.b16 %v2413
    %v2579 = vunpack.c.l.b16 %v2414
    %v2580 = vunpack.c.h.b16 %v2414
    %v2581 = vunpack.c.l.b16 %v2415
    %v2582 = vunpack.c.h.b16 %v2415
    %v2583 = vunpack.c.l.b16 %v2416
    %v2584 = vunpack.c.h.b16 %v2416
    %v2585 = vunpack.c.l.b16 %v2417
    %v2586 = vunpack.c.h.b16 %v2417
    %v2587 = vunpack.c.l.b16 %v2418
    %v2588 = vunpack.c.h.b16 %v2418
    %v2589 = vunpack.c.l.b16 %v2419
    %v2590 = vunpack.c.h.b16 %v2419
    %v2591 = vunpack.c.l.b16 %v2420
    %v2592 = vunpack.c.h.b16 %v2420
    %v2593 = vunpack.c.l.b16 %v2421
    %v2594 = vunpack.c.h.b16 %v2421
    %v2595 = vunpack.c.l.b16 %v2422
    %v2596 = vunpack.c.h.b16 %v2422
    %v2597 = vunpack.c.l.b16 %v2423
    %v2598 = vunpack.c.h.b16 %v2423
    %v2599 = vunpack.c.l.b16 %v2424
    %v2600 = vunpack.c.h.b16 %v2424
    %v2601 = vunpack.c.l.b16 %v2425
    %v2602 = vunpack.c.h.b16 %v2425
    %v2603 = vunpack.c.l.b16 %v2426
    %v2604 = vunpack.c.h.b16 %v2426
    %v2605 = vunpack.c.l.b16 %v2427
    %v2606 = vunpack.c.h.b16 %v2427
    %v2607 = vunpack.c.l.b16 %v2428
    %v2608 = vunpack.c.h.b16 %v2428
    %v2609 = vunpack.c.l.b16 %v2429
    %v2610 = vunpack.c.h.b16 %v2429
    %v2611 = vpack.c.b16 %v2563, %v2547
    %v2612 = vpack.c.b16 %v2564, %v2548
    %v2613 = vpack.c.b16 %v2565, %v2549
    %v2614 = vpack.c.b16 %v2566, %v2550
    %v2615 = vpack.c.b16 %v2567, %v2551
    %v2616 = vpack.c.b16 %v2568, %v2552
    %v2617 = vpack.c.b16 %v2569, %v2553
    %v2618 = vpack.c.b16 %v2570, %v2554
    %v2619 = vpack.c.b16 %v2571, %v2555
    %v2620 = vpack.c.b16 %v2572, %v2556
    %v2621 = vpack.c.b16 %v2573, %v2557
    %v2622 = vpack.c.b16 %v2574, %v2558
    %v2623 = vpack.c.b16 %v2575, %v2559
    %v2624 = vpack.c.b16 %v2576, %v2560
    %v2625 = vpack.c.b16 %v2577, %v2561
    %v2626 = vpack.c.b16 %v2578, %v2562
    %v2627 = vpack.c.b16 %v2595, %v2579
    %v2628 = vpack.c.b16 %v2596, %v2580
    %v2629 = vpack.c.b16 %v2597, %v2581
    %v2630 = vpack.c.b16 %v2598, %v2582
    %v2631 = vpack.c.b16 %v2599, %v2583
    %v2632 = vpack.c.b16 %v2600, %v2584
    %v2633 = vpack.c.b16 %v2601, %v2585
    %v2634 = vpack.c.b16 %v2602, %v2586
    %v2635 = vpack.c.b16 %v2603, %v2587
    %v2636 = vpack.c.b16 %v2604, %v2588
    %v2637 = vpack.c.b16 %v2605, %v2589
    %v2638 = vpack.c.b16 %v2606, %v2590
    %v2639 = vpack.c.b16 %v2607, %v2591
    %v2640 = vpack.c.b16 %v2608, %v2592
    %v2641 = vpack.c.b16 %v2609, %v2593
    %v2642 = vpack.c.b16 %v2610, %v2594
    %v2676 = vsel %vm198, %v2396, 0
    %2678 = vmatprep.subr.bf16.mxu0 0
    %2679 = vmatpush1.bf16.msra.mxu0 0
    %2680 = vmatprep.subr.bf16.mxu0 0
    %2681 = vmatpush1.bf16.msra.mxu0 0
    %2682 = vmatprep.subr.bf16.mxu0 0
    %2683 = vmatpush1.bf16.msra.mxu0 0
    %2684 = vmatprep.subr.bf16.mxu0 0
    %2685 = vmatpush1.bf16.msra.mxu0 0
    %2686 = vmatprep.subr.bf16.mxu0 0
    %2687 = vmatpush1.bf16.msra.mxu0 0
    %2688 = vmatprep.subr.bf16.mxu0 0
    %2689 = vmatpush1.bf16.msra.mxu0 0
    %2690 = vmatprep.subr.bf16.mxu0 %v2628
    %2691 = vmatpush1.bf16.msra.mxu0 %v2627
    %2692 = vmatprep.subr.bf16.mxu0 %v2612
    %2693 = vmatpush1.bf16.msra.mxu0 %v2611
    %2694 = vmatprep.subr.bf16.mxu0 0
    %2695 = vmatpush2.bf16.msra.mxu0 0
    %2696 = vmatprep.subr.bf16.mxu0 0
    %2697 = vmatpush2.bf16.msra.mxu0 0
    %2698 = vmatprep.subr.bf16.mxu0 0
    %2699 = vmatpush2.bf16.msra.mxu0 0
    %2700 = vmatprep.subr.bf16.mxu0 0
    %2701 = vmatpush2.bf16.msra.mxu0 0
    %2702 = vmatprep.subr.bf16.mxu0 0
    %2703 = vmatpush2.bf16.msra.mxu0 0
    %2704 = vmatprep.subr.bf16.mxu0 0
    %2705 = vmatpush2.bf16.msra.mxu0 0
    %2706 = vmatprep.subr.bf16.mxu0 0
    %2707 = vmatpush2.bf16.msra.mxu0 0
    %2708 = vmatprep.subr.bf16.mxu0 0
    %2709 = vmatpush2.bf16.msra.mxu0 0
    %2710 = vmatprep.mubr.bf16.mxu0 0
    %2711 = vmatmul.mubr.bf16.gmra.mxu0 %v2676
    %v2712 = vpop.f32.mrf.mxu0
    %v2713 = vadd.f32 %v2438, %v2712
    %v2714 = vpop.f32.mrf.mxu0
    %v2715 = vadd.f32 %v2442, %v2714
    %v2716 = vpop.f32.mrf.mxu0
    %v2717 = vpop.f32.mrf.mxu0
    %2718 = vdwg.mxu0
    %2719 = vmatprep.subr.bf16.mxu0 0
    %2720 = vmatpush1.bf16.msra.mxu0 0
    %2721 = vmatprep.subr.bf16.mxu0 0
    %2722 = vmatpush1.bf16.msra.mxu0 0
    %2723 = vmatprep.subr.bf16.mxu0 0
    %2724 = vmatpush1.bf16.msra.mxu0 0
    %2725 = vmatprep.subr.bf16.mxu0 0
    %2726 = vmatpush1.bf16.msra.mxu0 0
    %2727 = vmatprep.subr.bf16.mxu0 0
    %2728 = vmatpush1.bf16.msra.mxu0 0
    %2729 = vmatprep.subr.bf16.mxu0 0
    %2730 = vmatpush1.bf16.msra.mxu0 0
    %2731 = vmatprep.subr.bf16.mxu0 %v2630
    %2732 = vmatpush1.bf16.msra.mxu0 %v2629
    %2733 = vmatprep.subr.bf16.mxu0 %v2614
    %2734 = vmatpush1.bf16.msra.mxu0 %v2613
    %2735 = vmatprep.subr.bf16.mxu0 0
    %2736 = vmatpush2.bf16.msra.mxu0 0
    %2737 = vmatprep.subr.bf16.mxu0 0
    %2738 = vmatpush2.bf16.msra.mxu0 0
    %2739 = vmatprep.subr.bf16.mxu0 0
    %2740 = vmatpush2.bf16.msra.mxu0 0
    %2741 = vmatprep.subr.bf16.mxu0 0
    %2742 = vmatpush2.bf16.msra.mxu0 0
    %2743 = vmatprep.subr.bf16.mxu0 0
    %2744 = vmatpush2.bf16.msra.mxu0 0
    %2745 = vmatprep.subr.bf16.mxu0 0
    %2746 = vmatpush2.bf16.msra.mxu0 0
    %2747 = vmatprep.subr.bf16.mxu0 0
    %2748 = vmatpush2.bf16.msra.mxu0 0
    %2749 = vmatprep.subr.bf16.mxu0 0
    %2750 = vmatpush2.bf16.msra.mxu0 0
    %2751 = vmatprep.mubr.bf16.mxu0 0
    %2752 = vmatmul.mubr.bf16.gmra.mxu0 %v2676
    %v2753 = vpop.f32.mrf.mxu0
    %v2754 = vadd.f32 %v2446, %v2753
    %v2755 = vpop.f32.mrf.mxu0
    %v2756 = vadd.f32 %v2450, %v2755
    %v2757 = vpop.f32.mrf.mxu0
    %v2758 = vpop.f32.mrf.mxu0
    %2759 = vdwg.mxu0
    %2760 = vmatprep.subr.bf16.mxu0 0
    %2761 = vmatpush1.bf16.msra.mxu0 0
    %2762 = vmatprep.subr.bf16.mxu0 0
    %2763 = vmatpush1.bf16.msra.mxu0 0
    %2764 = vmatprep.subr.bf16.mxu0 0
    %2765 = vmatpush1.bf16.msra.mxu0 0
    %2766 = vmatprep.subr.bf16.mxu0 0
    %2767 = vmatpush1.bf16.msra.mxu0 0
    %2768 = vmatprep.subr.bf16.mxu0 0
    %2769 = vmatpush1.bf16.msra.mxu0 0
    %2770 = vmatprep.subr.bf16.mxu0 0
    %2771 = vmatpush1.bf16.msra.mxu0 0
    %2772 = vmatprep.subr.bf16.mxu0 %v2632
    %2773 = vmatpush1.bf16.msra.mxu0 %v2631
    %2774 = vmatprep.subr.bf16.mxu0 %v2616
    %2775 = vmatpush1.bf16.msra.mxu0 %v2615
    %2776 = vmatprep.subr.bf16.mxu0 0
    %2777 = vmatpush2.bf16.msra.mxu0 0
    %2778 = vmatprep.subr.bf16.mxu0 0
    %2779 = vmatpush2.bf16.msra.mxu0 0
    %2780 = vmatprep.subr.bf16.mxu0 0
    %2781 = vmatpush2.bf16.msra.mxu0 0
    %2782 = vmatprep.subr.bf16.mxu0 0
    %2783 = vmatpush2.bf16.msra.mxu0 0
    %2784 = vmatprep.subr.bf16.mxu0 0
    %2785 = vmatpush2.bf16.msra.mxu0 0
    %2786 = vmatprep.subr.bf16.mxu0 0
    %2787 = vmatpush2.bf16.msra.mxu0 0
    %2788 = vmatprep.subr.bf16.mxu0 0
    %2789 = vmatpush2.bf16.msra.mxu0 0
    %2790 = vmatprep.subr.bf16.mxu0 0
    %2791 = vmatpush2.bf16.msra.mxu0 0
    %2792 = vmatprep.mubr.bf16.mxu0 0
    %2793 = vmatmul.mubr.bf16.gmra.mxu0 %v2676
    %v2794 = vpop.f32.mrf.mxu0
    %v2795 = vadd.f32 %v2454, %v2794
    %v2796 = vpop.f32.mrf.mxu0
    %v2797 = vadd.f32 %v2458, %v2796
    %v2798 = vpop.f32.mrf.mxu0
    %v2799 = vpop.f32.mrf.mxu0
    %2800 = vdwg.mxu0
    %2801 = vmatprep.subr.bf16.mxu0 0
    %2802 = vmatpush1.bf16.msra.mxu0 0
    %2803 = vmatprep.subr.bf16.mxu0 0
    %2804 = vmatpush1.bf16.msra.mxu0 0
    %2805 = vmatprep.subr.bf16.mxu0 0
    %2806 = vmatpush1.bf16.msra.mxu0 0
    %2807 = vmatprep.subr.bf16.mxu0 0
    %2808 = vmatpush1.bf16.msra.mxu0 0
    %2809 = vmatprep.subr.bf16.mxu0 0
    %2810 = vmatpush1.bf16.msra.mxu0 0
    %2811 = vmatprep.subr.bf16.mxu0 0
    %2812 = vmatpush1.bf16.msra.mxu0 0
    %2813 = vmatprep.subr.bf16.mxu0 %v2634
    %2814 = vmatpush1.bf16.msra.mxu0 %v2633
    %2815 = vmatprep.subr.bf16.mxu0 %v2618
    %2816 = vmatpush1.bf16.msra.mxu0 %v2617
    %2817 = vmatprep.subr.bf16.mxu0 0
    %2818 = vmatpush2.bf16.msra.mxu0 0
    %2819 = vmatprep.subr.bf16.mxu0 0
    %2820 = vmatpush2.bf16.msra.mxu0 0
    %2821 = vmatprep.subr.bf16.mxu0 0
    %2822 = vmatpush2.bf16.msra.mxu0 0
    %2823 = vmatprep.subr.bf16.mxu0 0
    %2824 = vmatpush2.bf16.msra.mxu0 0
    %2825 = vmatprep.subr.bf16.mxu0 0
    %2826 = vmatpush2.bf16.msra.mxu0 0
    %2827 = vmatprep.subr.bf16.mxu0 0
    %2828 = vmatpush2.bf16.msra.mxu0 0
    %2829 = vmatprep.subr.bf16.mxu0 0
    %2830 = vmatpush2.bf16.msra.mxu0 0
    %2831 = vmatprep.subr.bf16.mxu0 0
    %2832 = vmatpush2.bf16.msra.mxu0 0
    %2833 = vmatprep.mubr.bf16.mxu0 0
    %2834 = vmatmul.mubr.bf16.gmra.mxu0 %v2676
    %v2835 = vpop.f32.mrf.mxu0
    %v2836 = vadd.f32 %v2462, %v2835
    %v2837 = vpop.f32.mrf.mxu0
    %v2838 = vadd.f32 %v2466, %v2837
    %v2839 = vpop.f32.mrf.mxu0
    %v2840 = vpop.f32.mrf.mxu0
    %2841 = vdwg.mxu0
    %2842 = vmatprep.subr.bf16.mxu0 0
    %2843 = vmatpush1.bf16.msra.mxu0 0
    %2844 = vmatprep.subr.bf16.mxu0 0
    %2845 = vmatpush1.bf16.msra.mxu0 0
    %2846 = vmatprep.subr.bf16.mxu0 0
    %2847 = vmatpush1.bf16.msra.mxu0 0
    %2848 = vmatprep.subr.bf16.mxu0 0
    %2849 = vmatpush1.bf16.msra.mxu0 0
    %2850 = vmatprep.subr.bf16.mxu0 0
    %2851 = vmatpush1.bf16.msra.mxu0 0
    %2852 = vmatprep.subr.bf16.mxu0 0
    %2853 = vmatpush1.bf16.msra.mxu0 0
    %2854 = vmatprep.subr.bf16.mxu0 %v2636
    %2855 = vmatpush1.bf16.msra.mxu0 %v2635
    %2856 = vmatprep.subr.bf16.mxu0 %v2620
    %2857 = vmatpush1.bf16.msra.mxu0 %v2619
    %2858 = vmatprep.subr.bf16.mxu0 0
    %2859 = vmatpush2.bf16.msra.mxu0 0
    %2860 = vmatprep.subr.bf16.mxu0 0
    %2861 = vmatpush2.bf16.msra.mxu0 0
    %2862 = vmatprep.subr.bf16.mxu0 0
    %2863 = vmatpush2.bf16.msra.mxu0 0
    %2864 = vmatprep.subr.bf16.mxu0 0
    %2865 = vmatpush2.bf16.msra.mxu0 0
    %2866 = vmatprep.subr.bf16.mxu0 0
    %2867 = vmatpush2.bf16.msra.mxu0 0
    %2868 = vmatprep.subr.bf16.mxu0 0
    %2869 = vmatpush2.bf16.msra.mxu0 0
    %2870 = vmatprep.subr.bf16.mxu0 0
    %2871 = vmatpush2.bf16.msra.mxu0 0
    %2872 = vmatprep.subr.bf16.mxu0 0
    %2873 = vmatpush2.bf16.msra.mxu0 0
    %2874 = vmatprep.mubr.bf16.mxu0 0
    %2875 = vmatmul.mubr.bf16.gmra.mxu0 %v2676
    %v2876 = vpop.f32.mrf.mxu0
    %v2877 = vadd.f32 %v2470, %v2876
    %v2878 = vpop.f32.mrf.mxu0
    %v2879 = vadd.f32 %v2474, %v2878
    %v2880 = vpop.f32.mrf.mxu0
    %v2881 = vpop.f32.mrf.mxu0
    %2882 = vdwg.mxu0
    %2883 = vmatprep.subr.bf16.mxu0 0
    %2884 = vmatpush1.bf16.msra.mxu0 0
    %2885 = vmatprep.subr.bf16.mxu0 0
    %2886 = vmatpush1.bf16.msra.mxu0 0
    %2887 = vmatprep.subr.bf16.mxu0 0
    %2888 = vmatpush1.bf16.msra.mxu0 0
    %2889 = vmatprep.subr.bf16.mxu0 0
    %2890 = vmatpush1.bf16.msra.mxu0 0
    %2891 = vmatprep.subr.bf16.mxu0 0
    %2892 = vmatpush1.bf16.msra.mxu0 0
    %2893 = vmatprep.subr.bf16.mxu0 0
    %2894 = vmatpush1.bf16.msra.mxu0 0
    %2895 = vmatprep.subr.bf16.mxu0 %v2638
    %2896 = vmatpush1.bf16.msra.mxu0 %v2637
    %2897 = vmatprep.subr.bf16.mxu0 %v2622
    %2898 = vmatpush1.bf16.msra.mxu0 %v2621
    %2899 = vmatprep.subr.bf16.mxu0 0
    %2900 = vmatpush2.bf16.msra.mxu0 0
    %2901 = vmatprep.subr.bf16.mxu0 0
    %2902 = vmatpush2.bf16.msra.mxu0 0
    %2903 = vmatprep.subr.bf16.mxu0 0
    %2904 = vmatpush2.bf16.msra.mxu0 0
    %2905 = vmatprep.subr.bf16.mxu0 0
    %2906 = vmatpush2.bf16.msra.mxu0 0
    %2907 = vmatprep.subr.bf16.mxu0 0
    %2908 = vmatpush2.bf16.msra.mxu0 0
    %2909 = vmatprep.subr.bf16.mxu0 0
    %2910 = vmatpush2.bf16.msra.mxu0 0
    %2911 = vmatprep.subr.bf16.mxu0 0
    %2912 = vmatpush2.bf16.msra.mxu0 0
    %2913 = vmatprep.subr.bf16.mxu0 0
    %2914 = vmatpush2.bf16.msra.mxu0 0
    %2915 = vmatprep.mubr.bf16.mxu0 0
    %2916 = vmatmul.mubr.bf16.gmra.mxu0 %v2676
    %v2917 = vpop.f32.mrf.mxu0
    %v2918 = vadd.f32 %v2478, %v2917
    %v2919 = vpop.f32.mrf.mxu0
    %v2920 = vadd.f32 %v2482, %v2919
    %v2921 = vpop.f32.mrf.mxu0
    %v2922 = vpop.f32.mrf.mxu0
    %2923 = vdwg.mxu0
    %2924 = vmatprep.subr.bf16.mxu0 0
    %2925 = vmatpush1.bf16.msra.mxu0 0
    %2926 = vmatprep.subr.bf16.mxu0 0
    %2927 = vmatpush1.bf16.msra.mxu0 0
    %2928 = vmatprep.subr.bf16.mxu0 0
    %2929 = vmatpush1.bf16.msra.mxu0 0
    %2930 = vmatprep.subr.bf16.mxu0 0
    %2931 = vmatpush1.bf16.msra.mxu0 0
    %2932 = vmatprep.subr.bf16.mxu0 0
    %2933 = vmatpush1.bf16.msra.mxu0 0
    %2934 = vmatprep.subr.bf16.mxu0 0
    %2935 = vmatpush1.bf16.msra.mxu0 0
    %2936 = vmatprep.subr.bf16.mxu0 %v2640
    %2937 = vmatpush1.bf16.msra.mxu0 %v2639
    %2938 = vmatprep.subr.bf16.mxu0 %v2624
    %2939 = vmatpush1.bf16.msra.mxu0 %v2623
    %2940 = vmatprep.subr.bf16.mxu0 0
    %2941 = vmatpush2.bf16.msra.mxu0 0
    %2942 = vmatprep.subr.bf16.mxu0 0
    %2943 = vmatpush2.bf16.msra.mxu0 0
    %2944 = vmatprep.subr.bf16.mxu0 0
    %2945 = vmatpush2.bf16.msra.mxu0 0
    %2946 = vmatprep.subr.bf16.mxu0 0
    %2947 = vmatpush2.bf16.msra.mxu0 0
    %2948 = vmatprep.subr.bf16.mxu0 0
    %2949 = vmatpush2.bf16.msra.mxu0 0
    %2950 = vmatprep.subr.bf16.mxu0 0
    %2951 = vmatpush2.bf16.msra.mxu0 0
    %2952 = vmatprep.subr.bf16.mxu0 0
    %2953 = vmatpush2.bf16.msra.mxu0 0
    %2954 = vmatprep.subr.bf16.mxu0 0
    %2955 = vmatpush2.bf16.msra.mxu0 0
    %2956 = vmatprep.mubr.bf16.mxu0 0
    %2957 = vmatmul.mubr.bf16.gmra.mxu0 %v2676
    %v2958 = vpop.f32.mrf.mxu0
    %v2959 = vadd.f32 %v2486, %v2958
    %v2960 = vpop.f32.mrf.mxu0
    %v2961 = vadd.f32 %v2490, %v2960
    %v2962 = vpop.f32.mrf.mxu0
    %v2963 = vpop.f32.mrf.mxu0
    %2964 = vdwg.mxu0
    %2965 = vmatprep.subr.bf16.mxu0 0
    %2966 = vmatpush1.bf16.msra.mxu0 0
    %2967 = vmatprep.subr.bf16.mxu0 0
    %2968 = vmatpush1.bf16.msra.mxu0 0
    %2969 = vmatprep.subr.bf16.mxu0 0
    %2970 = vmatpush1.bf16.msra.mxu0 0
    %2971 = vmatprep.subr.bf16.mxu0 0
    %2972 = vmatpush1.bf16.msra.mxu0 0
    %2973 = vmatprep.subr.bf16.mxu0 0
    %2974 = vmatpush1.bf16.msra.mxu0 0
    %2975 = vmatprep.subr.bf16.mxu0 0
    %2976 = vmatpush1.bf16.msra.mxu0 0
    %2977 = vmatprep.subr.bf16.mxu0 %v2642
    %2978 = vmatpush1.bf16.msra.mxu0 %v2641
    %2979 = vmatprep.subr.bf16.mxu0 %v2626
    %2980 = vmatpush1.bf16.msra.mxu0 %v2625
    %2981 = vmatprep.subr.bf16.mxu0 0
    %2982 = vmatpush2.bf16.msra.mxu0 0
    %2983 = vmatprep.subr.bf16.mxu0 0
    %2984 = vmatpush2.bf16.msra.mxu0 0
    %2985 = vmatprep.subr.bf16.mxu0 0
    %2986 = vmatpush2.bf16.msra.mxu0 0
    %2987 = vmatprep.subr.bf16.mxu0 0
    %2988 = vmatpush2.bf16.msra.mxu0 0
    %2989 = vmatprep.subr.bf16.mxu0 0
    %2990 = vmatpush2.bf16.msra.mxu0 0
    %2991 = vmatprep.subr.bf16.mxu0 0
    %2992 = vmatpush2.bf16.msra.mxu0 0
    %2993 = vmatprep.subr.bf16.mxu0 0
    %2994 = vmatpush2.bf16.msra.mxu0 0
    %2995 = vmatprep.subr.bf16.mxu0 0
    %2996 = vmatpush2.bf16.msra.mxu0 0
    %2997 = vmatprep.mubr.bf16.mxu0 0
    %2998 = vmatmul.mubr.bf16.gmra.mxu0 %v2676
    %v2999 = vpop.f32.mrf.mxu0
    %v3000 = vadd.f32 %v2494, %v2999
    %v3001 = vpop.f32.mrf.mxu0
    %v3002 = vadd.f32 %v2498, %v3001
    %v3003 = vpop.f32.mrf.mxu0
    %v3004 = vpop.f32.mrf.mxu0
    %3005 = vdwg.mxu0
    %v3006 = vmax.f32 %v2713, 0.0
    %v3007 = vmax.f32 %v2715, 0.0
    %v3008 = vmax.f32 %v2754, 0.0
    %v3009 = vmax.f32 %v2756, 0.0
    %v3010 = vmax.f32 %v2795, 0.0
    %v3011 = vmax.f32 %v2797, 0.0
    %v3012 = vmax.f32 %v2836, 0.0
    %v3013 = vmax.f32 %v2838, 0.0
    %v3014 = vmax.f32 %v2877, 0.0
    %v3015 = vmax.f32 %v2879, 0.0
    %v3016 = vmax.f32 %v2918, 0.0
    %v3017 = vmax.f32 %v2920, 0.0
    %v3018 = vmax.f32 %v2959, 0.0
    %v3019 = vmax.f32 %v2961, 0.0
    %v3020 = vmax.f32 %v3000, 0.0
    %v3021 = vmax.f32 %v3002, 0.0
    %v3022 = vpack.c.bf16 %v3006, %v3006
    %v3023 = vpack.c.bf16 %v3007, %v3007
    %v3024 = vpack.c.bf16 %v3008, %v3008
    %v3025 = vpack.c.bf16 %v3009, %v3009
    %v3026 = vpack.c.bf16 %v3010, %v3010
    %v3027 = vpack.c.bf16 %v3011, %v3011
    %v3028 = vpack.c.bf16 %v3012, %v3012
    %v3029 = vpack.c.bf16 %v3013, %v3013
    %v3030 = vpack.c.bf16 %v3014, %v3014
    %v3031 = vpack.c.bf16 %v3015, %v3015
    %v3032 = vpack.c.bf16 %v3016, %v3016
    %v3033 = vpack.c.bf16 %v3017, %v3017
    %v3034 = vpack.c.bf16 %v3018, %v3018
    %v3035 = vpack.c.bf16 %v3019, %v3019
    %v3036 = vpack.c.bf16 %v3020, %v3020
    %v3037 = vpack.c.bf16 %v3021, %v3021
    %s3038 = scalar_lea.vmem %s11, 1024
    %v3039 = vld [vmem:[%s3038] sm:$0xf]
    %v3040 = vld [vmem:[%s3038 + $0x4] sm:$0xf]
    %v3041 = vld [vmem:[%s3038 + $0x8] sm:$0xf]
    %v3042 = vld [vmem:[%s3038 + $0xc] sm:$0xf]
    %v3043 = vld [vmem:[%s3038 + $0x10] sm:$0xf]
    %v3044 = vld [vmem:[%s3038 + $0x14] sm:$0xf]
    %v3045 = vld [vmem:[%s3038 + $0x18] sm:$0xf]
    %v3046 = vld [vmem:[%s3038 + $0x1c] sm:$0xf]
    %v3047 = vld [vmem:[%s3038 + $0x20] sm:$0xf]
    %v3048 = vld [vmem:[%s3038 + $0x24] sm:$0xf]
    %v3049 = vld [vmem:[%s3038 + $0x28] sm:$0xf]
    %v3050 = vld [vmem:[%s3038 + $0x2c] sm:$0xf]
    %v3051 = vld [vmem:[%s3038 + $0x30] sm:$0xf]
    %v3052 = vld [vmem:[%s3038 + $0x34] sm:$0xf]
    %v3053 = vld [vmem:[%s3038 + $0x38] sm:$0xf]
    %v3054 = vld [vmem:[%s3038 + $0x3c] sm:$0xf]
    %v3055 = vld [vmem:[%s3038 + $0x40] sm:$0xf]
    %v3056 = vld [vmem:[%s3038 + $0x44] sm:$0xf]
    %v3057 = vld [vmem:[%s3038 + $0x48] sm:$0xf]
    %v3058 = vld [vmem:[%s3038 + $0x4c] sm:$0xf]
    %v3059 = vld [vmem:[%s3038 + $0x50] sm:$0xf]
    %v3060 = vld [vmem:[%s3038 + $0x54] sm:$0xf]
    %v3061 = vld [vmem:[%s3038 + $0x58] sm:$0xf]
    %v3062 = vld [vmem:[%s3038 + $0x5c] sm:$0xf]
    %v3063 = vld [vmem:[%s3038 + $0x60] sm:$0xf]
    %v3064 = vld [vmem:[%s3038 + $0x64] sm:$0xf]
    %v3065 = vld [vmem:[%s3038 + $0x68] sm:$0xf]
    %v3066 = vld [vmem:[%s3038 + $0x6c] sm:$0xf]
    %v3067 = vld [vmem:[%s3038 + $0x70] sm:$0xf]
    %v3068 = vld [vmem:[%s3038 + $0x74] sm:$0xf]
    %v3069 = vld [vmem:[%s3038 + $0x78] sm:$0xf]
    %v3070 = vld [vmem:[%s3038 + $0x7c] sm:$0xf]
    %v3071 = vld [vmem:[%s3038 + $0x80] sm:$0xf]
    %v3072 = vld [vmem:[%s3038 + $0x84] sm:$0xf]
    %v3073 = vld [vmem:[%s3038 + $0x88] sm:$0xf]
    %v3074 = vld [vmem:[%s3038 + $0x8c] sm:$0xf]
    %v3075 = vld [vmem:[%s3038 + $0x90] sm:$0xf]
    %v3076 = vld [vmem:[%s3038 + $0x94] sm:$0xf]
    %v3077 = vld [vmem:[%s3038 + $0x98] sm:$0xf]
    %v3078 = vld [vmem:[%s3038 + $0x9c] sm:$0xf]
    %v3079 = vld [vmem:[%s3038 + $0xa0] sm:$0xf]
    %v3080 = vld [vmem:[%s3038 + $0xa4] sm:$0xf]
    %v3081 = vld [vmem:[%s3038 + $0xa8] sm:$0xf]
    %v3082 = vld [vmem:[%s3038 + $0xac] sm:$0xf]
    %v3083 = vld [vmem:[%s3038 + $0xb0] sm:$0xf]
    %v3084 = vld [vmem:[%s3038 + $0xb4] sm:$0xf]
    %v3085 = vld [vmem:[%s3038 + $0xb8] sm:$0xf]
    %v3086 = vld [vmem:[%s3038 + $0xbc] sm:$0xf]
    %v3087 = vld [vmem:[%s3038 + $0xc0] sm:$0xf]
    %v3088 = vld [vmem:[%s3038 + $0xc4] sm:$0xf]
    %v3089 = vld [vmem:[%s3038 + $0xc8] sm:$0xf]
    %v3090 = vld [vmem:[%s3038 + $0xcc] sm:$0xf]
    %v3091 = vld [vmem:[%s3038 + $0xd0] sm:$0xf]
    %v3092 = vld [vmem:[%s3038 + $0xd4] sm:$0xf]
    %v3093 = vld [vmem:[%s3038 + $0xd8] sm:$0xf]
    %v3094 = vld [vmem:[%s3038 + $0xdc] sm:$0xf]
    %v3095 = vld [vmem:[%s3038 + $0xe0] sm:$0xf]
    %v3096 = vld [vmem:[%s3038 + $0xe4] sm:$0xf]
    %v3097 = vld [vmem:[%s3038 + $0xe8] sm:$0xf]
    %v3098 = vld [vmem:[%s3038 + $0xec] sm:$0xf]
    %v3099 = vld [vmem:[%s3038 + $0xf0] sm:$0xf]
    %v3100 = vld [vmem:[%s3038 + $0xf4] sm:$0xf]
    %v3101 = vld [vmem:[%s3038 + $0xf8] sm:$0xf]
    %v3102 = vld [vmem:[%s3038 + $0xfc] sm:$0xf]
    %v3103 = vld [vmem:[%s3038 + $0x100] sm:$0xf]
    %v3104 = vld [vmem:[%s3038 + $0x104] sm:$0xf]
    %v3105 = vld [vmem:[%s3038 + $0x108] sm:$0xf]
    %v3106 = vld [vmem:[%s3038 + $0x10c] sm:$0xf]
    %v3107 = vld [vmem:[%s3038 + $0x110] sm:$0xf]
    %v3108 = vld [vmem:[%s3038 + $0x114] sm:$0xf]
    %v3109 = vld [vmem:[%s3038 + $0x118] sm:$0xf]
    %v3110 = vld [vmem:[%s3038 + $0x11c] sm:$0xf]
    %v3111 = vld [vmem:[%s3038 + $0x120] sm:$0xf]
    %v3112 = vld [vmem:[%s3038 + $0x124] sm:$0xf]
    %v3113 = vld [vmem:[%s3038 + $0x128] sm:$0xf]
    %v3114 = vld [vmem:[%s3038 + $0x12c] sm:$0xf]
    %v3115 = vld [vmem:[%s3038 + $0x130] sm:$0xf]
    %v3116 = vld [vmem:[%s3038 + $0x134] sm:$0xf]
    %v3117 = vld [vmem:[%s3038 + $0x138] sm:$0xf]
    %v3118 = vld [vmem:[%s3038 + $0x13c] sm:$0xf]
    %v3119 = vld [vmem:[%s3038 + $0x140] sm:$0xf]
    %v3120 = vld [vmem:[%s3038 + $0x144] sm:$0xf]
    %v3121 = vld [vmem:[%s3038 + $0x148] sm:$0xf]
    %v3122 = vld [vmem:[%s3038 + $0x14c] sm:$0xf]
    %v3123 = vld [vmem:[%s3038 + $0x150] sm:$0xf]
    %v3124 = vld [vmem:[%s3038 + $0x154] sm:$0xf]
    %v3125 = vld [vmem:[%s3038 + $0x158] sm:$0xf]
    %v3126 = vld [vmem:[%s3038 + $0x15c] sm:$0xf]
    %v3127 = vld [vmem:[%s3038 + $0x160] sm:$0xf]
    %v3128 = vld [vmem:[%s3038 + $0x164] sm:$0xf]
    %v3129 = vld [vmem:[%s3038 + $0x168] sm:$0xf]
    %v3130 = vld [vmem:[%s3038 + $0x16c] sm:$0xf]
    %v3131 = vld [vmem:[%s3038 + $0x170] sm:$0xf]
    %v3132 = vld [vmem:[%s3038 + $0x174] sm:$0xf]
    %v3133 = vld [vmem:[%s3038 + $0x178] sm:$0xf]
    %v3134 = vld [vmem:[%s3038 + $0x17c] sm:$0xf]
    %v3135 = vld [vmem:[%s3038 + $0x180] sm:$0xf]
    %v3136 = vld [vmem:[%s3038 + $0x184] sm:$0xf]
    %v3137 = vld [vmem:[%s3038 + $0x188] sm:$0xf]
    %v3138 = vld [vmem:[%s3038 + $0x18c] sm:$0xf]
    %v3139 = vld [vmem:[%s3038 + $0x190] sm:$0xf]
    %v3140 = vld [vmem:[%s3038 + $0x194] sm:$0xf]
    %v3141 = vld [vmem:[%s3038 + $0x198] sm:$0xf]
    %v3142 = vld [vmem:[%s3038 + $0x19c] sm:$0xf]
    %v3143 = vld [vmem:[%s3038 + $0x1a0] sm:$0xf]
    %v3144 = vld [vmem:[%s3038 + $0x1a4] sm:$0xf]
    %v3145 = vld [vmem:[%s3038 + $0x1a8] sm:$0xf]
    %v3146 = vld [vmem:[%s3038 + $0x1ac] sm:$0xf]
    %v3147 = vld [vmem:[%s3038 + $0x1b0] sm:$0xf]
    %v3148 = vld [vmem:[%s3038 + $0x1b4] sm:$0xf]
    %v3149 = vld [vmem:[%s3038 + $0x1b8] sm:$0xf]
    %v3150 = vld [vmem:[%s3038 + $0x1bc] sm:$0xf]
    %v3151 = vld [vmem:[%s3038 + $0x1c0] sm:$0xf]
    %v3152 = vld [vmem:[%s3038 + $0x1c4] sm:$0xf]
    %v3153 = vld [vmem:[%s3038 + $0x1c8] sm:$0xf]
    %v3154 = vld [vmem:[%s3038 + $0x1cc] sm:$0xf]
    %v3155 = vld [vmem:[%s3038 + $0x1d0] sm:$0xf]
    %v3156 = vld [vmem:[%s3038 + $0x1d4] sm:$0xf]
    %v3157 = vld [vmem:[%s3038 + $0x1d8] sm:$0xf]
    %v3158 = vld [vmem:[%s3038 + $0x1dc] sm:$0xf]
    %v3159 = vld [vmem:[%s3038 + $0x1e0] sm:$0xf]
    %v3160 = vld [vmem:[%s3038 + $0x1e4] sm:$0xf]
    %v3161 = vld [vmem:[%s3038 + $0x1e8] sm:$0xf]
    %v3162 = vld [vmem:[%s3038 + $0x1ec] sm:$0xf]
    %v3163 = vld [vmem:[%s3038 + $0x1f0] sm:$0xf]
    %v3164 = vld [vmem:[%s3038 + $0x1f4] sm:$0xf]
    %v3165 = vld [vmem:[%s3038 + $0x1f8] sm:$0xf]
    %v3166 = vld [vmem:[%s3038 + $0x1fc] sm:$0xf]
    %v3167 = vld [vmem:[%s3038 + $0x200] sm:$0xf]
    %v3168 = vld [vmem:[%s3038 + $0x204] sm:$0xf]
    %v3169 = vld [vmem:[%s3038 + $0x208] sm:$0xf]
    %v3170 = vld [vmem:[%s3038 + $0x20c] sm:$0xf]
    %v3171 = vld [vmem:[%s3038 + $0x210] sm:$0xf]
    %v3172 = vld [vmem:[%s3038 + $0x214] sm:$0xf]
    %v3173 = vld [vmem:[%s3038 + $0x218] sm:$0xf]
    %v3174 = vld [vmem:[%s3038 + $0x21c] sm:$0xf]
    %v3175 = vld [vmem:[%s3038 + $0x220] sm:$0xf]
    %v3176 = vld [vmem:[%s3038 + $0x224] sm:$0xf]
    %v3177 = vld [vmem:[%s3038 + $0x228] sm:$0xf]
    %v3178 = vld [vmem:[%s3038 + $0x22c] sm:$0xf]
    %v3179 = vld [vmem:[%s3038 + $0x230] sm:$0xf]
    %v3180 = vld [vmem:[%s3038 + $0x234] sm:$0xf]
    %v3181 = vld [vmem:[%s3038 + $0x238] sm:$0xf]
    %v3182 = vld [vmem:[%s3038 + $0x23c] sm:$0xf]
    %v3183 = vld [vmem:[%s3038 + $0x240] sm:$0xf]
    %v3184 = vld [vmem:[%s3038 + $0x244] sm:$0xf]
    %v3185 = vld [vmem:[%s3038 + $0x248] sm:$0xf]
    %v3186 = vld [vmem:[%s3038 + $0x24c] sm:$0xf]
    %v3187 = vld [vmem:[%s3038 + $0x250] sm:$0xf]
    %v3188 = vld [vmem:[%s3038 + $0x254] sm:$0xf]
    %v3189 = vld [vmem:[%s3038 + $0x258] sm:$0xf]
    %v3190 = vld [vmem:[%s3038 + $0x25c] sm:$0xf]
    %v3191 = vld [vmem:[%s3038 + $0x260] sm:$0xf]
    %v3192 = vld [vmem:[%s3038 + $0x264] sm:$0xf]
    %v3193 = vld [vmem:[%s3038 + $0x268] sm:$0xf]
    %v3194 = vld [vmem:[%s3038 + $0x26c] sm:$0xf]
    %v3195 = vld [vmem:[%s3038 + $0x270] sm:$0xf]
    %v3196 = vld [vmem:[%s3038 + $0x274] sm:$0xf]
    %v3197 = vld [vmem:[%s3038 + $0x278] sm:$0xf]
    %v3198 = vld [vmem:[%s3038 + $0x27c] sm:$0xf]
    %v3199 = vld [vmem:[%s3038 + $0x280] sm:$0xf]
    %v3200 = vld [vmem:[%s3038 + $0x284] sm:$0xf]
    %v3201 = vld [vmem:[%s3038 + $0x288] sm:$0xf]
    %v3202 = vld [vmem:[%s3038 + $0x28c] sm:$0xf]
    %v3203 = vld [vmem:[%s3038 + $0x290] sm:$0xf]
    %v3204 = vld [vmem:[%s3038 + $0x294] sm:$0xf]
    %v3205 = vld [vmem:[%s3038 + $0x298] sm:$0xf]
    %v3206 = vld [vmem:[%s3038 + $0x29c] sm:$0xf]
    %v3207 = vld [vmem:[%s3038 + $0x2a0] sm:$0xf]
    %v3208 = vld [vmem:[%s3038 + $0x2a4] sm:$0xf]
    %v3209 = vld [vmem:[%s3038 + $0x2a8] sm:$0xf]
    %v3210 = vld [vmem:[%s3038 + $0x2ac] sm:$0xf]
    %v3211 = vld [vmem:[%s3038 + $0x2b0] sm:$0xf]
    %v3212 = vld [vmem:[%s3038 + $0x2b4] sm:$0xf]
    %v3213 = vld [vmem:[%s3038 + $0x2b8] sm:$0xf]
    %v3214 = vld [vmem:[%s3038 + $0x2bc] sm:$0xf]
    %v3215 = vld [vmem:[%s3038 + $0x2c0] sm:$0xf]
    %v3216 = vld [vmem:[%s3038 + $0x2c4] sm:$0xf]
    %v3217 = vld [vmem:[%s3038 + $0x2c8] sm:$0xf]
    %v3218 = vld [vmem:[%s3038 + $0x2cc] sm:$0xf]
    %v3219 = vld [vmem:[%s3038 + $0x2d0] sm:$0xf]
    %v3220 = vld [vmem:[%s3038 + $0x2d4] sm:$0xf]
    %v3221 = vld [vmem:[%s3038 + $0x2d8] sm:$0xf]
    %v3222 = vld [vmem:[%s3038 + $0x2dc] sm:$0xf]
    %v3223 = vld [vmem:[%s3038 + $0x2e0] sm:$0xf]
    %v3224 = vld [vmem:[%s3038 + $0x2e4] sm:$0xf]
    %v3225 = vld [vmem:[%s3038 + $0x2e8] sm:$0xf]
    %v3226 = vld [vmem:[%s3038 + $0x2ec] sm:$0xf]
    %v3227 = vld [vmem:[%s3038 + $0x2f0] sm:$0xf]
    %v3228 = vld [vmem:[%s3038 + $0x2f4] sm:$0xf]
    %v3229 = vld [vmem:[%s3038 + $0x2f8] sm:$0xf]
    %v3230 = vld [vmem:[%s3038 + $0x2fc] sm:$0xf]
    %v3231 = vld [vmem:[%s3038 + $0x300] sm:$0xf]
    %v3232 = vld [vmem:[%s3038 + $0x304] sm:$0xf]
    %v3233 = vld [vmem:[%s3038 + $0x308] sm:$0xf]
    %v3234 = vld [vmem:[%s3038 + $0x30c] sm:$0xf]
    %v3235 = vld [vmem:[%s3038 + $0x310] sm:$0xf]
    %v3236 = vld [vmem:[%s3038 + $0x314] sm:$0xf]
    %v3237 = vld [vmem:[%s3038 + $0x318] sm:$0xf]
    %v3238 = vld [vmem:[%s3038 + $0x31c] sm:$0xf]
    %v3239 = vld [vmem:[%s3038 + $0x320] sm:$0xf]
    %v3240 = vld [vmem:[%s3038 + $0x324] sm:$0xf]
    %v3241 = vld [vmem:[%s3038 + $0x328] sm:$0xf]
    %v3242 = vld [vmem:[%s3038 + $0x32c] sm:$0xf]
    %v3243 = vld [vmem:[%s3038 + $0x330] sm:$0xf]
    %v3244 = vld [vmem:[%s3038 + $0x334] sm:$0xf]
    %v3245 = vld [vmem:[%s3038 + $0x338] sm:$0xf]
    %v3246 = vld [vmem:[%s3038 + $0x33c] sm:$0xf]
    %v3247 = vld [vmem:[%s3038 + $0x340] sm:$0xf]
    %v3248 = vld [vmem:[%s3038 + $0x344] sm:$0xf]
    %v3249 = vld [vmem:[%s3038 + $0x348] sm:$0xf]
    %v3250 = vld [vmem:[%s3038 + $0x34c] sm:$0xf]
    %v3251 = vld [vmem:[%s3038 + $0x350] sm:$0xf]
    %v3252 = vld [vmem:[%s3038 + $0x354] sm:$0xf]
    %v3253 = vld [vmem:[%s3038 + $0x358] sm:$0xf]
    %v3254 = vld [vmem:[%s3038 + $0x35c] sm:$0xf]
    %v3255 = vld [vmem:[%s3038 + $0x360] sm:$0xf]
    %v3256 = vld [vmem:[%s3038 + $0x364] sm:$0xf]
    %v3257 = vld [vmem:[%s3038 + $0x368] sm:$0xf]
    %v3258 = vld [vmem:[%s3038 + $0x36c] sm:$0xf]
    %v3259 = vld [vmem:[%s3038 + $0x370] sm:$0xf]
    %v3260 = vld [vmem:[%s3038 + $0x374] sm:$0xf]
    %v3261 = vld [vmem:[%s3038 + $0x378] sm:$0xf]
    %v3262 = vld [vmem:[%s3038 + $0x37c] sm:$0xf]
    %v3263 = vld [vmem:[%s3038 + $0x380] sm:$0xf]
    %v3264 = vld [vmem:[%s3038 + $0x384] sm:$0xf]
    %v3265 = vld [vmem:[%s3038 + $0x388] sm:$0xf]
    %v3266 = vld [vmem:[%s3038 + $0x38c] sm:$0xf]
    %v3267 = vld [vmem:[%s3038 + $0x390] sm:$0xf]
    %v3268 = vld [vmem:[%s3038 + $0x394] sm:$0xf]
    %v3269 = vld [vmem:[%s3038 + $0x398] sm:$0xf]
    %v3270 = vld [vmem:[%s3038 + $0x39c] sm:$0xf]
    %v3271 = vld [vmem:[%s3038 + $0x3a0] sm:$0xf]
    %v3272 = vld [vmem:[%s3038 + $0x3a4] sm:$0xf]
    %v3273 = vld [vmem:[%s3038 + $0x3a8] sm:$0xf]
    %v3274 = vld [vmem:[%s3038 + $0x3ac] sm:$0xf]
    %v3275 = vld [vmem:[%s3038 + $0x3b0] sm:$0xf]
    %v3276 = vld [vmem:[%s3038 + $0x3b4] sm:$0xf]
    %v3277 = vld [vmem:[%s3038 + $0x3b8] sm:$0xf]
    %v3278 = vld [vmem:[%s3038 + $0x3bc] sm:$0xf]
    %v3279 = vld [vmem:[%s3038 + $0x3c0] sm:$0xf]
    %v3280 = vld [vmem:[%s3038 + $0x3c4] sm:$0xf]
    %v3281 = vld [vmem:[%s3038 + $0x3c8] sm:$0xf]
    %v3282 = vld [vmem:[%s3038 + $0x3cc] sm:$0xf]
    %v3283 = vld [vmem:[%s3038 + $0x3d0] sm:$0xf]
    %v3284 = vld [vmem:[%s3038 + $0x3d4] sm:$0xf]
    %v3285 = vld [vmem:[%s3038 + $0x3d8] sm:$0xf]
    %v3286 = vld [vmem:[%s3038 + $0x3dc] sm:$0xf]
    %v3287 = vld [vmem:[%s3038 + $0x3e0] sm:$0xf]
    %v3288 = vld [vmem:[%s3038 + $0x3e4] sm:$0xf]
    %v3289 = vld [vmem:[%s3038 + $0x3e8] sm:$0xf]
    %v3290 = vld [vmem:[%s3038 + $0x3ec] sm:$0xf]
    %v3291 = vld [vmem:[%s3038 + $0x3f0] sm:$0xf]
    %v3292 = vld [vmem:[%s3038 + $0x3f4] sm:$0xf]
    %v3293 = vld [vmem:[%s3038 + $0x3f8] sm:$0xf]
    %v3294 = vld [vmem:[%s3038 + $0x3fc] sm:$0xf]
    %s3295 = scalar_lea.vmem %s12, 1
    %v3296 = vld [vmem:[%s3295] sm:$0x1]
    %v3298 = vlaneseq
    %v3299 = vshrl.u32 %v3298, 7
    %v3300 = vsub.s32 0, %v3299
    %v3301 = vrot.slane %v3296, %v3300
    %v3559 = vunpack.c.l.b16 %v3039
    %v3560 = vunpack.c.l.b16 %v3040
    %v3561 = vunpack.c.l.b16 %v3041
    %v3562 = vunpack.c.l.b16 %v3042
    %v3563 = vunpack.c.l.b16 %v3043
    %v3564 = vunpack.c.l.b16 %v3044
    %v3565 = vunpack.c.l.b16 %v3045
    %v3566 = vunpack.c.l.b16 %v3046
    %v3567 = vunpack.c.l.b16 %v3047
    %v3568 = vunpack.c.l.b16 %v3048
    %v3569 = vunpack.c.l.b16 %v3049
    %v3570 = vunpack.c.l.b16 %v3050
    %v3571 = vunpack.c.l.b16 %v3051
    %v3572 = vunpack.c.l.b16 %v3052
    %v3573 = vunpack.c.l.b16 %v3053
    %v3574 = vunpack.c.l.b16 %v3054
    %v3575 = vunpack.c.l.b16 %v3055
    %v3576 = vunpack.c.l.b16 %v3056
    %v3577 = vunpack.c.l.b16 %v3057
    %v3578 = vunpack.c.l.b16 %v3058
    %v3579 = vunpack.c.l.b16 %v3059
    %v3580 = vunpack.c.l.b16 %v3060
    %v3581 = vunpack.c.l.b16 %v3061
    %v3582 = vunpack.c.l.b16 %v3062
    %v3583 = vunpack.c.l.b16 %v3063
    %v3584 = vunpack.c.l.b16 %v3064
    %v3585 = vunpack.c.l.b16 %v3065
    %v3586 = vunpack.c.l.b16 %v3066
    %v3587 = vunpack.c.l.b16 %v3067
    %v3588 = vunpack.c.l.b16 %v3068
    %v3589 = vunpack.c.l.b16 %v3069
    %v3590 = vunpack.c.l.b16 %v3070
    %v3591 = vunpack.c.l.b16 %v3071
    %v3592 = vunpack.c.l.b16 %v3072
    %v3593 = vunpack.c.l.b16 %v3073
    %v3594 = vunpack.c.l.b16 %v3074
    %v3595 = vunpack.c.l.b16 %v3075
    %v3596 = vunpack.c.l.b16 %v3076
    %v3597 = vunpack.c.l.b16 %v3077
    %v3598 = vunpack.c.l.b16 %v3078
    %v3599 = vunpack.c.l.b16 %v3079
    %v3600 = vunpack.c.l.b16 %v3080
    %v3601 = vunpack.c.l.b16 %v3081
    %v3602 = vunpack.c.l.b16 %v3082
    %v3603 = vunpack.c.l.b16 %v3083
    %v3604 = vunpack.c.l.b16 %v3084
    %v3605 = vunpack.c.l.b16 %v3085
    %v3606 = vunpack.c.l.b16 %v3086
    %v3607 = vunpack.c.l.b16 %v3087
    %v3608 = vunpack.c.l.b16 %v3088
    %v3609 = vunpack.c.l.b16 %v3089
    %v3610 = vunpack.c.l.b16 %v3090
    %v3611 = vunpack.c.l.b16 %v3091
    %v3612 = vunpack.c.l.b16 %v3092
    %v3613 = vunpack.c.l.b16 %v3093
    %v3614 = vunpack.c.l.b16 %v3094
    %v3615 = vunpack.c.l.b16 %v3095
    %v3616 = vunpack.c.l.b16 %v3096
    %v3617 = vunpack.c.l.b16 %v3097
    %v3618 = vunpack.c.l.b16 %v3098
    %v3619 = vunpack.c.l.b16 %v3099
    %v3620 = vunpack.c.l.b16 %v3100
    %v3621 = vunpack.c.l.b16 %v3101
    %v3622 = vunpack.c.l.b16 %v3102
    %v3623 = vunpack.c.l.b16 %v3103
    %v3624 = vunpack.c.l.b16 %v3104
    %v3625 = vunpack.c.l.b16 %v3105
    %v3626 = vunpack.c.l.b16 %v3106
    %v3627 = vunpack.c.l.b16 %v3107
    %v3628 = vunpack.c.l.b16 %v3108
    %v3629 = vunpack.c.l.b16 %v3109
    %v3630 = vunpack.c.l.b16 %v3110
    %v3631 = vunpack.c.l.b16 %v3111
    %v3632 = vunpack.c.l.b16 %v3112
    %v3633 = vunpack.c.l.b16 %v3113
    %v3634 = vunpack.c.l.b16 %v3114
    %v3635 = vunpack.c.l.b16 %v3115
    %v3636 = vunpack.c.l.b16 %v3116
    %v3637 = vunpack.c.l.b16 %v3117
    %v3638 = vunpack.c.l.b16 %v3118
    %v3639 = vunpack.c.l.b16 %v3119
    %v3640 = vunpack.c.l.b16 %v3120
    %v3641 = vunpack.c.l.b16 %v3121
    %v3642 = vunpack.c.l.b16 %v3122
    %v3643 = vunpack.c.l.b16 %v3123
    %v3644 = vunpack.c.l.b16 %v3124
    %v3645 = vunpack.c.l.b16 %v3125
    %v3646 = vunpack.c.l.b16 %v3126
    %v3647 = vunpack.c.l.b16 %v3127
    %v3648 = vunpack.c.l.b16 %v3128
    %v3649 = vunpack.c.l.b16 %v3129
    %v3650 = vunpack.c.l.b16 %v3130
    %v3651 = vunpack.c.l.b16 %v3131
    %v3652 = vunpack.c.l.b16 %v3132
    %v3653 = vunpack.c.l.b16 %v3133
    %v3654 = vunpack.c.l.b16 %v3134
    %v3655 = vunpack.c.l.b16 %v3135
    %v3656 = vunpack.c.l.b16 %v3136
    %v3657 = vunpack.c.l.b16 %v3137
    %v3658 = vunpack.c.l.b16 %v3138
    %v3659 = vunpack.c.l.b16 %v3139
    %v3660 = vunpack.c.l.b16 %v3140
    %v3661 = vunpack.c.l.b16 %v3141
    %v3662 = vunpack.c.l.b16 %v3142
    %v3663 = vunpack.c.l.b16 %v3143
    %v3664 = vunpack.c.l.b16 %v3144
    %v3665 = vunpack.c.l.b16 %v3145
    %v3666 = vunpack.c.l.b16 %v3146
    %v3667 = vunpack.c.l.b16 %v3147
    %v3668 = vunpack.c.l.b16 %v3148
    %v3669 = vunpack.c.l.b16 %v3149
    %v3670 = vunpack.c.l.b16 %v3150
    %v3671 = vunpack.c.l.b16 %v3151
    %v3672 = vunpack.c.l.b16 %v3152
    %v3673 = vunpack.c.l.b16 %v3153
    %v3674 = vunpack.c.l.b16 %v3154
    %v3675 = vunpack.c.l.b16 %v3155
    %v3676 = vunpack.c.l.b16 %v3156
    %v3677 = vunpack.c.l.b16 %v3157
    %v3678 = vunpack.c.l.b16 %v3158
    %v3679 = vunpack.c.l.b16 %v3159
    %v3680 = vunpack.c.l.b16 %v3160
    %v3681 = vunpack.c.l.b16 %v3161
    %v3682 = vunpack.c.l.b16 %v3162
    %v3683 = vunpack.c.l.b16 %v3163
    %v3684 = vunpack.c.l.b16 %v3164
    %v3685 = vunpack.c.l.b16 %v3165
    %v3686 = vunpack.c.l.b16 %v3166
    %v3687 = vunpack.c.l.b16 %v3167
    %v3688 = vunpack.c.l.b16 %v3168
    %v3689 = vunpack.c.l.b16 %v3169
    %v3690 = vunpack.c.l.b16 %v3170
    %v3691 = vunpack.c.l.b16 %v3171
    %v3692 = vunpack.c.l.b16 %v3172
    %v3693 = vunpack.c.l.b16 %v3173
    %v3694 = vunpack.c.l.b16 %v3174
    %v3695 = vunpack.c.l.b16 %v3175
    %v3696 = vunpack.c.l.b16 %v3176
    %v3697 = vunpack.c.l.b16 %v3177
    %v3698 = vunpack.c.l.b16 %v3178
    %v3699 = vunpack.c.l.b16 %v3179
    %v3700 = vunpack.c.l.b16 %v3180
    %v3701 = vunpack.c.l.b16 %v3181
    %v3702 = vunpack.c.l.b16 %v3182
    %v3703 = vunpack.c.l.b16 %v3183
    %v3704 = vunpack.c.l.b16 %v3184
    %v3705 = vunpack.c.l.b16 %v3185
    %v3706 = vunpack.c.l.b16 %v3186
    %v3707 = vunpack.c.l.b16 %v3187
    %v3708 = vunpack.c.l.b16 %v3188
    %v3709 = vunpack.c.l.b16 %v3189
    %v3710 = vunpack.c.l.b16 %v3190
    %v3711 = vunpack.c.l.b16 %v3191
    %v3712 = vunpack.c.l.b16 %v3192
    %v3713 = vunpack.c.l.b16 %v3193
    %v3714 = vunpack.c.l.b16 %v3194
    %v3715 = vunpack.c.l.b16 %v3195
    %v3716 = vunpack.c.l.b16 %v3196
    %v3717 = vunpack.c.l.b16 %v3197
    %v3718 = vunpack.c.l.b16 %v3198
    %v3719 = vunpack.c.l.b16 %v3199
    %v3720 = vunpack.c.l.b16 %v3200
    %v3721 = vunpack.c.l.b16 %v3201
    %v3722 = vunpack.c.l.b16 %v3202
    %v3723 = vunpack.c.l.b16 %v3203
    %v3724 = vunpack.c.l.b16 %v3204
    %v3725 = vunpack.c.l.b16 %v3205
    %v3726 = vunpack.c.l.b16 %v3206
    %v3727 = vunpack.c.l.b16 %v3207
    %v3728 = vunpack.c.l.b16 %v3208
    %v3729 = vunpack.c.l.b16 %v3209
    %v3730 = vunpack.c.l.b16 %v3210
    %v3731 = vunpack.c.l.b16 %v3211
    %v3732 = vunpack.c.l.b16 %v3212
    %v3733 = vunpack.c.l.b16 %v3213
    %v3734 = vunpack.c.l.b16 %v3214
    %v3735 = vunpack.c.l.b16 %v3215
    %v3736 = vunpack.c.l.b16 %v3216
    %v3737 = vunpack.c.l.b16 %v3217
    %v3738 = vunpack.c.l.b16 %v3218
    %v3739 = vunpack.c.l.b16 %v3219
    %v3740 = vunpack.c.l.b16 %v3220
    %v3741 = vunpack.c.l.b16 %v3221
    %v3742 = vunpack.c.l.b16 %v3222
    %v3743 = vunpack.c.l.b16 %v3223
    %v3744 = vunpack.c.l.b16 %v3224
    %v3745 = vunpack.c.l.b16 %v3225
    %v3746 = vunpack.c.l.b16 %v3226
    %v3747 = vunpack.c.l.b16 %v3227
    %v3748 = vunpack.c.l.b16 %v3228
    %v3749 = vunpack.c.l.b16 %v3229
    %v3750 = vunpack.c.l.b16 %v3230
    %v3751 = vunpack.c.l.b16 %v3231
    %v3752 = vunpack.c.l.b16 %v3232
    %v3753 = vunpack.c.l.b16 %v3233
    %v3754 = vunpack.c.l.b16 %v3234
    %v3755 = vunpack.c.l.b16 %v3235
    %v3756 = vunpack.c.l.b16 %v3236
    %v3757 = vunpack.c.l.b16 %v3237
    %v3758 = vunpack.c.l.b16 %v3238
    %v3759 = vunpack.c.l.b16 %v3239
    %v3760 = vunpack.c.l.b16 %v3240
    %v3761 = vunpack.c.l.b16 %v3241
    %v3762 = vunpack.c.l.b16 %v3242
    %v3763 = vunpack.c.l.b16 %v3243
    %v3764 = vunpack.c.l.b16 %v3244
    %v3765 = vunpack.c.l.b16 %v3245
    %v3766 = vunpack.c.l.b16 %v3246
    %v3767 = vunpack.c.l.b16 %v3247
    %v3768 = vunpack.c.l.b16 %v3248
    %v3769 = vunpack.c.l.b16 %v3249
    %v3770 = vunpack.c.l.b16 %v3250
    %v3771 = vunpack.c.l.b16 %v3251
    %v3772 = vunpack.c.l.b16 %v3252
    %v3773 = vunpack.c.l.b16 %v3253
    %v3774 = vunpack.c.l.b16 %v3254
    %v3775 = vunpack.c.l.b16 %v3255
    %v3776 = vunpack.c.l.b16 %v3256
    %v3777 = vunpack.c.l.b16 %v3257
    %v3778 = vunpack.c.l.b16 %v3258
    %v3779 = vunpack.c.l.b16 %v3259
    %v3780 = vunpack.c.l.b16 %v3260
    %v3781 = vunpack.c.l.b16 %v3261
    %v3782 = vunpack.c.l.b16 %v3262
    %v3783 = vunpack.c.l.b16 %v3263
    %v3784 = vunpack.c.l.b16 %v3264
    %v3785 = vunpack.c.l.b16 %v3265
    %v3786 = vunpack.c.l.b16 %v3266
    %v3787 = vunpack.c.l.b16 %v3267
    %v3788 = vunpack.c.l.b16 %v3268
    %v3789 = vunpack.c.l.b16 %v3269
    %v3790 = vunpack.c.l.b16 %v3270
    %v3791 = vunpack.c.l.b16 %v3271
    %v3792 = vunpack.c.l.b16 %v3272
    %v3793 = vunpack.c.l.b16 %v3273
    %v3794 = vunpack.c.l.b16 %v3274
    %v3795 = vunpack.c.l.b16 %v3275
    %v3796 = vunpack.c.l.b16 %v3276
    %v3797 = vunpack.c.l.b16 %v3277
    %v3798 = vunpack.c.l.b16 %v3278
    %v3799 = vunpack.c.l.b16 %v3279
    %v3800 = vunpack.c.l.b16 %v3280
    %v3801 = vunpack.c.l.b16 %v3281
    %v3802 = vunpack.c.l.b16 %v3282
    %v3803 = vunpack.c.l.b16 %v3283
    %v3804 = vunpack.c.l.b16 %v3284
    %v3805 = vunpack.c.l.b16 %v3285
    %v3806 = vunpack.c.l.b16 %v3286
    %v3807 = vunpack.c.l.b16 %v3287
    %v3808 = vunpack.c.l.b16 %v3288
    %v3809 = vunpack.c.l.b16 %v3289
    %v3810 = vunpack.c.l.b16 %v3290
    %v3811 = vunpack.c.l.b16 %v3291
    %v3812 = vunpack.c.l.b16 %v3292
    %v3813 = vunpack.c.l.b16 %v3293
    %v3814 = vunpack.c.l.b16 %v3294
    %v3815 = vpack.c.b16 %v3560, %v3559
    %v3816 = vpack.c.b16 %v3562, %v3561
    %v3817 = vpack.c.b16 %v3564, %v3563
    %v3818 = vpack.c.b16 %v3566, %v3565
    %v3819 = vpack.c.b16 %v3568, %v3567
    %v3820 = vpack.c.b16 %v3570, %v3569
    %v3821 = vpack.c.b16 %v3572, %v3571
    %v3822 = vpack.c.b16 %v3574, %v3573
    %v3823 = vpack.c.b16 %v3576, %v3575
    %v3824 = vpack.c.b16 %v3578, %v3577
    %v3825 = vpack.c.b16 %v3580, %v3579
    %v3826 = vpack.c.b16 %v3582, %v3581
    %v3827 = vpack.c.b16 %v3584, %v3583
    %v3828 = vpack.c.b16 %v3586, %v3585
    %v3829 = vpack.c.b16 %v3588, %v3587
    %v3830 = vpack.c.b16 %v3590, %v3589
    %v3831 = vpack.c.b16 %v3592, %v3591
    %v3832 = vpack.c.b16 %v3594, %v3593
    %v3833 = vpack.c.b16 %v3596, %v3595
    %v3834 = vpack.c.b16 %v3598, %v3597
    %v3835 = vpack.c.b16 %v3600, %v3599
    %v3836 = vpack.c.b16 %v3602, %v3601
    %v3837 = vpack.c.b16 %v3604, %v3603
    %v3838 = vpack.c.b16 %v3606, %v3605
    %v3839 = vpack.c.b16 %v3608, %v3607
    %v3840 = vpack.c.b16 %v3610, %v3609
    %v3841 = vpack.c.b16 %v3612, %v3611
    %v3842 = vpack.c.b16 %v3614, %v3613
    %v3843 = vpack.c.b16 %v3616, %v3615
    %v3844 = vpack.c.b16 %v3618, %v3617
    %v3845 = vpack.c.b16 %v3620, %v3619
    %v3846 = vpack.c.b16 %v3622, %v3621
    %v3847 = vpack.c.b16 %v3624, %v3623
    %v3848 = vpack.c.b16 %v3626, %v3625
    %v3849 = vpack.c.b16 %v3628, %v3627
    %v3850 = vpack.c.b16 %v3630, %v3629
    %v3851 = vpack.c.b16 %v3632, %v3631
    %v3852 = vpack.c.b16 %v3634, %v3633
    %v3853 = vpack.c.b16 %v3636, %v3635
    %v3854 = vpack.c.b16 %v3638, %v3637
    %v3855 = vpack.c.b16 %v3640, %v3639
    %v3856 = vpack.c.b16 %v3642, %v3641
    %v3857 = vpack.c.b16 %v3644, %v3643
    %v3858 = vpack.c.b16 %v3646, %v3645
    %v3859 = vpack.c.b16 %v3648, %v3647
    %v3860 = vpack.c.b16 %v3650, %v3649
    %v3861 = vpack.c.b16 %v3652, %v3651
    %v3862 = vpack.c.b16 %v3654, %v3653
    %v3863 = vpack.c.b16 %v3656, %v3655
    %v3864 = vpack.c.b16 %v3658, %v3657
    %v3865 = vpack.c.b16 %v3660, %v3659
    %v3866 = vpack.c.b16 %v3662, %v3661
    %v3867 = vpack.c.b16 %v3664, %v3663
    %v3868 = vpack.c.b16 %v3666, %v3665
    %v3869 = vpack.c.b16 %v3668, %v3667
    %v3870 = vpack.c.b16 %v3670, %v3669
    %v3871 = vpack.c.b16 %v3672, %v3671
    %v3872 = vpack.c.b16 %v3674, %v3673
    %v3873 = vpack.c.b16 %v3676, %v3675
    %v3874 = vpack.c.b16 %v3678, %v3677
    %v3875 = vpack.c.b16 %v3680, %v3679
    %v3876 = vpack.c.b16 %v3682, %v3681
    %v3877 = vpack.c.b16 %v3684, %v3683
    %v3878 = vpack.c.b16 %v3686, %v3685
    %v3879 = vpack.c.b16 %v3688, %v3687
    %v3880 = vpack.c.b16 %v3690, %v3689
    %v3881 = vpack.c.b16 %v3692, %v3691
    %v3882 = vpack.c.b16 %v3694, %v3693
    %v3883 = vpack.c.b16 %v3696, %v3695
    %v3884 = vpack.c.b16 %v3698, %v3697
    %v3885 = vpack.c.b16 %v3700, %v3699
    %v3886 = vpack.c.b16 %v3702, %v3701
    %v3887 = vpack.c.b16 %v3704, %v3703
    %v3888 = vpack.c.b16 %v3706, %v3705
    %v3889 = vpack.c.b16 %v3708, %v3707
    %v3890 = vpack.c.b16 %v3710, %v3709
    %v3891 = vpack.c.b16 %v3712, %v3711
    %v3892 = vpack.c.b16 %v3714, %v3713
    %v3893 = vpack.c.b16 %v3716, %v3715
    %v3894 = vpack.c.b16 %v3718, %v3717
    %v3895 = vpack.c.b16 %v3720, %v3719
    %v3896 = vpack.c.b16 %v3722, %v3721
    %v3897 = vpack.c.b16 %v3724, %v3723
    %v3898 = vpack.c.b16 %v3726, %v3725
    %v3899 = vpack.c.b16 %v3728, %v3727
    %v3900 = vpack.c.b16 %v3730, %v3729
    %v3901 = vpack.c.b16 %v3732, %v3731
    %v3902 = vpack.c.b16 %v3734, %v3733
    %v3903 = vpack.c.b16 %v3736, %v3735
    %v3904 = vpack.c.b16 %v3738, %v3737
    %v3905 = vpack.c.b16 %v3740, %v3739
    %v3906 = vpack.c.b16 %v3742, %v3741
    %v3907 = vpack.c.b16 %v3744, %v3743
    %v3908 = vpack.c.b16 %v3746, %v3745
    %v3909 = vpack.c.b16 %v3748, %v3747
    %v3910 = vpack.c.b16 %v3750, %v3749
    %v3911 = vpack.c.b16 %v3752, %v3751
    %v3912 = vpack.c.b16 %v3754, %v3753
    %v3913 = vpack.c.b16 %v3756, %v3755
    %v3914 = vpack.c.b16 %v3758, %v3757
    %v3915 = vpack.c.b16 %v3760, %v3759
    %v3916 = vpack.c.b16 %v3762, %v3761
    %v3917 = vpack.c.b16 %v3764, %v3763
    %v3918 = vpack.c.b16 %v3766, %v3765
    %v3919 = vpack.c.b16 %v3768, %v3767
    %v3920 = vpack.c.b16 %v3770, %v3769
    %v3921 = vpack.c.b16 %v3772, %v3771
    %v3922 = vpack.c.b16 %v3774, %v3773
    %v3923 = vpack.c.b16 %v3776, %v3775
    %v3924 = vpack.c.b16 %v3778, %v3777
    %v3925 = vpack.c.b16 %v3780, %v3779
    %v3926 = vpack.c.b16 %v3782, %v3781
    %v3927 = vpack.c.b16 %v3784, %v3783
    %v3928 = vpack.c.b16 %v3786, %v3785
    %v3929 = vpack.c.b16 %v3788, %v3787
    %v3930 = vpack.c.b16 %v3790, %v3789
    %v3931 = vpack.c.b16 %v3792, %v3791
    %v3932 = vpack.c.b16 %v3794, %v3793
    %v3933 = vpack.c.b16 %v3796, %v3795
    %v3934 = vpack.c.b16 %v3798, %v3797
    %v3935 = vpack.c.b16 %v3800, %v3799
    %v3936 = vpack.c.b16 %v3802, %v3801
    %v3937 = vpack.c.b16 %v3804, %v3803
    %v3938 = vpack.c.b16 %v3806, %v3805
    %v3939 = vpack.c.b16 %v3808, %v3807
    %v3940 = vpack.c.b16 %v3810, %v3809
    %v3941 = vpack.c.b16 %v3812, %v3811
    %v3942 = vpack.c.b16 %v3814, %v3813
    %4071 = vmatprep.subr.bf16.mxu0 0
    %4072 = vmatpush1.bf16.msra.mxu0 %v3822
    %4073 = vmatprep.subr.bf16.mxu0 0
    %4074 = vmatpush1.bf16.msra.mxu0 %v3821
    %4075 = vmatprep.subr.bf16.mxu0 0
    %4076 = vmatpush1.bf16.msra.mxu0 %v3820
    %4077 = vmatprep.subr.bf16.mxu0 0
    %4078 = vmatpush1.bf16.msra.mxu0 %v3819
    %4079 = vmatprep.subr.bf16.mxu0 0
    %4080 = vmatpush1.bf16.msra.mxu0 %v3818
    %4081 = vmatprep.subr.bf16.mxu0 0
    %4082 = vmatpush1.bf16.msra.mxu0 %v3817
    %4083 = vmatprep.subr.bf16.mxu0 0
    %4084 = vmatpush1.bf16.msra.mxu0 %v3816
    %4085 = vmatprep.subr.bf16.mxu0 0
    %4086 = vmatpush1.bf16.msra.mxu0 %v3815
    %4087 = vmatprep.subr.bf16.mxu0 0
    %4088 = vmatpush2.bf16.msra.mxu0 %v3830
    %4089 = vmatprep.subr.bf16.mxu0 0
    %4090 = vmatpush2.bf16.msra.mxu0 %v3829
    %4091 = vmatprep.subr.bf16.mxu0 0
    %4092 = vmatpush2.bf16.msra.mxu0 %v3828
    %4093 = vmatprep.subr.bf16.mxu0 0
    %4094 = vmatpush2.bf16.msra.mxu0 %v3827
    %4095 = vmatprep.subr.bf16.mxu0 0
    %4096 = vmatpush2.bf16.msra.mxu0 %v3826
    %4097 = vmatprep.subr.bf16.mxu0 0
    %4098 = vmatpush2.bf16.msra.mxu0 %v3825
    %4099 = vmatprep.subr.bf16.mxu0 0
    %4100 = vmatpush2.bf16.msra.mxu0 %v3824
    %4101 = vmatprep.subr.bf16.mxu0 0
    %4102 = vmatpush2.bf16.msra.mxu0 %v3823
    %4103 = vmatprep.mubr.bf16.mxu0 %v3023
    %4104 = vmatmul.mubr.bf16.gmra.mxu0 %v3022
    %v4105 = vpop.f32.mrf.mxu0
    %v4106 = vadd.f32 %v3301, %v4105
    %v4107 = vpop.f32.mrf.mxu0
    %v4108 = vpop.f32.mrf.mxu0
    %v4109 = vpop.f32.mrf.mxu0
    %4110 = vdwg.mxu0
    %4111 = vmatprep.subr.bf16.mxu0 0
    %4112 = vmatpush1.bf16.msra.mxu0 %v3838
    %4113 = vmatprep.subr.bf16.mxu0 0
    %4114 = vmatpush1.bf16.msra.mxu0 %v3837
    %4115 = vmatprep.subr.bf16.mxu0 0
    %4116 = vmatpush1.bf16.msra.mxu0 %v3836
    %4117 = vmatprep.subr.bf16.mxu0 0
    %4118 = vmatpush1.bf16.msra.mxu0 %v3835
    %4119 = vmatprep.subr.bf16.mxu0 0
    %4120 = vmatpush1.bf16.msra.mxu0 %v3834
    %4121 = vmatprep.subr.bf16.mxu0 0
    %4122 = vmatpush1.bf16.msra.mxu0 %v3833
    %4123 = vmatprep.subr.bf16.mxu0 0
    %4124 = vmatpush1.bf16.msra.mxu0 %v3832
    %4125 = vmatprep.subr.bf16.mxu0 0
    %4126 = vmatpush1.bf16.msra.mxu0 %v3831
    %4127 = vmatprep.subr.bf16.mxu0 0
    %4128 = vmatpush2.bf16.msra.mxu0 %v3846
    %4129 = vmatprep.subr.bf16.mxu0 0
    %4130 = vmatpush2.bf16.msra.mxu0 %v3845
    %4131 = vmatprep.subr.bf16.mxu0 0
    %4132 = vmatpush2.bf16.msra.mxu0 %v3844
    %4133 = vmatprep.subr.bf16.mxu0 0
    %4134 = vmatpush2.bf16.msra.mxu0 %v3843
    %4135 = vmatprep.subr.bf16.mxu0 0
    %4136 = vmatpush2.bf16.msra.mxu0 %v3842
    %4137 = vmatprep.subr.bf16.mxu0 0
    %4138 = vmatpush2.bf16.msra.mxu0 %v3841
    %4139 = vmatprep.subr.bf16.mxu0 0
    %4140 = vmatpush2.bf16.msra.mxu0 %v3840
    %4141 = vmatprep.subr.bf16.mxu0 0
    %4142 = vmatpush2.bf16.msra.mxu0 %v3839
    %4143 = vmatprep.mubr.bf16.mxu0 %v3025
    %4144 = vmatmul.mubr.bf16.gmra.mxu0 %v3024
    %v4145 = vpop.f32.mrf.mxu0
    %v4146 = vadd.f32 %v4106, %v4145
    %v4147 = vpop.f32.mrf.mxu0
    %v4148 = vpop.f32.mrf.mxu0
    %v4149 = vpop.f32.mrf.mxu0
    %4150 = vdwg.mxu0
    %4151 = vmatprep.subr.bf16.mxu0 0
    %4152 = vmatpush1.bf16.msra.mxu0 %v3854
    %4153 = vmatprep.subr.bf16.mxu0 0
    %4154 = vmatpush1.bf16.msra.mxu0 %v3853
    %4155 = vmatprep.subr.bf16.mxu0 0
    %4156 = vmatpush1.bf16.msra.mxu0 %v3852
    %4157 = vmatprep.subr.bf16.mxu0 0
    %4158 = vmatpush1.bf16.msra.mxu0 %v3851
    %4159 = vmatprep.subr.bf16.mxu0 0
    %4160 = vmatpush1.bf16.msra.mxu0 %v3850
    %4161 = vmatprep.subr.bf16.mxu0 0
    %4162 = vmatpush1.bf16.msra.mxu0 %v3849
    %4163 = vmatprep.subr.bf16.mxu0 0
    %4164 = vmatpush1.bf16.msra.mxu0 %v3848
    %4165 = vmatprep.subr.bf16.mxu0 0
    %4166 = vmatpush1.bf16.msra.mxu0 %v3847
    %4167 = vmatprep.subr.bf16.mxu0 0
    %4168 = vmatpush2.bf16.msra.mxu0 %v3862
    %4169 = vmatprep.subr.bf16.mxu0 0
    %4170 = vmatpush2.bf16.msra.mxu0 %v3861
    %4171 = vmatprep.subr.bf16.mxu0 0
    %4172 = vmatpush2.bf16.msra.mxu0 %v3860
    %4173 = vmatprep.subr.bf16.mxu0 0
    %4174 = vmatpush2.bf16.msra.mxu0 %v3859
    %4175 = vmatprep.subr.bf16.mxu0 0
    %4176 = vmatpush2.bf16.msra.mxu0 %v3858
    %4177 = vmatprep.subr.bf16.mxu0 0
    %4178 = vmatpush2.bf16.msra.mxu0 %v3857
    %4179 = vmatprep.subr.bf16.mxu0 0
    %4180 = vmatpush2.bf16.msra.mxu0 %v3856
    %4181 = vmatprep.subr.bf16.mxu0 0
    %4182 = vmatpush2.bf16.msra.mxu0 %v3855
    %4183 = vmatprep.mubr.bf16.mxu0 %v3027
    %4184 = vmatmul.mubr.bf16.gmra.mxu0 %v3026
    %v4185 = vpop.f32.mrf.mxu0
    %v4186 = vadd.f32 %v4146, %v4185
    %v4187 = vpop.f32.mrf.mxu0
    %v4188 = vpop.f32.mrf.mxu0
    %v4189 = vpop.f32.mrf.mxu0
    %4190 = vdwg.mxu0
    %4191 = vmatprep.subr.bf16.mxu0 0
    %4192 = vmatpush1.bf16.msra.mxu0 %v3870
    %4193 = vmatprep.subr.bf16.mxu0 0
    %4194 = vmatpush1.bf16.msra.mxu0 %v3869
    %4195 = vmatprep.subr.bf16.mxu0 0
    %4196 = vmatpush1.bf16.msra.mxu0 %v3868
    %4197 = vmatprep.subr.bf16.mxu0 0
    %4198 = vmatpush1.bf16.msra.mxu0 %v3867
    %4199 = vmatprep.subr.bf16.mxu0 0
    %4200 = vmatpush1.bf16.msra.mxu0 %v3866
    %4201 = vmatprep.subr.bf16.mxu0 0
    %4202 = vmatpush1.bf16.msra.mxu0 %v3865
    %4203 = vmatprep.subr.bf16.mxu0 0
    %4204 = vmatpush1.bf16.msra.mxu0 %v3864
    %4205 = vmatprep.subr.bf16.mxu0 0
    %4206 = vmatpush1.bf16.msra.mxu0 %v3863
    %4207 = vmatprep.subr.bf16.mxu0 0
    %4208 = vmatpush2.bf16.msra.mxu0 %v3878
    %4209 = vmatprep.subr.bf16.mxu0 0
    %4210 = vmatpush2.bf16.msra.mxu0 %v3877
    %4211 = vmatprep.subr.bf16.mxu0 0
    %4212 = vmatpush2.bf16.msra.mxu0 %v3876
    %4213 = vmatprep.subr.bf16.mxu0 0
    %4214 = vmatpush2.bf16.msra.mxu0 %v3875
    %4215 = vmatprep.subr.bf16.mxu0 0
    %4216 = vmatpush2.bf16.msra.mxu0 %v3874
    %4217 = vmatprep.subr.bf16.mxu0 0
    %4218 = vmatpush2.bf16.msra.mxu0 %v3873
    %4219 = vmatprep.subr.bf16.mxu0 0
    %4220 = vmatpush2.bf16.msra.mxu0 %v3872
    %4221 = vmatprep.subr.bf16.mxu0 0
    %4222 = vmatpush2.bf16.msra.mxu0 %v3871
    %4223 = vmatprep.mubr.bf16.mxu0 %v3029
    %4224 = vmatmul.mubr.bf16.gmra.mxu0 %v3028
    %v4225 = vpop.f32.mrf.mxu0
    %v4226 = vadd.f32 %v4186, %v4225
    %v4227 = vpop.f32.mrf.mxu0
    %v4228 = vpop.f32.mrf.mxu0
    %v4229 = vpop.f32.mrf.mxu0
    %4230 = vdwg.mxu0
    %4231 = vmatprep.subr.bf16.mxu0 0
    %4232 = vmatpush1.bf16.msra.mxu0 %v3886
    %4233 = vmatprep.subr.bf16.mxu0 0
    %4234 = vmatpush1.bf16.msra.mxu0 %v3885
    %4235 = vmatprep.subr.bf16.mxu0 0
    %4236 = vmatpush1.bf16.msra.mxu0 %v3884
    %4237 = vmatprep.subr.bf16.mxu0 0
    %4238 = vmatpush1.bf16.msra.mxu0 %v3883
    %4239 = vmatprep.subr.bf16.mxu0 0
    %4240 = vmatpush1.bf16.msra.mxu0 %v3882
    %4241 = vmatprep.subr.bf16.mxu0 0
    %4242 = vmatpush1.bf16.msra.mxu0 %v3881
    %4243 = vmatprep.subr.bf16.mxu0 0
    %4244 = vmatpush1.bf16.msra.mxu0 %v3880
    %4245 = vmatprep.subr.bf16.mxu0 0
    %4246 = vmatpush1.bf16.msra.mxu0 %v3879
    %4247 = vmatprep.subr.bf16.mxu0 0
    %4248 = vmatpush2.bf16.msra.mxu0 %v3894
    %4249 = vmatprep.subr.bf16.mxu0 0
    %4250 = vmatpush2.bf16.msra.mxu0 %v3893
    %4251 = vmatprep.subr.bf16.mxu0 0
    %4252 = vmatpush2.bf16.msra.mxu0 %v3892
    %4253 = vmatprep.subr.bf16.mxu0 0
    %4254 = vmatpush2.bf16.msra.mxu0 %v3891
    %4255 = vmatprep.subr.bf16.mxu0 0
    %4256 = vmatpush2.bf16.msra.mxu0 %v3890
    %4257 = vmatprep.subr.bf16.mxu0 0
    %4258 = vmatpush2.bf16.msra.mxu0 %v3889
    %4259 = vmatprep.subr.bf16.mxu0 0
    %4260 = vmatpush2.bf16.msra.mxu0 %v3888
    %4261 = vmatprep.subr.bf16.mxu0 0
    %4262 = vmatpush2.bf16.msra.mxu0 %v3887
    %4263 = vmatprep.mubr.bf16.mxu0 %v3031
    %4264 = vmatmul.mubr.bf16.gmra.mxu0 %v3030
    %v4265 = vpop.f32.mrf.mxu0
    %v4266 = vadd.f32 %v4226, %v4265
    %v4267 = vpop.f32.mrf.mxu0
    %v4268 = vpop.f32.mrf.mxu0
    %v4269 = vpop.f32.mrf.mxu0
    %4270 = vdwg.mxu0
    %4271 = vmatprep.subr.bf16.mxu0 0
    %4272 = vmatpush1.bf16.msra.mxu0 %v3902
    %4273 = vmatprep.subr.bf16.mxu0 0
    %4274 = vmatpush1.bf16.msra.mxu0 %v3901
    %4275 = vmatprep.subr.bf16.mxu0 0
    %4276 = vmatpush1.bf16.msra.mxu0 %v3900
    %4277 = vmatprep.subr.bf16.mxu0 0
    %4278 = vmatpush1.bf16.msra.mxu0 %v3899
    %4279 = vmatprep.subr.bf16.mxu0 0
    %4280 = vmatpush1.bf16.msra.mxu0 %v3898
    %4281 = vmatprep.subr.bf16.mxu0 0
    %4282 = vmatpush1.bf16.msra.mxu0 %v3897
    %4283 = vmatprep.subr.bf16.mxu0 0
    %4284 = vmatpush1.bf16.msra.mxu0 %v3896
    %4285 = vmatprep.subr.bf16.mxu0 0
    %4286 = vmatpush1.bf16.msra.mxu0 %v3895
    %4287 = vmatprep.subr.bf16.mxu0 0
    %4288 = vmatpush2.bf16.msra.mxu0 %v3910
    %4289 = vmatprep.subr.bf16.mxu0 0
    %4290 = vmatpush2.bf16.msra.mxu0 %v3909
    %4291 = vmatprep.subr.bf16.mxu0 0
    %4292 = vmatpush2.bf16.msra.mxu0 %v3908
    %4293 = vmatprep.subr.bf16.mxu0 0
    %4294 = vmatpush2.bf16.msra.mxu0 %v3907
    %4295 = vmatprep.subr.bf16.mxu0 0
    %4296 = vmatpush2.bf16.msra.mxu0 %v3906
    %4297 = vmatprep.subr.bf16.mxu0 0
    %4298 = vmatpush2.bf16.msra.mxu0 %v3905
    %4299 = vmatprep.subr.bf16.mxu0 0
    %4300 = vmatpush2.bf16.msra.mxu0 %v3904
    %4301 = vmatprep.subr.bf16.mxu0 0
    %4302 = vmatpush2.bf16.msra.mxu0 %v3903
    %4303 = vmatprep.mubr.bf16.mxu0 %v3033
    %4304 = vmatmul.mubr.bf16.gmra.mxu0 %v3032
    %v4305 = vpop.f32.mrf.mxu0
    %v4306 = vadd.f32 %v4266, %v4305
    %v4307 = vpop.f32.mrf.mxu0
    %v4308 = vpop.f32.mrf.mxu0
    %v4309 = vpop.f32.mrf.mxu0
    %4310 = vdwg.mxu0
    %4311 = vmatprep.subr.bf16.mxu0 0
    %4312 = vmatpush1.bf16.msra.mxu0 %v3918
    %4313 = vmatprep.subr.bf16.mxu0 0
    %4314 = vmatpush1.bf16.msra.mxu0 %v3917
    %4315 = vmatprep.subr.bf16.mxu0 0
    %4316 = vmatpush1.bf16.msra.mxu0 %v3916
    %4317 = vmatprep.subr.bf16.mxu0 0
    %4318 = vmatpush1.bf16.msra.mxu0 %v3915
    %4319 = vmatprep.subr.bf16.mxu0 0
    %4320 = vmatpush1.bf16.msra.mxu0 %v3914
    %4321 = vmatprep.subr.bf16.mxu0 0
    %4322 = vmatpush1.bf16.msra.mxu0 %v3913
    %4323 = vmatprep.subr.bf16.mxu0 0
    %4324 = vmatpush1.bf16.msra.mxu0 %v3912
    %4325 = vmatprep.subr.bf16.mxu0 0
    %4326 = vmatpush1.bf16.msra.mxu0 %v3911
    %4327 = vmatprep.subr.bf16.mxu0 0
    %4328 = vmatpush2.bf16.msra.mxu0 %v3926
    %4329 = vmatprep.subr.bf16.mxu0 0
    %4330 = vmatpush2.bf16.msra.mxu0 %v3925
    %4331 = vmatprep.subr.bf16.mxu0 0
    %4332 = vmatpush2.bf16.msra.mxu0 %v3924
    %4333 = vmatprep.subr.bf16.mxu0 0
    %4334 = vmatpush2.bf16.msra.mxu0 %v3923
    %4335 = vmatprep.subr.bf16.mxu0 0
    %4336 = vmatpush2.bf16.msra.mxu0 %v3922
    %4337 = vmatprep.subr.bf16.mxu0 0
    %4338 = vmatpush2.bf16.msra.mxu0 %v3921
    %4339 = vmatprep.subr.bf16.mxu0 0
    %4340 = vmatpush2.bf16.msra.mxu0 %v3920
    %4341 = vmatprep.subr.bf16.mxu0 0
    %4342 = vmatpush2.bf16.msra.mxu0 %v3919
    %4343 = vmatprep.mubr.bf16.mxu0 %v3035
    %4344 = vmatmul.mubr.bf16.gmra.mxu0 %v3034
    %v4345 = vpop.f32.mrf.mxu0
    %v4346 = vadd.f32 %v4306, %v4345
    %v4347 = vpop.f32.mrf.mxu0
    %v4348 = vpop.f32.mrf.mxu0
    %v4349 = vpop.f32.mrf.mxu0
    %4350 = vdwg.mxu0
    %4351 = vmatprep.subr.bf16.mxu0 0
    %4352 = vmatpush1.bf16.msra.mxu0 %v3934
    %4353 = vmatprep.subr.bf16.mxu0 0
    %4354 = vmatpush1.bf16.msra.mxu0 %v3933
    %4355 = vmatprep.subr.bf16.mxu0 0
    %4356 = vmatpush1.bf16.msra.mxu0 %v3932
    %4357 = vmatprep.subr.bf16.mxu0 0
    %4358 = vmatpush1.bf16.msra.mxu0 %v3931
    %4359 = vmatprep.subr.bf16.mxu0 0
    %4360 = vmatpush1.bf16.msra.mxu0 %v3930
    %4361 = vmatprep.subr.bf16.mxu0 0
    %4362 = vmatpush1.bf16.msra.mxu0 %v3929
    %4363 = vmatprep.subr.bf16.mxu0 0
    %4364 = vmatpush1.bf16.msra.mxu0 %v3928
    %4365 = vmatprep.subr.bf16.mxu0 0
    %4366 = vmatpush1.bf16.msra.mxu0 %v3927
    %4367 = vmatprep.subr.bf16.mxu0 0
    %4368 = vmatpush2.bf16.msra.mxu0 %v3942
    %4369 = vmatprep.subr.bf16.mxu0 0
    %4370 = vmatpush2.bf16.msra.mxu0 %v3941
    %4371 = vmatprep.subr.bf16.mxu0 0
    %4372 = vmatpush2.bf16.msra.mxu0 %v3940
    %4373 = vmatprep.subr.bf16.mxu0 0
    %4374 = vmatpush2.bf16.msra.mxu0 %v3939
    %4375 = vmatprep.subr.bf16.mxu0 0
    %4376 = vmatpush2.bf16.msra.mxu0 %v3938
    %4377 = vmatprep.subr.bf16.mxu0 0
    %4378 = vmatpush2.bf16.msra.mxu0 %v3937
    %4379 = vmatprep.subr.bf16.mxu0 0
    %4380 = vmatpush2.bf16.msra.mxu0 %v3936
    %4381 = vmatprep.subr.bf16.mxu0 0
    %4382 = vmatpush2.bf16.msra.mxu0 %v3935
    %4383 = vmatprep.mubr.bf16.mxu0 %v3037
    %4384 = vmatmul.mubr.bf16.gmra.mxu0 %v3036
    %v4385 = vpop.f32.mrf.mxu0
    %v4386 = vadd.f32 %v4346, %v4385
    %v4387 = vpop.f32.mrf.mxu0
    %v4388 = vpop.f32.mrf.mxu0
    %v4389 = vpop.f32.mrf.mxu0
    %4390 = vdwg.mxu0
    %v4391 = vadd.f32 %v2395, %v4386
    %s4392 = scalar_lea.vmem %s13, 1
    %v4393 = vld [vmem:[%s4392] sm:$0x1]
    %s4394 = scalar_lea.vmem %s14, 1
    %v4395 = vld [vmem:[%s4394] sm:$0x1]
    %v4396 = vsel %vm245, %v4391, 0.0
    %4397 = vadd.xlane.f32.xlu0 %v4396
    %v4398 = vpop.xlane.xlu0 %4397
    %v4399 = vmul.f32 %v4398, %v249
    %v4400 = vsub.f32 %v4391, %v4399
    %v4401 = vmul.f32 %v4400, %v4400
    %v4402 = vsel %vm245, %v4401, 0.0
    %4403 = vadd.xlane.f32.xlu0 %v4402
    %v4404 = vpop.xlane.xlu0 %4403
    %v4405 = vmul.f32 %v4404, %v249
    %v4406 = vadd.f32 %v4405, 1e-05
    %v4407 = vrsqrt.pop %v4406
    %v4408 = vmul.f32 %v4400, %v4407
    %v4410 = vlaneseq
    %v4411 = vshrl.u32 %v4410, 7
    %v4412 = vsub.s32 0, %v4411
    %v4413 = vrot.slane %v4393, %v4412
    %v4415 = vmul.f32 %v4408, %v4413
    %v4417 = vlaneseq
    %v4418 = vshrl.u32 %v4417, 7
    %v4419 = vsub.s32 0, %v4418
    %v4420 = vrot.slane %v4395, %v4419
    %v4422 = vadd.f32 %v4415, %v4420
    %4423 = vst.msk [vmem:[#allocation4] sm:$0x3] %vm245, %v4422
    %v4424 = vpack.c.bf16 %v4422, %v4422
    %v4425 = vld [vmem:[%s15] sm:$0xf]
    %v4426 = vld [vmem:[%s15 + $0x4] sm:$0xf]
    %v4427 = vld [vmem:[%s15 + $0x8] sm:$0xf]
    %v4428 = vld [vmem:[%s15 + $0xc] sm:$0xf]
    %v4429 = vld [vmem:[%s16] sm:$0x1]
    %v4431 = vlaneseq
    %v4432 = vshrl.u32 %v4431, 7
    %v4433 = vsub.s32 0, %v4432
    %v4434 = vrot.slane %v4429, %v4433
    %v4440 = vunpack.c.l.b16 %v4425
    %v4441 = vunpack.c.l.b16 %v4426
    %v4442 = vunpack.c.l.b16 %v4427
    %v4443 = vunpack.c.l.b16 %v4428
    %v4444 = vpack.c.b16 %v4441, %v4440
    %v4445 = vpack.c.b16 %v4443, %v4442
    %v4449 = vsel %vm198, %v4424, 0
    %4451 = vmatprep.subr.bf16.mxu0 0
    %4452 = vmatpush1.bf16.msra.mxu0 0
    %4453 = vmatprep.subr.bf16.mxu0 0
    %4454 = vmatpush1.bf16.msra.mxu0 0
    %4455 = vmatprep.subr.bf16.mxu0 0
    %4456 = vmatpush1.bf16.msra.mxu0 0
    %4457 = vmatprep.subr.bf16.mxu0 0
    %4458 = vmatpush1.bf16.msra.mxu0 0
    %4459 = vmatprep.subr.bf16.mxu0 0
    %4460 = vmatpush1.bf16.msra.mxu0 0
    %4461 = vmatprep.subr.bf16.mxu0 0
    %4462 = vmatpush1.bf16.msra.mxu0 0
    %4463 = vmatprep.subr.bf16.mxu0 0
    %4464 = vmatpush1.bf16.msra.mxu0 %v4445
    %4465 = vmatprep.subr.bf16.mxu0 0
    %4466 = vmatpush1.bf16.msra.mxu0 %v4444
    %4467 = vmatprep.subr.bf16.mxu0 0
    %4468 = vmatpush2.bf16.msra.mxu0 0
    %4469 = vmatprep.subr.bf16.mxu0 0
    %4470 = vmatpush2.bf16.msra.mxu0 0
    %4471 = vmatprep.subr.bf16.mxu0 0
    %4472 = vmatpush2.bf16.msra.mxu0 0
    %4473 = vmatprep.subr.bf16.mxu0 0
    %4474 = vmatpush2.bf16.msra.mxu0 0
    %4475 = vmatprep.subr.bf16.mxu0 0
    %4476 = vmatpush2.bf16.msra.mxu0 0
    %4477 = vmatprep.subr.bf16.mxu0 0
    %4478 = vmatpush2.bf16.msra.mxu0 0
    %4479 = vmatprep.subr.bf16.mxu0 0
    %4480 = vmatpush2.bf16.msra.mxu0 0
    %4481 = vmatprep.subr.bf16.mxu0 0
    %4482 = vmatpush2.bf16.msra.mxu0 0
    %4483 = vmatprep.mubr.bf16.mxu0 0
    %4484 = vmatmul.mubr.bf16.gmra.mxu0 %v4449
    %v4485 = vpop.f32.mrf.mxu0
    %v4486 = vadd.f32 %v4434, %v4485
    %v4487 = vpop.f32.mrf.mxu0
    %v4488 = vpop.f32.mrf.mxu0
    %v4489 = vpop.f32.mrf.mxu0
    %4490 = vdwg.mxu0
    %v4491 = vmax.f32 %v4486, 0.0
    %v4492 = vld [vmem:[%s17] sm:$0xff]
    %v4493 = vld [vmem:[%s17 + $0x8] sm:$0xff]
    %v4494 = vld [vmem:[%s17 + $0x10] sm:$0xff]
    %v4495 = vld [vmem:[%s17 + $0x18] sm:$0xff]
    %v4496 = vld [vmem:[%s17 + $0x20] sm:$0xff]
    %v4497 = vld [vmem:[%s17 + $0x28] sm:$0xff]
    %v4498 = vld [vmem:[%s18] sm:$0x1]
    %v4500 = vlaneseq
    %v4501 = vshrl.u32 %v4500, 7
    %v4502 = vsub.s32 0, %v4501
    %v4503 = vrot.slane %v4498, %v4502
    %vm4505 = vcmask 392192
    %v4507 = vsel %vm4505, %v4491, 0
    %4509 = vmatprep.subr.mxu0 0.0
    %4510 = vmatpush1.msra.mxu0 0.0
    %4511 = vmatprep.subr.mxu0 0.0
    %4512 = vmatpush1.msra.mxu0 0.0
    %4513 = vmatprep.subr.mxu0 0.0
    %4514 = vmatpush1.msra.mxu0 0.0
    %4515 = vmatprep.subr.mxu0 0.0
    %4516 = vmatpush1.msra.mxu0 0.0
    %4517 = vmatprep.subr.mxu0 0.0
    %4518 = vmatpush1.msra.mxu0 0.0
    %4519 = vmatprep.subr.mxu0 0.0
    %4520 = vmatpush1.msra.mxu0 0.0
    %4521 = vmatprep.subr.mxu0 0.0
    %4522 = vmatpush1.msra.mxu0 0.0
    %4523 = vmatprep.subr.mxu0 0.0
    %4524 = vmatpush1.msra.mxu0 0.0
    %4525 = vmatprep.subr.mxu0 0.0
    %4526 = vmatpush1.msra.mxu0 0.0
    %4527 = vmatprep.subr.mxu0 0.0
    %4528 = vmatpush1.msra.mxu0 0.0
    %4529 = vmatprep.subr.mxu0 0.0
    %4530 = vmatpush1.msra.mxu0 %v4497
    %4531 = vmatprep.subr.mxu0 0.0
    %4532 = vmatpush1.msra.mxu0 %v4496
    %4533 = vmatprep.subr.mxu0 0.0
    %4534 = vmatpush1.msra.mxu0 %v4495
    %4535 = vmatprep.subr.mxu0 0.0
    %4536 = vmatpush1.msra.mxu0 %v4494
    %4537 = vmatprep.subr.mxu0 0.0
    %4538 = vmatpush1.msra.mxu0 %v4493
    %4539 = vmatprep.subr.mxu0 0.0
    %4540 = vmatpush1.msra.mxu0 %v4492
    %4541 = vmatprep.subr.mxu0 0.0
    %4542 = vmatpush2.msra.mxu0 0.0
    %4543 = vmatprep.subr.mxu0 0.0
    %4544 = vmatpush2.msra.mxu0 0.0
    %4545 = vmatprep.subr.mxu0 0.0
    %4546 = vmatpush2.msra.mxu0 0.0
    %4547 = vmatprep.subr.mxu0 0.0
    %4548 = vmatpush2.msra.mxu0 0.0
    %4549 = vmatprep.subr.mxu0 0.0
    %4550 = vmatpush2.msra.mxu0 0.0
    %4551 = vmatprep.subr.mxu0 0.0
    %4552 = vmatpush2.msra.mxu0 0.0
    %4553 = vmatprep.subr.mxu0 0.0
    %4554 = vmatpush2.msra.mxu0 0.0
    %4555 = vmatprep.subr.mxu0 0.0
    %4556 = vmatpush2.msra.mxu0 0.0
    %4557 = vmatprep.subr.mxu0 0.0
    %4558 = vmatpush2.msra.mxu0 0.0
    %4559 = vmatprep.subr.mxu0 0.0
    %4560 = vmatpush2.msra.mxu0 0.0
    %4561 = vmatprep.subr.mxu0 0.0
    %4562 = vmatpush2.msra.mxu0 0.0
    %4563 = vmatprep.subr.mxu0 0.0
    %4564 = vmatpush2.msra.mxu0 0.0
    %4565 = vmatprep.subr.mxu0 0.0
    %4566 = vmatpush2.msra.mxu0 0.0
    %4567 = vmatprep.subr.mxu0 0.0
    %4568 = vmatpush2.msra.mxu0 0.0
    %4569 = vmatprep.subr.mxu0 0.0
    %4570 = vmatpush2.msra.mxu0 0.0
    %4571 = vmatprep.subr.mxu0 0.0
    %4572 = vmatpush2.msra.mxu0 0.0
    %4573 = vmatprep.mubr.f32.mxu0 0.0
    %4574 = vmatmul.mubr.f32.gmra.mxu0 %v4507
    %v4575 = vpop.f32.mrf.mxu0
    %v4576 = vadd.f32 %v4503, %v4575
    %v4577 = vpop.f32.mrf.mxu0
    %4578 = vdwg.mxu0
    %v4579 = vxor.u32 %v4576, 2147483648
    %v4580 = vmul.f32 %v4579, 1.442695
    %v4581 = vpow.pop %v4580
    %v4582 = vadd.f32 %v4581, 1.0
    %v4583 = vrcp.pop %v4582
    %v4584 = vmul.f32 1.0, %v4583
    %vm4585 = vcmask 17408
    %4586 = vst.msk [vmem:[#allocation2] sm:$0x3] %vm4585, %v4584
    // Predicated region
    $region78: #{hazard_transformer_forward.1} parent=1 // pred_check
      _
    $region79: #{hazard_transformer_forward.1} parent=1 // pred_check_branch
      %4588 = sbr.rel (0) target = $region81
    $region80: #{hazard_transformer_forward.1} parent=1 // pred_region
      %s4590 = ssub.s32 32, 32
      %4591 = vsyncadd [#allocation3], %s4590
      %s4593 = sshll.u32 [#allocation2], 4
      %s4594 = int_to_ptr.vmem [resolvable:$true] %s4593
      %4596 = dma.vmem_to_hbm [thread:$0]  %s4594, 32, %s19, [#allocation3]
    $region81: #{hazard_transformer_forward.1} parent=1 // pred_fallthru
      _
    // Predicated region
    $region82: #{hazard_transformer_forward.1} parent=1 // pred_check
      _
    $region83: #{hazard_transformer_forward.1} parent=1 // pred_check_branch
      %4598 = sbr.rel (0) target = $region85
    $region84: #{hazard_transformer_forward.1} parent=1 // pred_region
      %s4600 = ssub.s32 32, 32
      %4601 = vsyncadd [#allocation5], %s4600
      %s4603 = sshll.u32 [#allocation4], 4
      %s4604 = int_to_ptr.vmem [resolvable:$true] %s4603
      %4606 = dma.vmem_to_hbm [thread:$0]  %s4604, 32, %s20, [#allocation5]
    $region85: #{hazard_transformer_forward.1} parent=1 // pred_fallthru
      _
    // Predicated region
    $region86: #{hazard_transformer_forward.1} parent=1 // pred_check
      _
    $region87: #{hazard_transformer_forward.1} parent=1 // pred_check_branch
      %4608 = sbr.rel (0) target = $region89
    $region88: #{hazard_transformer_forward.1} parent=1 // pred_region
      %4609 = dma.done [#allocation3], 32
    $region89: #{hazard_transformer_forward.1} parent=1 // pred_fallthru
      _
    // Predicated region
    $region90: #{hazard_transformer_forward.1} parent=1 // pred_check
      _
    $region91: #{hazard_transformer_forward.1} parent=1 // pred_check_branch
      %4611 = sbr.rel (0) target = $region93
    $region92: #{hazard_transformer_forward.1} parent=1 // pred_region
      %4612 = dma.done [#allocation5], 32
    $region93: #{hazard_transformer_forward.1} parent=1 // pred_fallthru
      _
    %4613 = vsyncpa [#allocation3], 1
    %4614 = vsyncpa [#allocation5], 1

</llo_original>
